<compile_context>
chip_gen: v7x
topology: tpu7x:2x2x1
jax: 0.10.0
libtpu: 0.0.40
codegen_flags: <defaults>
</compile_context>

<pallas_src>
import jax
import jax.numpy as jnp
from jax.experimental import pallas as pl
from jax.experimental.pallas import tpu as pltpu


def _round_up(x, m):
    return ((x + m - 1) // m) * m


# ----------------------------- Pallas kernel -----------------------------

def _ce_loss_kernel(x_ref, wh_ref, bh_ref, wo_ref, bo_ref, lab_ref,
                    loss_ref, nsamp_ref,
                    h_scr, m_scr, l_scr, ll_scr):
    """Fused decoder layer + streamed output projection + flash cross-entropy.

    Grid: (row_tiles [parallel], vocab_tiles [arbitrary, reduction]).

    x_ref    : (TILE_N, Hp)     bf16 fused (target_emb + source_context)
    wh_ref   : (Hp, Hp)         bf16 decoder layer weight (constant block)
    bh_ref   : (1, Hp)          f32  decoder layer bias   (constant block)
    wo_ref   : (Hp, TILE_V)     bf16 output projection vocab tile
    bo_ref   : (1, TILE_V)      f32  output projection bias vocab tile
    lab_ref  : (TILE_N, 1)      int32 labels (0 == padding)
    loss_ref : (1, 1)           per-row-tile partial summed CE loss
    nsamp_ref: (1, 1)           per-row-tile partial number of non-pad tokens
    h_scr    : (TILE_N, Hp)     bf16 cached decoder-layer activations
    m_scr    : (TILE_N, 1)      f32  running row max of logits
    l_scr    : (TILE_N, 1)      f32  running row sum of exp(logits - m)
    ll_scr   : (TILE_N, 1)      f32  gathered label logit
    """
    k = pl.program_id(1)
    nk = pl.num_programs(1)
    tile_v = wo_ref.shape[1]

    @pl.when(k == 0)
    def _init():
        # Decoder layer once per row tile (bf16 MXU inputs, f32 accumulation).
        h = jnp.dot(x_ref[...], wh_ref[...],
                    preferred_element_type=jnp.float32)
        h = jnp.maximum(h + bh_ref[...], 0.0)
        h_scr[...] = h.astype(h_scr.dtype)
        m_scr[...] = jnp.full_like(m_scr, -jnp.inf)
        l_scr[...] = jnp.zeros_like(l_scr)
        ll_scr[...] = jnp.zeros_like(ll_scr)

    # Output-projection vocab tile on the MXU (W_out streams through VMEM).
    logits = jnp.dot(h_scr[...], wo_ref[...],
                     preferred_element_type=jnp.float32)
    logits = logits + bo_ref[...]                            # (T, TILE_V) f32

    labels = lab_ref[...]                                    # (T, 1) int32
    # Label gather restricted to the current vocab tile (local index check).
    local = labels - k * tile_v
    vocab_ids = jax.lax.broadcasted_iota(jnp.int32, logits.shape, 1)
    onehot = (vocab_ids == local).astype(jnp.float32)
    ll_scr[...] += jnp.sum(logits * onehot, axis=-1, keepdims=True)

    # Online (flash) softmax statistics.
    m_prev = m_scr[...]
    m_new = jnp.maximum(m_prev, jnp.max(logits, axis=-1, keepdims=True))
    alpha = jnp.exp(m_prev - m_new)
    p_sum = jnp.sum(jnp.exp(logits - m_new), axis=-1, keepdims=True)
    l_scr[...] = alpha * l_scr[...] + p_sum
    m_scr[...] = m_new

    @pl.when(k == nk - 1)
    def _finalize():
        valid = (labels != 0).astype(jnp.float32)            # padding mask
        lse = m_scr[...] + jnp.log(l_scr[...])
        loss_ref[...] = jnp.sum((lse - ll_scr[...]) * valid).reshape(1, 1)
        nsamp_ref[...] = jnp.sum(valid).reshape(1, 1)


def fused_ce_loss(x, w_h, b_h, w_out, b_out, labels, *,
                  tile_n=256, tile_v=512):
    """x: (N, H) f32, labels: (N,) int -> (loss_sum, num_samples) scalars."""
    N, H = x.shape
    V = w_out.shape[1]

    # Lane-dense padded shapes (H -> multiple of 128, vocab -> tile multiple,
    # rows -> tile multiple; padded rows get label 0 so they are masked out).
    Hp = _round_up(H, 128)
    tile_v = min(tile_v, _round_up(V, 128))
    Vp = _round_up(V, tile_v)
    Np = _round_up(N, tile_n)

    x_p = jnp.zeros((Np, Hp), jnp.bfloat16).at[:N, :H].set(
        x.astype(jnp.bfloat16))
    wh_p = jnp.zeros((Hp, Hp), jnp.bfloat16).at[:H, :H].set(
        w_h.astype(jnp.bfloat16))
    bh_p = jnp.zeros((1, Hp), jnp.float32).at[0, :H].set(
        b_h.astype(jnp.float32))
    wo_p = jnp.zeros((Hp, Vp), jnp.bfloat16).at[:H, :V].set(
        w_out.astype(jnp.bfloat16))
    # Padded vocab columns get a very negative bias so exp() underflows to 0.
    bo_p = jnp.full((1, Vp), -1e9, jnp.float32).at[0, :V].set(
        b_out.astype(jnp.float32))
    lab_p = jnp.zeros((Np, 1), jnp.int32).at[:N, 0].set(
        labels.astype(jnp.int32))

    gi = Np // tile_n
    gk = Vp // tile_v

    loss_part, nsamp_part = pl.pallas_call(
        _ce_loss_kernel,
        out_shape=(
            jax.ShapeDtypeStruct((gi, 1), jnp.float32),
            jax.ShapeDtypeStruct((gi, 1), jnp.float32),
        ),
        grid_spec=pltpu.PrefetchScalarGridSpec(
            num_scalar_prefetch=0,
            grid=(gi, gk),
            in_specs=[
                pl.BlockSpec((tile_n, Hp), lambda i, k: (i, 0)),   # x
                pl.BlockSpec((Hp, Hp), lambda i, k: (0, 0)),       # W_h (const)
                pl.BlockSpec((1, Hp), lambda i, k: (0, 0)),        # b_h (const)
                pl.BlockSpec((Hp, tile_v), lambda i, k: (0, k)),   # W_out tile
                pl.BlockSpec((1, tile_v), lambda i, k: (0, k)),    # b_out tile
                pl.BlockSpec((tile_n, 1), lambda i, k: (i, 0)),    # labels
            ],
            out_specs=[
                pl.BlockSpec((1, 1), lambda i, k: (i, 0)),         # loss part
                pl.BlockSpec((1, 1), lambda i, k: (i, 0)),         # nsamp part
            ],
            scratch_shapes=[
                pltpu.VMEM((tile_n, Hp), jnp.bfloat16),  # cached hidden h
                pltpu.VMEM((tile_n, 1), jnp.float32),    # running max m
                pltpu.VMEM((tile_n, 1), jnp.float32),    # running sum l
                pltpu.VMEM((tile_n, 1), jnp.float32),    # label logit
            ],
        ),
        compiler_params=pltpu.CompilerParams(
            # Row tiles are independent (megacore on v7x); vocab axis is the
            # online-softmax reduction and must stay sequential.
            dimension_semantics=("parallel", "arbitrary"),
            # Footprint at tile_n=256, Hp=128, tile_v=512 is <1 MiB; 32 MiB is
            # a safe scoped limit on v5e/v6e/v7x alike.
            vmem_limit_bytes=32 * 1024 * 1024,
        ),
    )(x_p, wh_p, bh_p, wo_p, bo_p, lab_p)

    return jnp.sum(loss_part), jnp.sum(nsamp_part)


# --------------------------- ModelWithLoss port ---------------------------

class ModelWithLossPallas:
    """JAX/Pallas equivalent of the PyTorch ModelWithLoss wrapper.

    `params` holds the synthetic SockeyeModel parameters; the single loss is
    a padding-masked cross-entropy computed inside the Pallas kernel.
    """

    def __init__(self, params):
        self.params = params

    def _model_outputs(self, source, source_length, target, target_length):
        p = self.params
        # Glue (embedding lookups, masking) stays in plain JAX.
        src_emb = p["E_src"][source]                       # (B, S_src, H)
        S_src = source.shape[1]
        pos = jnp.arange(S_src)[None, :]
        src_mask = (pos < source_length[:, None]).astype(jnp.float32)
        ctx = (src_emb * src_mask[..., None]).sum(axis=1)
        ctx = ctx / jnp.maximum(source_length[:, None].astype(jnp.float32), 1.0)

        tgt_emb = p["E_tgt"][target]                       # (B, S_tgt, H)
        hidden_in = tgt_emb + ctx[:, None, :]              # (B, S_tgt, H)
        return hidden_in

    def forward(self, source, source_length, target, target_length, labels):
        p = self.params
        hidden_in = self._model_outputs(source, source_length, target,
                                        target_length)
        B, S_tgt, H = hidden_in.shape
        x = hidden_in.reshape(B * S_tgt, H).astype(jnp.float32)
        lab = labels.reshape(B * S_tgt)

        # Hot path (matmuls + online-softmax + masked CE reduction) in Pallas.
        loss_sum, num_samples = fused_ce_loss(
            x, p["W_h"], p["b_h"], p["W_out"], p["b_out"], lab)

        loss_values = (loss_sum,)
        num_samples_list = (num_samples,)
        sum_losses = loss_values[0] if len(loss_values) == 1 else sum(loss_values)
        return sum_losses, loss_values, num_samples_list

    __call__ = forward


# --------------------------------- main -----------------------------------

if __name__ == "__main__":
    # Small shapes consistent with a seq2seq forward. V_TGT spans two vocab
    # tiles so the online-softmax / vocab-streaming path is exercised.
    B, S_SRC, S_TGT, H, V_SRC, V_TGT = 2, 8, 8, 64, 64, 1024

    key = jax.random.PRNGKey(0)
    k = jax.random.split(key, 10)

    params = {
        "E_src": 0.02 * jax.random.normal(k[0], (V_SRC, H), jnp.float32),
        "E_tgt": 0.02 * jax.random.normal(k[1], (V_TGT, H), jnp.float32),
        "W_h":   0.1 * jax.random.normal(k[2], (H, H), jnp.float32),
        "b_h":   jnp.zeros((H,), jnp.float32),
        "W_out": 0.1 * jax.random.normal(k[3], (H, V_TGT), jnp.float32),
        "b_out": jnp.zeros((V_TGT,), jnp.float32),
    }

    source = jax.random.randint(k[4], (B, S_SRC), 1, V_SRC, dtype=jnp.int32)
    target = jax.random.randint(k[5], (B, S_TGT), 1, V_TGT, dtype=jnp.int32)
    source_length = jnp.array([S_SRC, S_SRC - 2], dtype=jnp.int32)
    target_length = jnp.array([S_TGT, S_TGT - 3], dtype=jnp.int32)

    # Labels with 0 as padding beyond target_length.
    raw_labels = jax.random.randint(k[6], (B, S_TGT), 1, V_TGT, dtype=jnp.int32)
    tgt_pos = jnp.arange(S_TGT)[None, :]
    labels = jnp.where(tgt_pos < target_length[:, None], raw_labels, 0)

    model = ModelWithLossPallas(params)
    sum_losses, loss_values, num_samples = model(
        source, source_length, target, target_length, labels)
    jax.block_until_ready(sum_losses)

    # Pure-JAX (f32) reference check of the fused kernel. The kernel uses
    # bf16 MXU inputs with f32 accumulation, so tolerances are bf16-scale.
    def ref():
        src_emb = params["E_src"][source]
        mask = (jnp.arange(S_SRC)[None, :] < source_length[:, None]).astype(jnp.float32)
        ctx = (src_emb * mask[..., None]).sum(1) / source_length[:, None].astype(jnp.float32)
        hidden_in = params["E_tgt"][target] + ctx[:, None, :]
        h = jnp.maximum(hidden_in @ params["W_h"] + params["b_h"], 0.0)
        logits = h @ params["W_out"] + params["b_out"]
        logp = jax.nn.log_softmax(logits, axis=-1)
        ce = -jnp.take_along_axis(logp, labels[..., None], axis=-1)[..., 0]
        valid = (labels != 0).astype(jnp.float32)
        return jnp.sum(ce * valid), jnp.sum(valid)

    ref_loss, ref_n = ref()
    assert jnp.allclose(sum_losses, ref_loss, rtol=1e-2, atol=1e-1), (sum_losses, ref_loss)
    assert jnp.allclose(num_samples[0], ref_n), (num_samples[0], ref_n)

    print("KERNEL_OK")
</pallas_src>

<mosaic_0001>
module attributes {stable_mosaic.version = 11 : i64} {
  func.func @_ce_loss_kernel(%arg0: i32, %arg1: i32, %arg2: memref<256x128xbf16, #tpu.memory_space<vmem>>, %arg3: memref<128x128xbf16, #tpu.memory_space<vmem>>, %arg4: memref<1x128xf32, #tpu.memory_space<vmem>>, %arg5: memref<128x512xbf16, #tpu.memory_space<vmem>>, %arg6: memref<1x512xf32, #tpu.memory_space<vmem>>, %arg7: memref<256x1xi32, #tpu.memory_space<vmem>>, %arg8: memref<1x1xf32, #tpu.memory_space<vmem>>, %arg9: memref<1x1xf32, #tpu.memory_space<vmem>>, %arg10: memref<256x128xbf16, #tpu.memory_space<vmem>>, %arg11: memref<256x1xf32, #tpu.memory_space<vmem>>, %arg12: memref<256x1xf32, #tpu.memory_space<vmem>>, %arg13: memref<256x1xf32, #tpu.memory_space<vmem>>) attributes {dimension_semantics = [#tpu.dimension_semantics<parallel>, #tpu.dimension_semantics<arbitrary>], iteration_bounds = array<i64: 1, 2>, scalar_prefetch = 0 : i64, scratch_operands = 4 : i64, tpu.core_type = #tpu.core_type<tc>, window_params = [{transform_indices = @transform_0, window_bounds = array<i64: 256, 128>}, {pipeline_mode = #tpu.pipeline_mode<synchronous>, transform_indices = @transform_1, window_bounds = array<i64: 128, 128>}, {pipeline_mode = #tpu.pipeline_mode<synchronous>, transform_indices = @transform_2, window_bounds = array<i64: 1, 128>}, {transform_indices = @transform_3, window_bounds = array<i64: 128, 512>}, {transform_indices = @transform_4, window_bounds = array<i64: 1, 512>}, {transform_indices = @transform_5, window_bounds = array<i64: 256, 1>}, {transform_indices = @transform_6, window_bounds = array<i64: 1, 1>}, {transform_indices = @transform_7, window_bounds = array<i64: 1, 1>}]} {
    %c0_i32 = arith.constant 0 : i32
    %0 = arith.cmpi eq, %arg1, %c0_i32 : i32
    %1 = arith.extui %0 : i1 to i32
    %c0_i32_0 = arith.constant 0 : i32
    %2 = arith.cmpi ne, %1, %c0_i32_0 : i32
    scf.if %2 {
      %c0_24 = arith.constant 0 : index
      %c0_25 = arith.constant 0 : index
      %43 = vector.load %arg2[%c0_24, %c0_25] : memref<256x128xbf16, #tpu.memory_space<vmem>>, vector<256x128xbf16>
      %c0_26 = arith.constant 0 : index
      %c0_27 = arith.constant 0 : index
      %44 = vector.load %arg3[%c0_26, %c0_27] : memref<128x128xbf16, #tpu.memory_space<vmem>>, vector<128x128xbf16>
      %cst_28 = arith.constant dense<0.000000e+00> : vector<256x128xf32>
      %45 = tpu.matmul %43, %44, %cst_28 {dimension_numbers = #tpu.dot_dimension_numbers<[1], [0], [0], [1], [0, 0, 1, 1], [], []>} : vector<256x128xbf16>, vector<128x128xbf16>, vector<256x128xf32> -> vector<256x128xf32>
      %c0_29 = arith.constant 0 : index
      %c0_30 = arith.constant 0 : index
      %46 = vector.load %arg4[%c0_29, %c0_30] : memref<1x128xf32, #tpu.memory_space<vmem>>, vector<1x128xf32>
      %47 = vector.broadcast %46 : vector<1x128xf32> to vector<256x128xf32>
      %48 = arith.addf %45, %47 : vector<256x128xf32>
      %cst_31 = arith.constant 0.000000e+00 : f32
      %49 = vector.broadcast %cst_31 : f32 to vector<256x128xf32>
      %50 = arith.maximumf %48, %49 : vector<256x128xf32>
      %51 = arith.truncf %50 : vector<256x128xf32> to vector<256x128xbf16>
      %c0_32 = arith.constant 0 : index
      %c0_33 = arith.constant 0 : index
      %52 = vector.load %arg10[%c0_32, %c0_33] : memref<256x128xbf16, #tpu.memory_space<vmem>>, vector<256x128xbf16>
      tpu.vector_store %arg10[%c0_32, %c0_33], %51 {strides = array<i32>} : memref<256x128xbf16, #tpu.memory_space<vmem>>, vector<256x128xbf16>,
      %cst_34 = arith.constant 0xFF800000 : f32
      %53 = vector.broadcast %cst_34 : f32 to vector<256x1xf32>
      %c0_35 = arith.constant 0 : index
      %c0_36 = arith.constant 0 : index
      %54 = vector.load %arg11[%c0_35, %c0_36] : memref<256x1xf32, #tpu.memory_space<vmem>>, vector<256x1xf32>
      tpu.vector_store %arg11[%c0_35, %c0_36], %53 {strides = array<i32>} : memref<256x1xf32, #tpu.memory_space<vmem>>, vector<256x1xf32>,
      %cst_37 = arith.constant 0.000000e+00 : f32
      %55 = vector.broadcast %cst_37 : f32 to vector<256x1xf32>
      %c0_38 = arith.constant 0 : index
      %c0_39 = arith.constant 0 : index
      %56 = vector.load %arg12[%c0_38, %c0_39] : memref<256x1xf32, #tpu.memory_space<vmem>>, vector<256x1xf32>
      tpu.vector_store %arg12[%c0_38, %c0_39], %55 {strides = array<i32>} : memref<256x1xf32, #tpu.memory_space<vmem>>, vector<256x1xf32>,
      %cst_40 = arith.constant 0.000000e+00 : f32
      %57 = vector.broadcast %cst_40 : f32 to vector<256x1xf32>
      %c0_41 = arith.constant 0 : index
      %c0_42 = arith.constant 0 : index
      %58 = vector.load %arg13[%c0_41, %c0_42] : memref<256x1xf32, #tpu.memory_space<vmem>>, vector<256x1xf32>
      tpu.vector_store %arg13[%c0_41, %c0_42], %57 {strides = array<i32>} : memref<256x1xf32, #tpu.memory_space<vmem>>, vector<256x1xf32>,
    } else {
    }
    %c0 = arith.constant 0 : index
    %c0_1 = arith.constant 0 : index
    %3 = vector.load %arg10[%c0, %c0_1] : memref<256x128xbf16, #tpu.memory_space<vmem>>, vector<256x128xbf16>
    %c0_2 = arith.constant 0 : index
    %c0_3 = arith.constant 0 : index
    %4 = vector.load %arg5[%c0_2, %c0_3] : memref<128x512xbf16, #tpu.memory_space<vmem>>, vector<128x512xbf16>
    %cst = arith.constant dense<0.000000e+00> : vector<256x512xf32>
    %5 = tpu.matmul %3, %4, %cst {dimension_numbers = #tpu.dot_dimension_numbers<[1], [0], [0], [1], [0, 0, 1, 1], [], []>} : vector<256x128xbf16>, vector<128x512xbf16>, vector<256x512xf32> -> vector<256x512xf32>
    %c0_4 = arith.constant 0 : index
    %c0_5 = arith.constant 0 : index
    %6 = vector.load %arg6[%c0_4, %c0_5] : memref<1x512xf32, #tpu.memory_space<vmem>>, vector<1x512xf32>
    %7 = vector.broadcast %6 : vector<1x512xf32> to vector<256x512xf32>
    %8 = arith.addf %5, %7 : vector<256x512xf32>
    %c0_6 = arith.constant 0 : index
    %c0_7 = arith.constant 0 : index
    %9 = vector.load %arg7[%c0_6, %c0_7] : memref<256x1xi32, #tpu.memory_space<vmem>>, vector<256x1xi32>
    %c512_i32 = arith.constant 512 : i32
    %10 = arith.muli %arg1, %c512_i32 : i32
    %11 = vector.broadcast %10 : i32 to vector<256x1xi32>
    %12 = arith.subi %9, %11 : vector<256x1xi32>
    %13 = tpu.iota {dimensions = array<i32: 1>} : vector<256x512xi32>
    %14 = vector.broadcast %12 : vector<256x1xi32> to vector<256x512xi32>
    %15 = arith.cmpi eq, %13, %14 : vector<256x512xi32>
    %16 = arith.extui %15 : vector<256x512xi1> to vector<256x512xi32>
    %17 = arith.sitofp %16 : vector<256x512xi32> to vector<256x512xf32>
    %c0_8 = arith.constant 0 : index
    %c0_9 = arith.constant 0 : index
    %18 = vector.load %arg13[%c0_8, %c0_9] : memref<256x1xf32, #tpu.memory_space<vmem>>, vector<256x1xf32>
    %19 = arith.mulf %8, %17 : vector<256x512xf32>
    %cst_10 = arith.constant dense<0.000000e+00> : vector<256xf32>
    %20 = vector.multi_reduction <add>, %19, %cst_10 [1] : vector<256x512xf32> to vector<256xf32>
    %21 = vector.shape_cast %20 : vector<256xf32> to vector<256x1xf32>
    %22 = arith.addf %18, %21 : vector<256x1xf32>
    %c0_11 = arith.constant 0 : index
    %c0_12 = arith.constant 0 : index
    %23 = vector.load %arg13[%c0_11, %c0_12] : memref<256x1xf32, #tpu.memory_space<vmem>>, vector<256x1xf32>
    tpu.vector_store %arg13[%c0_11, %c0_12], %22 {strides = array<i32>} : memref<256x1xf32, #tpu.memory_space<vmem>>, vector<256x1xf32>,
    %c0_13 = arith.constant 0 : index
    %c0_14 = arith.constant 0 : index
    %24 = vector.load %arg11[%c0_13, %c0_14] : memref<256x1xf32, #tpu.memory_space<vmem>>, vector<256x1xf32>
    %cst_15 = arith.constant dense<0xFF800000> : vector<256xf32>
    %25 = vector.multi_reduction <maximumf>, %8, %cst_15 [1] : vector<256x512xf32> to vector<256xf32>
    %26 = vector.shape_cast %25 : vector<256xf32> to vector<256x1xf32>
    %27 = arith.maximumf %24, %26 : vector<256x1xf32>
    %28 = arith.subf %24, %27 : vector<256x1xf32>
    %29 = math.exp %28 : vector<256x1xf32>
    %30 = vector.broadcast %27 : vector<256x1xf32> to vector<256x512xf32>
    %31 = arith.subf %8, %30 : vector<256x512xf32>
    %32 = math.exp %31 : vector<256x512xf32>
    %cst_16 = arith.constant dense<0.000000e+00> : vector<256xf32>
    %33 = vector.multi_reduction <add>, %32, %cst_16 [1] : vector<256x512xf32> to vector<256xf32>
    %34 = vector.shape_cast %33 : vector<256xf32> to vector<256x1xf32>
    %c0_17 = arith.constant 0 : index
    %c0_18 = arith.constant 0 : index
    %35 = vector.load %arg12[%c0_17, %c0_18] : memref<256x1xf32, #tpu.memory_space<vmem>>, vector<256x1xf32>
    %36 = arith.mulf %29, %35 : vector<256x1xf32>
    %37 = arith.addf %36, %34 : vector<256x1xf32>
    %c0_19 = arith.constant 0 : index
    %c0_20 = arith.constant 0 : index
    %38 = vector.load %arg12[%c0_19, %c0_20] : memref<256x1xf32, #tpu.memory_space<vmem>>, vector<256x1xf32>
    tpu.vector_store %arg12[%c0_19, %c0_20], %37 {strides = array<i32>} : memref<256x1xf32, #tpu.memory_space<vmem>>, vector<256x1xf32>,
    %c0_21 = arith.constant 0 : index
    %c0_22 = arith.constant 0 : index
    %39 = vector.load %arg11[%c0_21, %c0_22] : memref<256x1xf32, #tpu.memory_space<vmem>>, vector<256x1xf32>
    tpu.vector_store %arg11[%c0_21, %c0_22], %27 {strides = array<i32>} : memref<256x1xf32, #tpu.memory_space<vmem>>, vector<256x1xf32>,
    %c1_i32 = arith.constant 1 : i32
    %40 = arith.cmpi eq, %arg1, %c1_i32 : i32
    %41 = arith.extui %40 : i1 to i32
    %c0_i32_23 = arith.constant 0 : i32
    %42 = arith.cmpi ne, %41, %c0_i32_23 : i32
    scf.if %42 {
      %c0_i32_24 = arith.constant 0 : i32
      %43 = vector.broadcast %c0_i32_24 : i32 to vector<256x1xi32>
      %44 = arith.cmpi ne, %9, %43 : vector<256x1xi32>
      %45 = arith.extui %44 : vector<256x1xi1> to vector<256x1xi32>
      %46 = arith.sitofp %45 : vector<256x1xi32> to vector<256x1xf32>
      %c0_25 = arith.constant 0 : index
      %c0_26 = arith.constant 0 : index
      %47 = vector.load %arg11[%c0_25, %c0_26] : memref<256x1xf32, #tpu.memory_space<vmem>>, vector<256x1xf32>
      %c0_27 = arith.constant 0 : index
      %c0_28 = arith.constant 0 : index
      %48 = vector.load %arg12[%c0_27, %c0_28] : memref<256x1xf32, #tpu.memory_space<vmem>>, vector<256x1xf32>
      %49 = math.log %48 : vector<256x1xf32>
      %50 = arith.addf %47, %49 : vector<256x1xf32>
      %c0_29 = arith.constant 0 : index
      %c0_30 = arith.constant 0 : index
      %51 = vector.load %arg13[%c0_29, %c0_30] : memref<256x1xf32, #tpu.memory_space<vmem>>, vector<256x1xf32>
      %52 = arith.subf %50, %51 : vector<256x1xf32>
      %53 = arith.mulf %52, %46 : vector<256x1xf32>
      %54 = vector.shape_cast %53 : vector<256x1xf32> to vector<1x256x1xf32>
      %cst_31 = arith.constant dense<0.000000e+00> : vector<1xf32>
      %55 = vector.multi_reduction <add>, %54, %cst_31 [1, 2] : vector<1x256x1xf32> to vector<1xf32>
      %56 = vector.shape_cast %55 : vector<1xf32> to vector<1x1x1xf32>
      %57 = vector.extract %56[0, 0, 0] : f32 from vector<1x1x1xf32>
      %58 = vector.broadcast %57 : f32 to vector<1x1xf32>
      %c0_32 = arith.constant 0 : index
      %c0_33 = arith.constant 0 : index
      %59 = vector.load %arg8[%c0_32, %c0_33] : memref<1x1xf32, #tpu.memory_space<vmem>>, vector<1x1xf32>
      tpu.vector_store %arg8[%c0_32, %c0_33], %58 {strides = array<i32>} : memref<1x1xf32, #tpu.memory_space<vmem>>, vector<1x1xf32>,
      %60 = vector.shape_cast %46 : vector<256x1xf32> to vector<1x256x1xf32>
      %cst_34 = arith.constant dense<0.000000e+00> : vector<1xf32>
      %61 = vector.multi_reduction <add>, %60, %cst_34 [1, 2] : vector<1x256x1xf32> to vector<1xf32>
      %62 = vector.shape_cast %61 : vector<1xf32> to vector<1x1x1xf32>
      %63 = vector.extract %62[0, 0, 0] : f32 from vector<1x1x1xf32>
      %64 = vector.broadcast %63 : f32 to vector<1x1xf32>
      %c0_35 = arith.constant 0 : index
      %c0_36 = arith.constant 0 : index
      %65 = vector.load %arg9[%c0_35, %c0_36] : memref<1x1xf32, #tpu.memory_space<vmem>>, vector<1x1xf32>
      tpu.vector_store %arg9[%c0_35, %c0_36], %64 {strides = array<i32>} : memref<1x1xf32, #tpu.memory_space<vmem>>, vector<1x1xf32>,
    } else {
    }
    return
  }
  func.func @transform_0(%arg0: i32, %arg1: i32) -> (i32, i32) {
    %c0_i32 = arith.constant 0 : i32
    %c0_i32_0 = arith.constant 0 : i32
    return %arg0, %c0_i32 : i32, i32
  }
  func.func @transform_1(%arg0: i32, %arg1: i32) -> (i32, i32) {
    %c0_i32 = arith.constant 0 : i32
    %c0_i32_0 = arith.constant 0 : i32
    %c0_i32_1 = arith.constant 0 : i32
    return %c0_i32, %c0_i32_0 : i32, i32
  }
  func.func @transform_2(%arg0: i32, %arg1: i32) -> (i32, i32) {
    %c0_i32 = arith.constant 0 : i32
    %c0_i32_0 = arith.constant 0 : i32
    %c0_i32_1 = arith.constant 0 : i32
    return %c0_i32, %c0_i32_0 : i32, i32
  }
  func.func @transform_3(%arg0: i32, %arg1: i32) -> (i32, i32) {
    %c0_i32 = arith.constant 0 : i32
    %c0_i32_0 = arith.constant 0 : i32
    return %c0_i32, %arg1 : i32, i32
  }
  func.func @transform_4(%arg0: i32, %arg1: i32) -> (i32, i32) {
    %c0_i32 = arith.constant 0 : i32
    %c0_i32_0 = arith.constant 0 : i32
    return %c0_i32, %arg1 : i32, i32
  }
  func.func @transform_5(%arg0: i32, %arg1: i32) -> (i32, i32) {
    %c0_i32 = arith.constant 0 : i32
    %c0_i32_0 = arith.constant 0 : i32
    return %arg0, %c0_i32 : i32, i32
  }
  func.func @transform_6(%arg0: i32, %arg1: i32) -> (i32, i32) {
    %c0_i32 = arith.constant 0 : i32
    %c0_i32_0 = arith.constant 0 : i32
    return %arg0, %c0_i32 : i32, i32
  }
  func.func @transform_7(%arg0: i32, %arg1: i32) -> (i32, i32) {
    %c0_i32 = arith.constant 0 : i32
    %c0_i32_0 = arith.constant 0 : i32
    return %arg0, %c0_i32 : i32, i32
  }
}

</mosaic_0001>

<llo_original>
// kernel: tpu_custom_call.1
$region0: #{tpu_custom_call.1}
  #allocation0 [shape = 'u32[]', space=smem, size = 0x4, offset = 0x4, fixed_abs, tag = 'smem constant byte address 0x4 - core index']
  #allocation1 [shape = 'u32[144,128]{1,0:T(1,128)}', space=vmem, size = 0x12000, scoped, tag = 'internal scratch']
  #allocation2 [shape = 'bf16[256,128]{1,0:T(16,128)(2,1)}', space=vmem, size = 0x10000, scoped, tag = 'scratch operand']
  #allocation3 [shape = 'f32[256,1]{1,0:T(8,128)}', space=vmem, size = 0x20000, scoped, tag = 'scratch operand']
  #allocation4 [shape = 'f32[256,1]{1,0:T(8,128)}', space=vmem, size = 0x20000, scoped, tag = 'scratch operand']
  #allocation5 [shape = 'f32[256,1]{1,0:T(8,128)}', space=vmem, size = 0x20000, scoped, tag = 'scratch operand']
  %s0 = inlined_call_operand.vmem [shape: bf16[256,128], index: 0, kind: input, shape index: {}]
  %s1 = inlined_call_operand.vmem [shape: bf16[128,128], index: 1, kind: input, shape index: {}]
  %s2 = inlined_call_operand.vmem [shape: f32[1,128], index: 2, kind: input, shape index: {}]
  %s3 = inlined_call_operand.hbm [shape: bf16[128,1024], index: 3, kind: input, shape index: {}]
  %s4 = inlined_call_operand.vmem [shape: f32[1,1024], index: 4, kind: input, shape index: {}]
  %s5 = inlined_call_operand.vmem [shape: s32[256,1], index: 5, kind: input, shape index: {}]
  %s6 = inlined_call_operand.hbm [shape: f32[1,1], index: 6, kind: output, shape index: {0}]
  %s7 = inlined_call_operand.hbm [shape: f32[1,1], index: 7, kind: output, shape index: {1}]
  %8 = xla_tuple %s6, %s7
  %s9 = sld [smem:[#allocation0]]
  $region77: #{tpu_custom_call.1} parent=0
    _
  %s11 = ssub.s32 1, %s9
  %s12 = scalar_select 0, %s11, %s9
  $region1: #{tpu_custom_call.1} parent=0
    #allocation6 [shape = 'u8[262144]{0}', space=vmem, size = 0x40000, scoped, tag = 'input window, operand 3']
    #allocation7 [shape = 's32[2]{0}', space=sflag, size = 0x8, scoped, tag = 'scoped memory for tpu_custom_call.1']
    #allocation8 [shape = 's32[2]{0}', space=sflag, size = 0x8, scoped, tag = 'scoped memory for tpu_custom_call.1']
    #allocation9 [shape = 'u8[512]{0}', space=vmem, size = 0x400, scoped, tag = 'output window, operand 0, single buffered']
    #allocation10 [shape = 'u8[512]{0}', space=vmem, size = 0x400, scoped, tag = 'output window, operand 1, single buffered']
    #allocation11 [shape = 's32[1]{0}', space=sflag, size = 0x4, scoped, tag = 'scoped memory for tpu_custom_call.1']
    %13 = vsyncpa [#allocation7], 0
    %s14 = scalar_lea.sflag [#allocation7], 1
    %15 = vsyncpa %s14, 0
    %16 = vsyncpa [#allocation8], 0
    %17 = vsyncpa [#allocation11], 0
    loop: start=0, step=1, limit=4
    $region2: #{tpu_custom_call.1} parent=1 // loop_pre_header
      _
    $region3: #{tpu_custom_call.1} parent=1 // loop_header
      %s19 = sphi 0, %s23
      %p20 = scmp.ge.s32.totalorder %s19, 4
      %s26 = sphi 0, %s38
      %s27 = sphi 0, %s34
      %s28 = sphi 0, %s26
      %s29 = sphi 0, %s27
      %s30 = sphi 0, %s28
      %s31 = sphi 0, %s29
      %s41 = sphi 0, %s43
      %s44 = sphi 0, %s41
      %s45 = sphi 0, %s44
      %s61 = sphi 0, %s45
      %s65 = sphi 0, %s65
      %s67 = sphi 0, %s65
      %s68 = sphi 0, %s67
      %s82 = sphi 0, %s68
      %s86 = sphi 0, %s86
      %s88 = sphi 0, %s86
      %s89 = sphi 0, %s88
      %s103 = sphi 0, %s89
      %s109 = sphi 0, %s111
      %s112 = sphi 0, %s109
      %s113 = sphi 0, %s112
      %s129 = sphi 0, %s113
      %s135 = sphi 0, %s137
      %s138 = sphi 0, %s135
      %s139 = sphi 0, %s138
      %s155 = sphi 0, %s139
      %s161 = sphi 0, %s163
      %s164 = sphi 0, %s161
      %s165 = sphi 0, %s164
      %s181 = sphi 0, %s165
      %s187 = sphi 0, %s189
      %s190 = sphi 0, %s187
      %s191 = sphi 0, %s190
      %s207 = sphi 0, %s191
      %s213 = sphi 0, %s215
      %s216 = sphi 0, %s213
      %s217 = sphi 0, %s216
      %s233 = sphi 0, %s217
    $region4: #{tpu_custom_call.1} parent=1 // loop_header_branch
      %22 = sbr.rel (%p20) target = $region8
    $region5: #{tpu_custom_call.1} parent=1 // loop_body
      %s24 = ssub.s32 %s19, 1
      %s25 = ssub.s32 %s19, 2
      %s32 = sadd.s32 1, %s27
      %p33 = scmp.ge.s32.totalorder %s32, 2
      %s34 = scalar_select %p33, 0, %s32
      %s35 = sadd.s32 1, %s26
      %s36 = scalar_select %p33, %s35, %s26
      %p37 = scmp.ge.s32.totalorder %s36, 1
      %s38 = scalar_select %p37, 0, %s36
      %s39 = ssub.s32 %s26, %s38
      %p40 = scmp.eq.s32.totalorder %s39, 0
      %s42 = sadd.s32 %s41, 1
      %s43 = scalar_select %p40, %s41, %s42
      %p46 = pneg %p40
      %p47 = scmp.eq.s32.totalorder %s19, 1
      %p48 = por %p46, %p47
      %p49 = scmp.ne.s32.totalorder %s41, %s44
      %p50 = scmp.eq.s32.totalorder %s19, 0
      %p51 = por %p49, %p50
      %p52 = scmp.ne.s32.totalorder %s41, %s44
      %p53 = scmp.eq.s32.totalorder %s24, 1
      %p54 = por %p52, %p53
      %p55 = scmp.ne.s32.totalorder %s44, %s45
      %p56 = scmp.eq.s32.totalorder %s24, 0
      %p57 = por %p55, %p56
      %p58 = scmp.ne.s32.totalorder %s44, %s45
      %p59 = scmp.eq.s32.totalorder %s25, 1
      %p60 = por %p58, %p59
      %p62 = scmp.ne.s32.totalorder %s45, %s61
      %p63 = scmp.eq.s32.totalorder %s25, 0
      %p64 = por %p62, %p63
      %s66 = sadd.s32 %s65, 1
      %p69 = scmp.eq.s32.totalorder %s19, 1
      %p70 = scmp.ne.s32.totalorder %s65, %s67
      %p71 = scmp.eq.s32.totalorder %s19, 0
      %p72 = por %p70, %p71
      %p73 = scmp.ne.s32.totalorder %s65, %s67
      %p74 = scmp.eq.s32.totalorder %s24, 1
      %p75 = por %p73, %p74
      %p76 = scmp.ne.s32.totalorder %s67, %s68
      %p77 = scmp.eq.s32.totalorder %s24, 0
      %p78 = por %p76, %p77
      %p79 = scmp.ne.s32.totalorder %s67, %s68
      %p80 = scmp.eq.s32.totalorder %s25, 1
      %p81 = por %p79, %p80
      %p83 = scmp.ne.s32.totalorder %s68, %s82
      %p84 = scmp.eq.s32.totalorder %s25, 0
      %p85 = por %p83, %p84
      %s87 = sadd.s32 %s86, 1
      %p90 = scmp.eq.s32.totalorder %s19, 1
      %p91 = scmp.ne.s32.totalorder %s86, %s88
      %p92 = scmp.eq.s32.totalorder %s19, 0
      %p93 = por %p91, %p92
      %p94 = scmp.ne.s32.totalorder %s86, %s88
      %p95 = scmp.eq.s32.totalorder %s24, 1
      %p96 = por %p94, %p95
      %p97 = scmp.ne.s32.totalorder %s88, %s89
      %p98 = scmp.eq.s32.totalorder %s24, 0
      %p99 = por %p97, %p98
      %p100 = scmp.ne.s32.totalorder %s88, %s89
      %p101 = scmp.eq.s32.totalorder %s25, 1
      %p102 = por %p100, %p101
      %p104 = scmp.ne.s32.totalorder %s89, %s103
      %p105 = scmp.eq.s32.totalorder %s25, 0
      %p106 = por %p104, %p105
      %s107 = ssub.s32 %s27, %s34
      %p108 = scmp.eq.s32.totalorder %s107, 0
      %s110 = sadd.s32 %s109, 1
      %s111 = scalar_select %p108, %s109, %s110
      %p114 = pneg %p108
      %p115 = scmp.eq.s32.totalorder %s19, 1
      %p116 = por %p114, %p115
      %p117 = scmp.ne.s32.totalorder %s109, %s112
      %p118 = scmp.eq.s32.totalorder %s19, 0
      %p119 = por %p117, %p118
      %p120 = scmp.ne.s32.totalorder %s109, %s112
      %p121 = scmp.eq.s32.totalorder %s24, 1
      %p122 = por %p120, %p121
      %p123 = scmp.ne.s32.totalorder %s112, %s113
      %p124 = scmp.eq.s32.totalorder %s24, 0
      %p125 = por %p123, %p124
      %p126 = scmp.ne.s32.totalorder %s112, %s113
      %p127 = scmp.eq.s32.totalorder %s25, 1
      %p128 = por %p126, %p127
      %p130 = scmp.ne.s32.totalorder %s113, %s129
      %p131 = scmp.eq.s32.totalorder %s25, 0
      %p132 = por %p130, %p131
      %s133 = ssub.s32 %s27, %s34
      %p134 = scmp.eq.s32.totalorder %s133, 0
      %s136 = sadd.s32 %s135, 1
      %s137 = scalar_select %p134, %s135, %s136
      %p140 = pneg %p134
      %p141 = scmp.eq.s32.totalorder %s19, 1
      %p142 = por %p140, %p141
      %p143 = scmp.ne.s32.totalorder %s135, %s138
      %p144 = scmp.eq.s32.totalorder %s19, 0
      %p145 = por %p143, %p144
      %p146 = scmp.ne.s32.totalorder %s135, %s138
      %p147 = scmp.eq.s32.totalorder %s24, 1
      %p148 = por %p146, %p147
      %p149 = scmp.ne.s32.totalorder %s138, %s139
      %p150 = scmp.eq.s32.totalorder %s24, 0
      %p151 = por %p149, %p150
      %p152 = scmp.ne.s32.totalorder %s138, %s139
      %p153 = scmp.eq.s32.totalorder %s25, 1
      %p154 = por %p152, %p153
      %p156 = scmp.ne.s32.totalorder %s139, %s155
      %p157 = scmp.eq.s32.totalorder %s25, 0
      %p158 = por %p156, %p157
      %s159 = ssub.s32 %s26, %s38
      %p160 = scmp.eq.s32.totalorder %s159, 0
      %s162 = sadd.s32 %s161, 1
      %s163 = scalar_select %p160, %s161, %s162
      %p166 = pneg %p160
      %p167 = scmp.eq.s32.totalorder %s19, 1
      %p168 = por %p166, %p167
      %p169 = scmp.ne.s32.totalorder %s161, %s164
      %p170 = scmp.eq.s32.totalorder %s19, 0
      %p171 = por %p169, %p170
      %p172 = scmp.ne.s32.totalorder %s161, %s164
      %p173 = scmp.eq.s32.totalorder %s24, 1
      %p174 = por %p172, %p173
      %p175 = scmp.ne.s32.totalorder %s164, %s165
      %p176 = scmp.eq.s32.totalorder %s24, 0
      %p177 = por %p175, %p176
      %p178 = scmp.ne.s32.totalorder %s164, %s165
      %p179 = scmp.eq.s32.totalorder %s25, 1
      %p180 = por %p178, %p179
      %p182 = scmp.ne.s32.totalorder %s165, %s181
      %p183 = scmp.eq.s32.totalorder %s25, 0
      %p184 = por %p182, %p183
      %s185 = ssub.s32 %s26, %s38
      %p186 = scmp.eq.s32.totalorder %s185, 0
      %s188 = sadd.s32 %s187, 1
      %s189 = scalar_select %p186, %s187, %s188
      %p192 = pneg %p186
      %p193 = scmp.eq.s32.totalorder %s19, 1
      %p194 = por %p192, %p193
      %p195 = scmp.ne.s32.totalorder %s187, %s190
      %p196 = scmp.eq.s32.totalorder %s19, 0
      %p197 = por %p195, %p196
      %p198 = scmp.ne.s32.totalorder %s187, %s190
      %p199 = scmp.eq.s32.totalorder %s24, 1
      %p200 = por %p198, %p199
      %p201 = scmp.ne.s32.totalorder %s190, %s191
      %p202 = scmp.eq.s32.totalorder %s24, 0
      %p203 = por %p201, %p202
      %p204 = scmp.ne.s32.totalorder %s190, %s191
      %p205 = scmp.eq.s32.totalorder %s25, 1
      %p206 = por %p204, %p205
      %p208 = scmp.ne.s32.totalorder %s191, %s207
      %p209 = scmp.eq.s32.totalorder %s25, 0
      %p210 = por %p208, %p209
      %s211 = ssub.s32 %s26, %s38
      %p212 = scmp.eq.s32.totalorder %s211, 0
      %s214 = sadd.s32 %s213, 1
      %s215 = scalar_select %p212, %s213, %s214
      %p218 = pneg %p212
      %p219 = scmp.eq.s32.totalorder %s19, 1
      %p220 = por %p218, %p219
      %p221 = scmp.ne.s32.totalorder %s213, %s216
      %p222 = scmp.eq.s32.totalorder %s19, 0
      %p223 = por %p221, %p222
      %p224 = scmp.ne.s32.totalorder %s213, %s216
      %p225 = scmp.eq.s32.totalorder %s24, 1
      %p226 = por %p224, %p225
      %p227 = scmp.ne.s32.totalorder %s216, %s217
      %p228 = scmp.eq.s32.totalorder %s24, 0
      %p229 = por %p227, %p228
      %p230 = scmp.ne.s32.totalorder %s216, %s217
      %p231 = scmp.eq.s32.totalorder %s25, 1
      %p232 = por %p230, %p231
      %p234 = scmp.ne.s32.totalorder %s217, %s233
      %p235 = scmp.eq.s32.totalorder %s25, 0
      %p236 = por %p234, %p235
      %p237 = scmp.le.s32.totalorder 1, %s19
      %p238 = scmp.lt.s32.totalorder %s19, 3
      %p239 = pnand %p237, %p238
      %p240 = pneg %p239
      // Predicated region
      $region9: #{tpu_custom_call.1} parent=5 // pred_check
        _
      $region10: #{tpu_custom_call.1} parent=5 // pred_check_branch
        %242 = sbr.rel (%p239) target = $region12
      $region11: #{tpu_custom_call.1} parent=5 // pred_region
        %s243 = ssub.s32 %s19, 1
        // Predicated region
        $region13: #{tpu_custom_call.1} parent=11 // pred_check
          %p244 = pneg %p57
        $region14: #{tpu_custom_call.1} parent=11 // pred_check_branch
          %246 = sbr.rel (%p244) target = $region16
        $region15: #{tpu_custom_call.1} parent=11 // pred_region
          %s247 = smul.u32 32, %s28
          %p248 = scmp.lt.s32.totalorder %s247, 31
          %s249 = scalar_select %p248, %s247, 31
          %s250 = smul.addr %s249, 4
          %s251 = scalar_lea.vmem %s0, %s250
          %s252 = smul.u32 32, %s28
        $region16: #{tpu_custom_call.1} parent=11 // pred_fallthru
          _
        // Predicated region
        $region17: #{tpu_custom_call.1} parent=11 // pred_check
          %p253 = pneg %p78
        $region18: #{tpu_custom_call.1} parent=11 // pred_check_branch
          %255 = sbr.rel (%p253) target = $region20
        $region19: #{tpu_custom_call.1} parent=11 // pred_region
          _
        $region20: #{tpu_custom_call.1} parent=11 // pred_fallthru
          _
        // Predicated region
        $region21: #{tpu_custom_call.1} parent=11 // pred_check
          %p256 = pneg %p99
        $region22: #{tpu_custom_call.1} parent=11 // pred_check_branch
          %258 = sbr.rel (%p256) target = $region24
        $region23: #{tpu_custom_call.1} parent=11 // pred_region
          _
        $region24: #{tpu_custom_call.1} parent=11 // pred_fallthru
          _
        // Predicated region
        $region25: #{tpu_custom_call.1} parent=11 // pred_check
          %p259 = pneg %p177
        $region26: #{tpu_custom_call.1} parent=11 // pred_check_branch
          %261 = sbr.rel (%p259) target = $region28
        $region27: #{tpu_custom_call.1} parent=11 // pred_region
          %s262 = smul.u32 32, %s28
          %p263 = scmp.lt.s32.totalorder %s262, 31
          %s264 = scalar_select %p263, %s262, 31
          %s265 = smul.addr %s264, 8
          %s266 = scalar_lea.vmem %s5, %s265
          %s267 = smul.u32 32, %s28
        $region28: #{tpu_custom_call.1} parent=11 // pred_fallthru
          _
      $region12: #{tpu_custom_call.1} parent=5 // pred_fallthru
        _
      %p268 = scmp.lt.s32.totalorder %s19, 2
      // Predicated region
      $region29: #{tpu_custom_call.1} parent=5 // pred_check
        %p269 = pneg %p268
      $region30: #{tpu_custom_call.1} parent=5 // pred_check_branch
        %271 = sbr.rel (%p269) target = $region32
      $region31: #{tpu_custom_call.1} parent=5 // pred_region
        // Predicated region
        $region33: #{tpu_custom_call.1} parent=31 // pred_check
          %p272 = pneg %p119
        $region34: #{tpu_custom_call.1} parent=31 // pred_check_branch
          %274 = sbr.rel (%p272) target = $region36
        $region35: #{tpu_custom_call.1} parent=31 // pred_region
          %s275 = sand.u32 %s109, 1
          %s276 = scalar_lea.sflag [#allocation7], %s275
          %s277 = sand.u32 %s109, 1
          %s278 = smul.addr %s277, 256
          %s279 = scalar_lea.vmem [#allocation6], %s278
          %s280 = smul.u32 4, %s27
          %s282 = ssub.s32 4096, 4096
          %283 = vsyncadd %s276, %s282
          %s284 = smul.addr %s280, 64
          %s285 = scalar_lea.hbm %s3, %s284
          %s286 = sshll.u32 %s279, 4
          %s287 = int_to_ptr.vmem [resolvable:$true] %s286
          %292 = dma.hbm_to_vmem [thread:$0]  %s285, 4096, %s287, %s276, 512, 256, 16
        $region36: #{tpu_custom_call.1} parent=31 // pred_fallthru
          _
        // Predicated region
        $region37: #{tpu_custom_call.1} parent=31 // pred_check
          %p293 = pneg %p145
        $region38: #{tpu_custom_call.1} parent=31 // pred_check_branch
          %295 = sbr.rel (%p293) target = $region40
        $region39: #{tpu_custom_call.1} parent=31 // pred_region
          %s296 = smul.u32 4, %s27
          %p297 = scmp.lt.s32.totalorder %s296, 7
          %s298 = scalar_select %p297, %s296, 7
          %s299 = scalar_lea.vmem %s4, %s298
          %s300 = smul.u32 4, %s27
        $region40: #{tpu_custom_call.1} parent=31 // pred_fallthru
          _
      $region32: #{tpu_custom_call.1} parent=5 // pred_fallthru
        _
      %p301 = scmp.le.s32.totalorder 1, %s19
      %p302 = scmp.lt.s32.totalorder %s19, 3
      %p303 = pnand %p301, %p302
      %p304 = pneg %p303
      // Predicated region
      $region41: #{tpu_custom_call.1} parent=5 // pred_check
        _
      $region42: #{tpu_custom_call.1} parent=5 // pred_check_branch
        %306 = sbr.rel (%p303) target = $region44
      $region43: #{tpu_custom_call.1} parent=5 // pred_region
        %s307 = ssub.s32 %s19, 1
        %s308 = sand.u32 %s112, 1
        %s309 = scalar_lea.sflag [#allocation7], %s308
        %s310 = sand.u32 %s112, 1
        %s311 = smul.addr %s310, 256
        %s312 = scalar_lea.vmem [#allocation6], %s311
        // Predicated region
        $region45: #{tpu_custom_call.1} parent=43 // pred_check
          %p313 = pneg %p125
        $region46: #{tpu_custom_call.1} parent=43 // pred_check_branch
          %315 = sbr.rel (%p313) target = $region48
        $region47: #{tpu_custom_call.1} parent=43 // pred_region
          %316 = dma.done %s309, 4096
        $region48: #{tpu_custom_call.1} parent=43 // pred_fallthru
          _
        %s317 = smul.u32 32, %s28
        %p318 = scmp.lt.s32.totalorder %s317, 31
        %s319 = scalar_select %p318, %s317, 31
        %s320 = smul.addr %s319, 4
        %s321 = scalar_lea.vmem %s0, %s320
        %p322 = pneg %p57
        %p323 = pneg %p54
        %p324 = pneg %p78
        %p325 = pneg %p75
        %p326 = pneg %p99
        %p327 = pneg %p96
        %s328 = sand.u32 %s112, 1
        %s329 = scalar_lea.sflag [#allocation7], %s328
        %s330 = sand.u32 %s112, 1
        %s331 = smul.addr %s330, 256
        %s332 = scalar_lea.vmem [#allocation6], %s331
        %p333 = pneg %p125
        %p334 = pneg %p122
        %s335 = smul.u32 4, %s29
        %p336 = scmp.lt.s32.totalorder %s335, 7
        %s337 = scalar_select %p336, %s335, 7
        %s338 = scalar_lea.vmem %s4, %s337
        %p339 = pneg %p151
        %p340 = pneg %p148
        %s341 = smul.u32 32, %s28
        %p342 = scmp.lt.s32.totalorder %s341, 31
        %s343 = scalar_select %p342, %s341, 31
        %s344 = smul.addr %s343, 8
        %s345 = scalar_lea.vmem %s5, %s344
        %p346 = pneg %p177
        %p347 = pneg %p174
        %p348 = pneg %p203
        %p349 = pneg %p200
        %p350 = pneg %p229
        %p351 = pneg %p226
        %s352 = smul.u32 32, %s28
        %p353 = scmp.lt.s32.totalorder %s352, 31
        %s354 = scalar_select %p353, %s352, 31
        %s355 = smul.addr %s354, 4
        %s356 = scalar_lea.vmem %s0, %s355
        %s357 = smul.u32 32, %s28
        %s358 = smul.u32 4, %s29
        %s359 = smul.u32 4, %s29
        %p360 = scmp.lt.s32.totalorder %s359, 7
        %s361 = scalar_select %p360, %s359, 7
        %s362 = scalar_lea.vmem %s4, %s361
        %s363 = smul.u32 4, %s29
        %s364 = smul.u32 32, %s28
        %p365 = scmp.lt.s32.totalorder %s364, 31
        %s366 = scalar_select %p365, %s364, 31
        %s367 = smul.addr %s366, 8
        %s368 = scalar_lea.vmem %s5, %s367
        %s369 = smul.u32 32, %s28
        %p371 = scmp.eq.s32.totalorder %s29, 0
        // Predicated region
        $region49: #{tpu_custom_call.1} parent=43 // pred_check
          %p372 = pneg %p371
        $region50: #{tpu_custom_call.1} parent=43 // pred_check_branch
          %374 = sbr.rel (%p372) target = $region52
        $region51: #{tpu_custom_call.1} parent=43 // pred_region
          %v375 = vld [vmem:[%s356] sm:$0xf]
          %v376 = vld [vmem:[%s356 + $0x4] sm:$0xf]
          %v377 = vld [vmem:[%s356 + $0x8] sm:$0xf]
          %v378 = vld [vmem:[%s356 + $0xc] sm:$0xf]
          %v379 = vld [vmem:[%s356 + $0x10] sm:$0xf]
          %v380 = vld [vmem:[%s356 + $0x14] sm:$0xf]
          %v381 = vld [vmem:[%s356 + $0x18] sm:$0xf]
          %v382 = vld [vmem:[%s356 + $0x1c] sm:$0xf]
          %v383 = vld [vmem:[%s356 + $0x20] sm:$0xf]
          %v384 = vld [vmem:[%s356 + $0x24] sm:$0xf]
          %v385 = vld [vmem:[%s356 + $0x28] sm:$0xf]
          %v386 = vld [vmem:[%s356 + $0x2c] sm:$0xf]
          %v387 = vld [vmem:[%s356 + $0x30] sm:$0xf]
          %v388 = vld [vmem:[%s356 + $0x34] sm:$0xf]
          %v389 = vld [vmem:[%s356 + $0x38] sm:$0xf]
          %v390 = vld [vmem:[%s356 + $0x3c] sm:$0xf]
          %v391 = vld [vmem:[%s356 + $0x40] sm:$0xf]
          %v392 = vld [vmem:[%s356 + $0x44] sm:$0xf]
          %v393 = vld [vmem:[%s356 + $0x48] sm:$0xf]
          %v394 = vld [vmem:[%s356 + $0x4c] sm:$0xf]
          %v395 = vld [vmem:[%s356 + $0x50] sm:$0xf]
          %v396 = vld [vmem:[%s356 + $0x54] sm:$0xf]
          %v397 = vld [vmem:[%s356 + $0x58] sm:$0xf]
          %v398 = vld [vmem:[%s356 + $0x5c] sm:$0xf]
          %v399 = vld [vmem:[%s356 + $0x60] sm:$0xf]
          %v400 = vld [vmem:[%s356 + $0x64] sm:$0xf]
          %v401 = vld [vmem:[%s356 + $0x68] sm:$0xf]
          %v402 = vld [vmem:[%s356 + $0x6c] sm:$0xf]
          %v403 = vld [vmem:[%s356 + $0x70] sm:$0xf]
          %v404 = vld [vmem:[%s356 + $0x74] sm:$0xf]
          %v405 = vld [vmem:[%s356 + $0x78] sm:$0xf]
          %v406 = vld [vmem:[%s356 + $0x7c] sm:$0xf]
          %v407 = vld [vmem:[%s1] sm:$0xf]
          %v408 = vld [vmem:[%s1 + $0x4] sm:$0xf]
          %v409 = vld [vmem:[%s1 + $0x8] sm:$0xf]
          %v410 = vld [vmem:[%s1 + $0xc] sm:$0xf]
          %v411 = vld [vmem:[%s1 + $0x10] sm:$0xf]
          %v412 = vld [vmem:[%s1 + $0x14] sm:$0xf]
          %v413 = vld [vmem:[%s1 + $0x18] sm:$0xf]
          %v414 = vld [vmem:[%s1 + $0x1c] sm:$0xf]
          %v415 = vld [vmem:[%s1 + $0x20] sm:$0xf]
          %v416 = vld [vmem:[%s1 + $0x24] sm:$0xf]
          %v417 = vld [vmem:[%s1 + $0x28] sm:$0xf]
          %v418 = vld [vmem:[%s1 + $0x2c] sm:$0xf]
          %v419 = vld [vmem:[%s1 + $0x30] sm:$0xf]
          %v420 = vld [vmem:[%s1 + $0x34] sm:$0xf]
          %v421 = vld [vmem:[%s1 + $0x38] sm:$0xf]
          %v422 = vld [vmem:[%s1 + $0x3c] sm:$0xf]
          %v423 = vld [vmem:[%s2] sm:$0x1]
          %v425 = vlaneseq
          %v426 = vshrl.u32 %v425, 7
          %v427 = vsub.s32 0, %v426
          %v428 = vrot.slane %v423, %v427
          %v462 = vunpack.c.l.b16 %v375
          %v463 = vunpack.c.l.b16 %v376
          %v464 = vunpack.c.l.b16 %v377
          %v465 = vunpack.c.l.b16 %v378
          %v466 = vunpack.c.l.b16 %v379
          %v467 = vunpack.c.l.b16 %v380
          %v468 = vunpack.c.l.b16 %v381
          %v469 = vunpack.c.l.b16 %v382
          %v470 = vunpack.c.l.b16 %v383
          %v471 = vunpack.c.l.b16 %v384
          %v472 = vunpack.c.l.b16 %v385
          %v473 = vunpack.c.l.b16 %v386
          %v474 = vunpack.c.l.b16 %v387
          %v475 = vunpack.c.l.b16 %v388
          %v476 = vunpack.c.l.b16 %v389
          %v477 = vunpack.c.l.b16 %v390
          %v478 = vunpack.c.l.b16 %v391
          %v479 = vunpack.c.l.b16 %v392
          %v480 = vunpack.c.l.b16 %v393
          %v481 = vunpack.c.l.b16 %v394
          %v482 = vunpack.c.l.b16 %v395
          %v483 = vunpack.c.l.b16 %v396
          %v484 = vunpack.c.l.b16 %v397
          %v485 = vunpack.c.l.b16 %v398
          %v486 = vunpack.c.l.b16 %v399
          %v487 = vunpack.c.l.b16 %v400
          %v488 = vunpack.c.l.b16 %v401
          %v489 = vunpack.c.l.b16 %v402
          %v490 = vunpack.c.l.b16 %v403
          %v491 = vunpack.c.l.b16 %v404
          %v492 = vunpack.c.l.b16 %v405
          %v493 = vunpack.c.l.b16 %v406
          %v494 = vpack.c.b16 %v463, %v462
          %v495 = vpack.c.b16 %v465, %v464
          %v496 = vpack.c.b16 %v467, %v466
          %v497 = vpack.c.b16 %v469, %v468
          %v498 = vpack.c.b16 %v471, %v470
          %v499 = vpack.c.b16 %v473, %v472
          %v500 = vpack.c.b16 %v475, %v474
          %v501 = vpack.c.b16 %v477, %v476
          %v502 = vpack.c.b16 %v479, %v478
          %v503 = vpack.c.b16 %v481, %v480
          %v504 = vpack.c.b16 %v483, %v482
          %v505 = vpack.c.b16 %v485, %v484
          %v506 = vpack.c.b16 %v487, %v486
          %v507 = vpack.c.b16 %v489, %v488
          %v508 = vpack.c.b16 %v491, %v490
          %v509 = vpack.c.b16 %v493, %v492
          %v542 = vunpack.c.l.b16 %v407
          %v543 = vunpack.c.l.b16 %v408
          %v544 = vunpack.c.l.b16 %v409
          %v545 = vunpack.c.l.b16 %v410
          %v546 = vunpack.c.l.b16 %v411
          %v547 = vunpack.c.l.b16 %v412
          %v548 = vunpack.c.l.b16 %v413
          %v549 = vunpack.c.l.b16 %v414
          %v550 = vunpack.c.l.b16 %v415
          %v551 = vunpack.c.l.b16 %v416
          %v552 = vunpack.c.l.b16 %v417
          %v553 = vunpack.c.l.b16 %v418
          %v554 = vunpack.c.l.b16 %v419
          %v555 = vunpack.c.l.b16 %v420
          %v556 = vunpack.c.l.b16 %v421
          %v557 = vunpack.c.l.b16 %v422
          %v558 = vpack.c.b16 %v543, %v542
          %v559 = vpack.c.b16 %v545, %v544
          %v560 = vpack.c.b16 %v547, %v546
          %v561 = vpack.c.b16 %v549, %v548
          %v562 = vpack.c.b16 %v551, %v550
          %v563 = vpack.c.b16 %v553, %v552
          %v564 = vpack.c.b16 %v555, %v554
          %v565 = vpack.c.b16 %v557, %v556
          %574 = vmatprep.subr.bf16.mxu0 0
          %575 = vmatpush1.bf16.msra.mxu0 %v558
          %576 = vmatprep.subr.bf16.mxu0 0
          %577 = vmatpush1.bf16.msra.mxu0 %v559
          %578 = vmatprep.subr.bf16.mxu0 0
          %579 = vmatpush1.bf16.msra.mxu0 %v560
          %580 = vmatprep.subr.bf16.mxu0 0
          %581 = vmatpush1.bf16.msra.mxu0 %v561
          %582 = vmatprep.subr.bf16.mxu0 0
          %583 = vmatpush1.bf16.msra.mxu0 %v562
          %584 = vmatprep.subr.bf16.mxu0 0
          %585 = vmatpush1.bf16.msra.mxu0 %v563
          %586 = vmatprep.subr.bf16.mxu0 0
          %587 = vmatpush1.bf16.msra.mxu0 %v564
          %588 = vmatprep.subr.bf16.mxu0 0
          %589 = vmatpush1.bf16.msra.mxu0 %v565
          %590 = vmatprep.subr.bf16.mxu0 0
          %591 = vmatpush1.bf16.msra.mxu0 0
          %592 = vmatprep.subr.bf16.mxu0 0
          %593 = vmatpush1.bf16.msra.mxu0 0
          %594 = vmatprep.subr.bf16.mxu0 0
          %595 = vmatpush1.bf16.msra.mxu0 0
          %596 = vmatprep.subr.bf16.mxu0 0
          %597 = vmatpush1.bf16.msra.mxu0 0
          %598 = vmatprep.subr.bf16.mxu0 0
          %599 = vmatpush1.bf16.msra.mxu0 0
          %600 = vmatprep.subr.bf16.mxu0 0
          %601 = vmatpush1.bf16.msra.mxu0 0
          %602 = vmatprep.subr.bf16.mxu0 0
          %603 = vmatpush1.bf16.msra.mxu0 0
          %604 = vmatprep.subr.bf16.mxu0 0
          %605 = vmatpush1.bf16.msra.mxu0 0
          %606 = vmatprep.mubr.bf16.mxu0 0
          %607 = vmatmul.mubr.bf16.gmra.mrb[0].mxu0 %v494
          %v608 = vpop.f32.mrb[0].mxu0
          %v609 = vadd.f32 %v428, %v608
          %v610 = vpop.f32.mrb[0].mxu0
          %v611 = vpop.f32.mrb[0].mxu0
          %v612 = vadd.f32 %v428, %v611
          %v613 = vpop.f32.mrb[0].mxu0
          %614 = vmatprep.mubr.bf16.mxu0 0
          %615 = vmatmul.mubr.bf16.gmra.mrb[0].mxu0 %v495
          %v616 = vpop.f32.mrb[0].mxu0
          %v617 = vadd.f32 %v428, %v616
          %v618 = vpop.f32.mrb[0].mxu0
          %v619 = vpop.f32.mrb[0].mxu0
          %v620 = vadd.f32 %v428, %v619
          %v621 = vpop.f32.mrb[0].mxu0
          %622 = vmatprep.mubr.bf16.mxu0 0
          %623 = vmatmul.mubr.bf16.gmra.mrb[0].mxu0 %v496
          %v624 = vpop.f32.mrb[0].mxu0
          %v625 = vadd.f32 %v428, %v624
          %v626 = vpop.f32.mrb[0].mxu0
          %v627 = vpop.f32.mrb[0].mxu0
          %v628 = vadd.f32 %v428, %v627
          %v629 = vpop.f32.mrb[0].mxu0
          %630 = vmatprep.mubr.bf16.mxu0 0
          %631 = vmatmul.mubr.bf16.gmra.mrb[0].mxu0 %v497
          %v632 = vpop.f32.mrb[0].mxu0
          %v633 = vadd.f32 %v428, %v632
          %v634 = vpop.f32.mrb[0].mxu0
          %v635 = vpop.f32.mrb[0].mxu0
          %v636 = vadd.f32 %v428, %v635
          %v637 = vpop.f32.mrb[0].mxu0
          %638 = vmatprep.mubr.bf16.mxu0 0
          %639 = vmatmul.mubr.bf16.gmra.mrb[0].mxu0 %v498
          %v640 = vpop.f32.mrb[0].mxu0
          %v641 = vadd.f32 %v428, %v640
          %v642 = vpop.f32.mrb[0].mxu0
          %v643 = vpop.f32.mrb[0].mxu0
          %v644 = vadd.f32 %v428, %v643
          %v645 = vpop.f32.mrb[0].mxu0
          %646 = vmatprep.mubr.bf16.mxu0 0
          %647 = vmatmul.mubr.bf16.gmra.mrb[0].mxu0 %v499
          %v648 = vpop.f32.mrb[0].mxu0
          %v649 = vadd.f32 %v428, %v648
          %v650 = vpop.f32.mrb[0].mxu0
          %v651 = vpop.f32.mrb[0].mxu0
          %v652 = vadd.f32 %v428, %v651
          %v653 = vpop.f32.mrb[0].mxu0
          %654 = vmatprep.mubr.bf16.mxu0 0
          %655 = vmatmul.mubr.bf16.gmra.mrb[0].mxu0 %v500
          %v656 = vpop.f32.mrb[0].mxu0
          %v657 = vadd.f32 %v428, %v656
          %v658 = vpop.f32.mrb[0].mxu0
          %v659 = vpop.f32.mrb[0].mxu0
          %v660 = vadd.f32 %v428, %v659
          %v661 = vpop.f32.mrb[0].mxu0
          %662 = vmatprep.mubr.bf16.mxu0 0
          %663 = vmatmul.mubr.bf16.gmra.mrb[0].mxu0 %v501
          %v664 = vpop.f32.mrb[0].mxu0
          %v665 = vadd.f32 %v428, %v664
          %v666 = vpop.f32.mrb[0].mxu0
          %v667 = vpop.f32.mrb[0].mxu0
          %v668 = vadd.f32 %v428, %v667
          %v669 = vpop.f32.mrb[0].mxu0
          %670 = vmatprep.mubr.bf16.mxu0 0
          %671 = vmatmul.mubr.bf16.gmra.mrb[0].mxu0 %v502
          %v672 = vpop.f32.mrb[0].mxu0
          %v673 = vadd.f32 %v428, %v672
          %v674 = vpop.f32.mrb[0].mxu0
          %v675 = vpop.f32.mrb[0].mxu0
          %v676 = vadd.f32 %v428, %v675
          %v677 = vpop.f32.mrb[0].mxu0
          %678 = vmatprep.mubr.bf16.mxu0 0
          %679 = vmatmul.mubr.bf16.gmra.mrb[0].mxu0 %v503
          %v680 = vpop.f32.mrb[0].mxu0
          %v681 = vadd.f32 %v428, %v680
          %v682 = vpop.f32.mrb[0].mxu0
          %v683 = vpop.f32.mrb[0].mxu0
          %v684 = vadd.f32 %v428, %v683
          %v685 = vpop.f32.mrb[0].mxu0
          %686 = vmatprep.mubr.bf16.mxu0 0
          %687 = vmatmul.mubr.bf16.gmra.mrb[0].mxu0 %v504
          %v688 = vpop.f32.mrb[0].mxu0
          %v689 = vadd.f32 %v428, %v688
          %v690 = vpop.f32.mrb[0].mxu0
          %v691 = vpop.f32.mrb[0].mxu0
          %v692 = vadd.f32 %v428, %v691
          %v693 = vpop.f32.mrb[0].mxu0
          %694 = vmatprep.mubr.bf16.mxu0 0
          %695 = vmatmul.mubr.bf16.gmra.mrb[0].mxu0 %v505
          %v696 = vpop.f32.mrb[0].mxu0
          %v697 = vadd.f32 %v428, %v696
          %v698 = vpop.f32.mrb[0].mxu0
          %v699 = vpop.f32.mrb[0].mxu0
          %v700 = vadd.f32 %v428, %v699
          %v701 = vpop.f32.mrb[0].mxu0
          %702 = vmatprep.mubr.bf16.mxu0 0
          %703 = vmatmul.mubr.bf16.gmra.mrb[0].mxu0 %v506
          %v704 = vpop.f32.mrb[0].mxu0
          %v705 = vadd.f32 %v428, %v704
          %v706 = vpop.f32.mrb[0].mxu0
          %v707 = vpop.f32.mrb[0].mxu0
          %v708 = vadd.f32 %v428, %v707
          %v709 = vpop.f32.mrb[0].mxu0
          %710 = vmatprep.mubr.bf16.mxu0 0
          %711 = vmatmul.mubr.bf16.gmra.mrb[0].mxu0 %v507
          %v712 = vpop.f32.mrb[0].mxu0
          %v713 = vadd.f32 %v428, %v712
          %v714 = vpop.f32.mrb[0].mxu0
          %v715 = vpop.f32.mrb[0].mxu0
          %v716 = vadd.f32 %v428, %v715
          %v717 = vpop.f32.mrb[0].mxu0
          %718 = vmatprep.mubr.bf16.mxu0 0
          %719 = vmatmul.mubr.bf16.gmra.mrb[0].mxu0 %v508
          %v720 = vpop.f32.mrb[0].mxu0
          %v721 = vadd.f32 %v428, %v720
          %v722 = vpop.f32.mrb[0].mxu0
          %v723 = vpop.f32.mrb[0].mxu0
          %v724 = vadd.f32 %v428, %v723
          %v725 = vpop.f32.mrb[0].mxu0
          %726 = vmatprep.mubr.bf16.mxu0 0
          %727 = vmatmul.mubr.bf16.gmra.mrb[0].mxu0 %v509
          %v728 = vpop.f32.mrb[0].mxu0
          %v729 = vadd.f32 %v428, %v728
          %v730 = vpop.f32.mrb[0].mxu0
          %v731 = vpop.f32.mrb[0].mxu0
          %v732 = vadd.f32 %v428, %v731
          %v733 = vpop.f32.mrb[0].mxu0
          %734 = vdwg.mxu0
          %v735 = vmax.f32 %v609, 0.0
          %v736 = vmax.f32 %v612, 0.0
          %v737 = vmax.f32 %v617, 0.0
          %v738 = vmax.f32 %v620, 0.0
          %v739 = vmax.f32 %v625, 0.0
          %v740 = vmax.f32 %v628, 0.0
          %v741 = vmax.f32 %v633, 0.0
          %v742 = vmax.f32 %v636, 0.0
          %v743 = vmax.f32 %v641, 0.0
          %v744 = vmax.f32 %v644, 0.0
          %v745 = vmax.f32 %v649, 0.0
          %v746 = vmax.f32 %v652, 0.0
          %v747 = vmax.f32 %v657, 0.0
          %v748 = vmax.f32 %v660, 0.0
          %v749 = vmax.f32 %v665, 0.0
          %v750 = vmax.f32 %v668, 0.0
          %v751 = vmax.f32 %v673, 0.0
          %v752 = vmax.f32 %v676, 0.0
          %v753 = vmax.f32 %v681, 0.0
          %v754 = vmax.f32 %v684, 0.0
          %v755 = vmax.f32 %v689, 0.0
          %v756 = vmax.f32 %v692, 0.0
          %v757 = vmax.f32 %v697, 0.0
          %v758 = vmax.f32 %v700, 0.0
          %v759 = vmax.f32 %v705, 0.0
          %v760 = vmax.f32 %v708, 0.0
          %v761 = vmax.f32 %v713, 0.0
          %v762 = vmax.f32 %v716, 0.0
          %v763 = vmax.f32 %v721, 0.0
          %v764 = vmax.f32 %v724, 0.0
          %v765 = vmax.f32 %v729, 0.0
          %v766 = vmax.f32 %v732, 0.0
          %v767 = vpack.c.bf16 %v736, %v735
          %v768 = vpack.c.bf16 %v738, %v737
          %v769 = vpack.c.bf16 %v740, %v739
          %v770 = vpack.c.bf16 %v742, %v741
          %v771 = vpack.c.bf16 %v744, %v743
          %v772 = vpack.c.bf16 %v746, %v745
          %v773 = vpack.c.bf16 %v748, %v747
          %v774 = vpack.c.bf16 %v750, %v749
          %v775 = vpack.c.bf16 %v752, %v751
          %v776 = vpack.c.bf16 %v754, %v753
          %v777 = vpack.c.bf16 %v756, %v755
          %v778 = vpack.c.bf16 %v758, %v757
          %v779 = vpack.c.bf16 %v760, %v759
          %v780 = vpack.c.bf16 %v762, %v761
          %v781 = vpack.c.bf16 %v764, %v763
          %v782 = vpack.c.bf16 %v766, %v765
          %783 = vst [vmem:[#allocation2] sm:$0xff] %v767
          %784 = vst [vmem:[#allocation2 + $0x8] sm:$0xff] %v768
          %785 = vst [vmem:[#allocation2 + $0x10] sm:$0xff] %v769
          %786 = vst [vmem:[#allocation2 + $0x18] sm:$0xff] %v770
          %787 = vst [vmem:[#allocation2 + $0x20] sm:$0xff] %v771
          %788 = vst [vmem:[#allocation2 + $0x28] sm:$0xff] %v772
          %789 = vst [vmem:[#allocation2 + $0x30] sm:$0xff] %v773
          %790 = vst [vmem:[#allocation2 + $0x38] sm:$0xff] %v774
          %791 = vst [vmem:[#allocation2 + $0x40] sm:$0xff] %v775
          %792 = vst [vmem:[#allocation2 + $0x48] sm:$0xff] %v776
          %793 = vst [vmem:[#allocation2 + $0x50] sm:$0xff] %v777
          %794 = vst [vmem:[#allocation2 + $0x58] sm:$0xff] %v778
          %795 = vst [vmem:[#allocation2 + $0x60] sm:$0xff] %v779
          %796 = vst [vmem:[#allocation2 + $0x68] sm:$0xff] %v780
          %797 = vst [vmem:[#allocation2 + $0x70] sm:$0xff] %v781
          %798 = vst [vmem:[#allocation2 + $0x78] sm:$0xff] %v782
          %vm799 = vcmask 7168
          %800 = vst.msk [vmem:[#allocation3] sm:$0xff] %vm799, -inf
          %801 = vst.msk [vmem:[#allocation3 + $0x8] sm:$0xff] %vm799, -inf
          %802 = vst.msk [vmem:[#allocation3 + $0x10] sm:$0xff] %vm799, -inf
          %803 = vst.msk [vmem:[#allocation3 + $0x18] sm:$0xff] %vm799, -inf
          %804 = vst.msk [vmem:[#allocation3 + $0x20] sm:$0xff] %vm799, -inf
          %805 = vst.msk [vmem:[#allocation3 + $0x28] sm:$0xff] %vm799, -inf
          %806 = vst.msk [vmem:[#allocation3 + $0x30] sm:$0xff] %vm799, -inf
          %807 = vst.msk [vmem:[#allocation3 + $0x38] sm:$0xff] %vm799, -inf
          %808 = vst.msk [vmem:[#allocation3 + $0x40] sm:$0xff] %vm799, -inf
          %809 = vst.msk [vmem:[#allocation3 + $0x48] sm:$0xff] %vm799, -inf
          %810 = vst.msk [vmem:[#allocation3 + $0x50] sm:$0xff] %vm799, -inf
          %811 = vst.msk [vmem:[#allocation3 + $0x58] sm:$0xff] %vm799, -inf
          %812 = vst.msk [vmem:[#allocation3 + $0x60] sm:$0xff] %vm799, -inf
          %813 = vst.msk [vmem:[#allocation3 + $0x68] sm:$0xff] %vm799, -inf
          %814 = vst.msk [vmem:[#allocation3 + $0x70] sm:$0xff] %vm799, -inf
          %815 = vst.msk [vmem:[#allocation3 + $0x78] sm:$0xff] %vm799, -inf
          %816 = vst.msk [vmem:[#allocation3 + $0x80] sm:$0xff] %vm799, -inf
          %817 = vst.msk [vmem:[#allocation3 + $0x88] sm:$0xff] %vm799, -inf
          %818 = vst.msk [vmem:[#allocation3 + $0x90] sm:$0xff] %vm799, -inf
          %819 = vst.msk [vmem:[#allocation3 + $0x98] sm:$0xff] %vm799, -inf
          %820 = vst.msk [vmem:[#allocation3 + $0xa0] sm:$0xff] %vm799, -inf
          %821 = vst.msk [vmem:[#allocation3 + $0xa8] sm:$0xff] %vm799, -inf
          %822 = vst.msk [vmem:[#allocation3 + $0xb0] sm:$0xff] %vm799, -inf
          %823 = vst.msk [vmem:[#allocation3 + $0xb8] sm:$0xff] %vm799, -inf
          %824 = vst.msk [vmem:[#allocation3 + $0xc0] sm:$0xff] %vm799, -inf
          %825 = vst.msk [vmem:[#allocation3 + $0xc8] sm:$0xff] %vm799, -inf
          %826 = vst.msk [vmem:[#allocation3 + $0xd0] sm:$0xff] %vm799, -inf
          %827 = vst.msk [vmem:[#allocation3 + $0xd8] sm:$0xff] %vm799, -inf
          %828 = vst.msk [vmem:[#allocation3 + $0xe0] sm:$0xff] %vm799, -inf
          %829 = vst.msk [vmem:[#allocation3 + $0xe8] sm:$0xff] %vm799, -inf
          %830 = vst.msk [vmem:[#allocation3 + $0xf0] sm:$0xff] %vm799, -inf
          %831 = vst.msk [vmem:[#allocation3 + $0xf8] sm:$0xff] %vm799, -inf
          %832 = vst.msk [vmem:[#allocation4] sm:$0xff] %vm799, 0.0
          %833 = vst.msk [vmem:[#allocation4 + $0x8] sm:$0xff] %vm799, 0.0
          %834 = vst.msk [vmem:[#allocation4 + $0x10] sm:$0xff] %vm799, 0.0
          %835 = vst.msk [vmem:[#allocation4 + $0x18] sm:$0xff] %vm799, 0.0
          %836 = vst.msk [vmem:[#allocation4 + $0x20] sm:$0xff] %vm799, 0.0
          %837 = vst.msk [vmem:[#allocation4 + $0x28] sm:$0xff] %vm799, 0.0
          %838 = vst.msk [vmem:[#allocation4 + $0x30] sm:$0xff] %vm799, 0.0
          %839 = vst.msk [vmem:[#allocation4 + $0x38] sm:$0xff] %vm799, 0.0
          %840 = vst.msk [vmem:[#allocation4 + $0x40] sm:$0xff] %vm799, 0.0
          %841 = vst.msk [vmem:[#allocation4 + $0x48] sm:$0xff] %vm799, 0.0
          %842 = vst.msk [vmem:[#allocation4 + $0x50] sm:$0xff] %vm799, 0.0
          %843 = vst.msk [vmem:[#allocation4 + $0x58] sm:$0xff] %vm799, 0.0
          %844 = vst.msk [vmem:[#allocation4 + $0x60] sm:$0xff] %vm799, 0.0
          %845 = vst.msk [vmem:[#allocation4 + $0x68] sm:$0xff] %vm799, 0.0
          %846 = vst.msk [vmem:[#allocation4 + $0x70] sm:$0xff] %vm799, 0.0
          %847 = vst.msk [vmem:[#allocation4 + $0x78] sm:$0xff] %vm799, 0.0
          %848 = vst.msk [vmem:[#allocation4 + $0x80] sm:$0xff] %vm799, 0.0
          %849 = vst.msk [vmem:[#allocation4 + $0x88] sm:$0xff] %vm799, 0.0
          %850 = vst.msk [vmem:[#allocation4 + $0x90] sm:$0xff] %vm799, 0.0
          %851 = vst.msk [vmem:[#allocation4 + $0x98] sm:$0xff] %vm799, 0.0
          %852 = vst.msk [vmem:[#allocation4 + $0xa0] sm:$0xff] %vm799, 0.0
          %853 = vst.msk [vmem:[#allocation4 + $0xa8] sm:$0xff] %vm799, 0.0
          %854 = vst.msk [vmem:[#allocation4 + $0xb0] sm:$0xff] %vm799, 0.0
          %855 = vst.msk [vmem:[#allocation4 + $0xb8] sm:$0xff] %vm799, 0.0
          %856 = vst.msk [vmem:[#allocation4 + $0xc0] sm:$0xff] %vm799, 0.0
          %857 = vst.msk [vmem:[#allocation4 + $0xc8] sm:$0xff] %vm799, 0.0
          %858 = vst.msk [vmem:[#allocation4 + $0xd0] sm:$0xff] %vm799, 0.0
          %859 = vst.msk [vmem:[#allocation4 + $0xd8] sm:$0xff] %vm799, 0.0
          %860 = vst.msk [vmem:[#allocation4 + $0xe0] sm:$0xff] %vm799, 0.0
          %861 = vst.msk [vmem:[#allocation4 + $0xe8] sm:$0xff] %vm799, 0.0
          %862 = vst.msk [vmem:[#allocation4 + $0xf0] sm:$0xff] %vm799, 0.0
          %863 = vst.msk [vmem:[#allocation4 + $0xf8] sm:$0xff] %vm799, 0.0
          %864 = vst.msk [vmem:[#allocation5] sm:$0xff] %vm799, 0.0
          %865 = vst.msk [vmem:[#allocation5 + $0x8] sm:$0xff] %vm799, 0.0
          %866 = vst.msk [vmem:[#allocation5 + $0x10] sm:$0xff] %vm799, 0.0
          %867 = vst.msk [vmem:[#allocation5 + $0x18] sm:$0xff] %vm799, 0.0
          %868 = vst.msk [vmem:[#allocation5 + $0x20] sm:$0xff] %vm799, 0.0
          %869 = vst.msk [vmem:[#allocation5 + $0x28] sm:$0xff] %vm799, 0.0
          %870 = vst.msk [vmem:[#allocation5 + $0x30] sm:$0xff] %vm799, 0.0
          %871 = vst.msk [vmem:[#allocation5 + $0x38] sm:$0xff] %vm799, 0.0
          %872 = vst.msk [vmem:[#allocation5 + $0x40] sm:$0xff] %vm799, 0.0
          %873 = vst.msk [vmem:[#allocation5 + $0x48] sm:$0xff] %vm799, 0.0
          %874 = vst.msk [vmem:[#allocation5 + $0x50] sm:$0xff] %vm799, 0.0
          %875 = vst.msk [vmem:[#allocation5 + $0x58] sm:$0xff] %vm799, 0.0
          %876 = vst.msk [vmem:[#allocation5 + $0x60] sm:$0xff] %vm799, 0.0
          %877 = vst.msk [vmem:[#allocation5 + $0x68] sm:$0xff] %vm799, 0.0
          %878 = vst.msk [vmem:[#allocation5 + $0x70] sm:$0xff] %vm799, 0.0
          %879 = vst.msk [vmem:[#allocation5 + $0x78] sm:$0xff] %vm799, 0.0
          %880 = vst.msk [vmem:[#allocation5 + $0x80] sm:$0xff] %vm799, 0.0
          %881 = vst.msk [vmem:[#allocation5 + $0x88] sm:$0xff] %vm799, 0.0
          %882 = vst.msk [vmem:[#allocation5 + $0x90] sm:$0xff] %vm799, 0.0
          %883 = vst.msk [vmem:[#allocation5 + $0x98] sm:$0xff] %vm799, 0.0
          %884 = vst.msk [vmem:[#allocation5 + $0xa0] sm:$0xff] %vm799, 0.0
          %885 = vst.msk [vmem:[#allocation5 + $0xa8] sm:$0xff] %vm799, 0.0
          %886 = vst.msk [vmem:[#allocation5 + $0xb0] sm:$0xff] %vm799, 0.0
          %887 = vst.msk [vmem:[#allocation5 + $0xb8] sm:$0xff] %vm799, 0.0
          %888 = vst.msk [vmem:[#allocation5 + $0xc0] sm:$0xff] %vm799, 0.0
          %889 = vst.msk [vmem:[#allocation5 + $0xc8] sm:$0xff] %vm799, 0.0
          %890 = vst.msk [vmem:[#allocation5 + $0xd0] sm:$0xff] %vm799, 0.0
          %891 = vst.msk [vmem:[#allocation5 + $0xd8] sm:$0xff] %vm799, 0.0
          %892 = vst.msk [vmem:[#allocation5 + $0xe0] sm:$0xff] %vm799, 0.0
          %893 = vst.msk [vmem:[#allocation5 + $0xe8] sm:$0xff] %vm799, 0.0
          %894 = vst.msk [vmem:[#allocation5 + $0xf0] sm:$0xff] %vm799, 0.0
          %895 = vst.msk [vmem:[#allocation5 + $0xf8] sm:$0xff] %vm799, 0.0
        $region52: #{tpu_custom_call.1} parent=43 // pred_fallthru
          _
        %v896 = vld [vmem:[#allocation2] sm:$0xff]
        %v897 = vld [vmem:[#allocation2 + $0x8] sm:$0xff]
        %v898 = vld [vmem:[#allocation2 + $0x10] sm:$0xff]
        %v899 = vld [vmem:[#allocation2 + $0x18] sm:$0xff]
        %v900 = vld [vmem:[#allocation2 + $0x20] sm:$0xff]
        %v901 = vld [vmem:[#allocation2 + $0x28] sm:$0xff]
        %v902 = vld [vmem:[#allocation2 + $0x30] sm:$0xff]
        %v903 = vld [vmem:[#allocation2 + $0x38] sm:$0xff]
        %v904 = vld [vmem:[#allocation2 + $0x40] sm:$0xff]
        %v905 = vld [vmem:[#allocation2 + $0x48] sm:$0xff]
        %v906 = vld [vmem:[#allocation2 + $0x50] sm:$0xff]
        %v907 = vld [vmem:[#allocation2 + $0x58] sm:$0xff]
        %v908 = vld [vmem:[#allocation2 + $0x60] sm:$0xff]
        %v909 = vld [vmem:[#allocation2 + $0x68] sm:$0xff]
        %v910 = vld [vmem:[#allocation2 + $0x70] sm:$0xff]
        %v911 = vld [vmem:[#allocation2 + $0x78] sm:$0xff]
        %v912 = vld [vmem:[%s312] sm:$0xff]
        %v913 = vld [vmem:[%s312 + $0x8] sm:$0xff]
        %v914 = vld [vmem:[%s312 + $0x10] sm:$0xff]
        %v915 = vld [vmem:[%s312 + $0x18] sm:$0xff]
        %v916 = vld [vmem:[%s312 + $0x20] sm:$0xff]
        %v917 = vld [vmem:[%s312 + $0x28] sm:$0xff]
        %v918 = vld [vmem:[%s312 + $0x30] sm:$0xff]
        %v919 = vld [vmem:[%s312 + $0x38] sm:$0xff]
        %v920 = vld [vmem:[%s312 + $0x40] sm:$0xff]
        %v921 = vld [vmem:[%s312 + $0x48] sm:$0xff]
        %v922 = vld [vmem:[%s312 + $0x50] sm:$0xff]
        %v923 = vld [vmem:[%s312 + $0x58] sm:$0xff]
        %v924 = vld [vmem:[%s312 + $0x60] sm:$0xff]
        %v925 = vld [vmem:[%s312 + $0x68] sm:$0xff]
        %v926 = vld [vmem:[%s312 + $0x70] sm:$0xff]
        %v927 = vld [vmem:[%s312 + $0x78] sm:$0xff]
        %v928 = vld [vmem:[%s312 + $0x80] sm:$0xff]
        %v929 = vld [vmem:[%s312 + $0x88] sm:$0xff]
        %v930 = vld [vmem:[%s312 + $0x90] sm:$0xff]
        %v931 = vld [vmem:[%s312 + $0x98] sm:$0xff]
        %v932 = vld [vmem:[%s312 + $0xa0] sm:$0xff]
        %v933 = vld [vmem:[%s312 + $0xa8] sm:$0xff]
        %v934 = vld [vmem:[%s312 + $0xb0] sm:$0xff]
        %v935 = vld [vmem:[%s312 + $0xb8] sm:$0xff]
        %v936 = vld [vmem:[%s312 + $0xc0] sm:$0xff]
        %v937 = vld [vmem:[%s312 + $0xc8] sm:$0xff]
        %v938 = vld [vmem:[%s312 + $0xd0] sm:$0xff]
        %v939 = vld [vmem:[%s312 + $0xd8] sm:$0xff]
        %v940 = vld [vmem:[%s312 + $0xe0] sm:$0xff]
        %v941 = vld [vmem:[%s312 + $0xe8] sm:$0xff]
        %v942 = vld [vmem:[%s312 + $0xf0] sm:$0xff]
        %v943 = vld [vmem:[%s312 + $0xf8] sm:$0xff]
        %v944 = vld [vmem:[%s362] sm:$0xf]
        %v946 = vlaneseq
        %v947 = vshrl.u32 %v946, 7
        %v948 = vsub.s32 0, %v947
        %v949 = vrot.slane %v944, %v948
        %v950 = vlaneseq
        %v951 = vshrl.u32 %v950, 7
        %v952 = vsub.s32 1, %v951
        %v953 = vrot.slane %v944, %v952
        %v954 = vlaneseq
        %v955 = vshrl.u32 %v954, 7
        %v956 = vsub.s32 2, %v955
        %v957 = vrot.slane %v944, %v956
        %v958 = vlaneseq
        %v959 = vshrl.u32 %v958, 7
        %v960 = vsub.s32 3, %v959
        %v961 = vrot.slane %v944, %v960
        %v998 = vunpack.c.l.b16 %v912
        %v999 = vunpack.c.h.b16 %v912
        %v1000 = vunpack.c.l.b16 %v913
        %v1001 = vunpack.c.h.b16 %v913
        %v1002 = vunpack.c.l.b16 %v914
        %v1003 = vunpack.c.h.b16 %v914
        %v1004 = vunpack.c.l.b16 %v915
        %v1005 = vunpack.c.h.b16 %v915
        %v1006 = vunpack.c.l.b16 %v916
        %v1007 = vunpack.c.h.b16 %v916
        %v1008 = vunpack.c.l.b16 %v917
        %v1009 = vunpack.c.h.b16 %v917
        %v1010 = vunpack.c.l.b16 %v918
        %v1011 = vunpack.c.h.b16 %v918
        %v1012 = vunpack.c.l.b16 %v919
        %v1013 = vunpack.c.h.b16 %v919
        %v1014 = vunpack.c.l.b16 %v920
        %v1015 = vunpack.c.h.b16 %v920
        %v1016 = vunpack.c.l.b16 %v921
        %v1017 = vunpack.c.h.b16 %v921
        %v1018 = vunpack.c.l.b16 %v922
        %v1019 = vunpack.c.h.b16 %v922
        %v1020 = vunpack.c.l.b16 %v923
        %v1021 = vunpack.c.h.b16 %v923
        %v1022 = vunpack.c.l.b16 %v924
        %v1023 = vunpack.c.h.b16 %v924
        %v1024 = vunpack.c.l.b16 %v925
        %v1025 = vunpack.c.h.b16 %v925
        %v1026 = vunpack.c.l.b16 %v926
        %v1027 = vunpack.c.h.b16 %v926
        %v1028 = vunpack.c.l.b16 %v927
        %v1029 = vunpack.c.h.b16 %v927
        %v1030 = vunpack.c.l.b16 %v928
        %v1031 = vunpack.c.h.b16 %v928
        %v1032 = vunpack.c.l.b16 %v929
        %v1033 = vunpack.c.h.b16 %v929
        %v1034 = vunpack.c.l.b16 %v930
        %v1035 = vunpack.c.h.b16 %v930
        %v1036 = vunpack.c.l.b16 %v931
        %v1037 = vunpack.c.h.b16 %v931
        %v1038 = vunpack.c.l.b16 %v932
        %v1039 = vunpack.c.h.b16 %v932
        %v1040 = vunpack.c.l.b16 %v933
        %v1041 = vunpack.c.h.b16 %v933
        %v1042 = vunpack.c.l.b16 %v934
        %v1043 = vunpack.c.h.b16 %v934
        %v1044 = vunpack.c.l.b16 %v935
        %v1045 = vunpack.c.h.b16 %v935
        %v1046 = vunpack.c.l.b16 %v936
        %v1047 = vunpack.c.h.b16 %v936
        %v1048 = vunpack.c.l.b16 %v937
        %v1049 = vunpack.c.h.b16 %v937
        %v1050 = vunpack.c.l.b16 %v938
        %v1051 = vunpack.c.h.b16 %v938
        %v1052 = vunpack.c.l.b16 %v939
        %v1053 = vunpack.c.h.b16 %v939
        %v1054 = vunpack.c.l.b16 %v940
        %v1055 = vunpack.c.h.b16 %v940
        %v1056 = vunpack.c.l.b16 %v941
        %v1057 = vunpack.c.h.b16 %v941
        %v1058 = vunpack.c.l.b16 %v942
        %v1059 = vunpack.c.h.b16 %v942
        %v1060 = vunpack.c.l.b16 %v943
        %v1061 = vunpack.c.h.b16 %v943
        %v1062 = vpack.c.b16 %v1002, %v998
        %v1063 = vpack.c.b16 %v1003, %v999
        %v1064 = vpack.c.b16 %v1004, %v1000
        %v1065 = vpack.c.b16 %v1005, %v1001
        %v1066 = vpack.c.b16 %v1010, %v1006
        %v1067 = vpack.c.b16 %v1011, %v1007
        %v1068 = vpack.c.b16 %v1012, %v1008
        %v1069 = vpack.c.b16 %v1013, %v1009
        %v1070 = vpack.c.b16 %v1018, %v1014
        %v1071 = vpack.c.b16 %v1019, %v1015
        %v1072 = vpack.c.b16 %v1020, %v1016
        %v1073 = vpack.c.b16 %v1021, %v1017
        %v1074 = vpack.c.b16 %v1026, %v1022
        %v1075 = vpack.c.b16 %v1027, %v1023
        %v1076 = vpack.c.b16 %v1028, %v1024
        %v1077 = vpack.c.b16 %v1029, %v1025
        %v1078 = vpack.c.b16 %v1034, %v1030
        %v1079 = vpack.c.b16 %v1035, %v1031
        %v1080 = vpack.c.b16 %v1036, %v1032
        %v1081 = vpack.c.b16 %v1037, %v1033
        %v1082 = vpack.c.b16 %v1042, %v1038
        %v1083 = vpack.c.b16 %v1043, %v1039
        %v1084 = vpack.c.b16 %v1044, %v1040
        %v1085 = vpack.c.b16 %v1045, %v1041
        %v1086 = vpack.c.b16 %v1050, %v1046
        %v1087 = vpack.c.b16 %v1051, %v1047
        %v1088 = vpack.c.b16 %v1052, %v1048
        %v1089 = vpack.c.b16 %v1053, %v1049
        %v1090 = vpack.c.b16 %v1058, %v1054
        %v1091 = vpack.c.b16 %v1059, %v1055
        %v1092 = vpack.c.b16 %v1060, %v1056
        %v1093 = vpack.c.b16 %v1061, %v1057
        %1126 = vmatprep.subr.bf16.mxu0 %v1063
        %1127 = vmatpush1.bf16.msra.mxu0 %v1062
        %1128 = vmatprep.subr.bf16.mxu0 %v1067
        %1129 = vmatpush1.bf16.msra.mxu0 %v1066
        %1130 = vmatprep.subr.bf16.mxu0 %v1071
        %1131 = vmatpush1.bf16.msra.mxu0 %v1070
        %1132 = vmatprep.subr.bf16.mxu0 %v1075
        %1133 = vmatpush1.bf16.msra.mxu0 %v1074
        %1134 = vmatprep.subr.bf16.mxu0 %v1079
        %1135 = vmatpush1.bf16.msra.mxu0 %v1078
        %1136 = vmatprep.subr.bf16.mxu0 %v1083
        %1137 = vmatpush1.bf16.msra.mxu0 %v1082
        %1138 = vmatprep.subr.bf16.mxu0 %v1087
        %1139 = vmatpush1.bf16.msra.mxu0 %v1086
        %1140 = vmatprep.subr.bf16.mxu0 %v1091
        %1141 = vmatpush1.bf16.msra.mxu0 %v1090
        %1142 = vmatprep.subr.bf16.mxu0 0
        %1143 = vmatpush1.bf16.msra.mxu0 0
        %1144 = vmatprep.subr.bf16.mxu0 0
        %1145 = vmatpush1.bf16.msra.mxu0 0
        %1146 = vmatprep.subr.bf16.mxu0 0
        %1147 = vmatpush1.bf16.msra.mxu0 0
        %1148 = vmatprep.subr.bf16.mxu0 0
        %1149 = vmatpush1.bf16.msra.mxu0 0
        %1150 = vmatprep.subr.bf16.mxu0 0
        %1151 = vmatpush1.bf16.msra.mxu0 0
        %1152 = vmatprep.subr.bf16.mxu0 0
        %1153 = vmatpush1.bf16.msra.mxu0 0
        %1154 = vmatprep.subr.bf16.mxu0 0
        %1155 = vmatpush1.bf16.msra.mxu0 0
        %1156 = vmatprep.subr.bf16.mxu0 0
        %1157 = vmatpush1.bf16.msra.mxu0 0
        %1158 = vmatprep.mubr.bf16.mxu0 0
        %1159 = vmatmul.mubr.bf16.gmra.mrb[0].mxu0 %v896
        %v1160 = vpop.f32.mrb[0].mxu0
        %v1161 = vadd.f32 %v949, %v1160
        %v1162 = vpop.f32.mrb[0].mxu0
        %v1163 = vadd.f32 %v953, %v1162
        %v1164 = vpop.f32.mrb[0].mxu0
        %v1165 = vadd.f32 %v949, %v1164
        %v1166 = vpop.f32.mrb[0].mxu0
        %v1167 = vadd.f32 %v953, %v1166
        %1168 = vmatprep.mubr.bf16.mxu0 0
        %1169 = vmatmul.mubr.bf16.gmra.mrb[0].mxu0 %v897
        %v1170 = vpop.f32.mrb[0].mxu0
        %v1171 = vadd.f32 %v949, %v1170
        %v1172 = vpop.f32.mrb[0].mxu0
        %v1173 = vadd.f32 %v953, %v1172
        %v1174 = vpop.f32.mrb[0].mxu0
        %v1175 = vadd.f32 %v949, %v1174
        %v1176 = vpop.f32.mrb[0].mxu0
        %v1177 = vadd.f32 %v953, %v1176
        %1178 = vmatprep.mubr.bf16.mxu0 0
        %1179 = vmatmul.mubr.bf16.gmra.mrb[0].mxu0 %v898
        %v1180 = vpop.f32.mrb[0].mxu0
        %v1181 = vadd.f32 %v949, %v1180
        %v1182 = vpop.f32.mrb[0].mxu0
        %v1183 = vadd.f32 %v953, %v1182
        %v1184 = vpop.f32.mrb[0].mxu0
        %v1185 = vadd.f32 %v949, %v1184
        %v1186 = vpop.f32.mrb[0].mxu0
        %v1187 = vadd.f32 %v953, %v1186
        %1188 = vmatprep.mubr.bf16.mxu0 0
        %1189 = vmatmul.mubr.bf16.gmra.mrb[0].mxu0 %v899
        %v1190 = vpop.f32.mrb[0].mxu0
        %v1191 = vadd.f32 %v949, %v1190
        %v1192 = vpop.f32.mrb[0].mxu0
        %v1193 = vadd.f32 %v953, %v1192
        %v1194 = vpop.f32.mrb[0].mxu0
        %v1195 = vadd.f32 %v949, %v1194
        %v1196 = vpop.f32.mrb[0].mxu0
        %v1197 = vadd.f32 %v953, %v1196
        %1198 = vmatprep.mubr.bf16.mxu0 0
        %1199 = vmatmul.mubr.bf16.gmra.mrb[0].mxu0 %v900
        %v1200 = vpop.f32.mrb[0].mxu0
        %v1201 = vadd.f32 %v949, %v1200
        %v1202 = vpop.f32.mrb[0].mxu0
        %v1203 = vadd.f32 %v953, %v1202
        %v1204 = vpop.f32.mrb[0].mxu0
        %v1205 = vadd.f32 %v949, %v1204
        %v1206 = vpop.f32.mrb[0].mxu0
        %v1207 = vadd.f32 %v953, %v1206
        %1208 = vmatprep.mubr.bf16.mxu0 0
        %1209 = vmatmul.mubr.bf16.gmra.mrb[0].mxu0 %v901
        %v1210 = vpop.f32.mrb[0].mxu0
        %v1211 = vadd.f32 %v949, %v1210
        %v1212 = vpop.f32.mrb[0].mxu0
        %v1213 = vadd.f32 %v953, %v1212
        %v1214 = vpop.f32.mrb[0].mxu0
        %v1215 = vadd.f32 %v949, %v1214
        %v1216 = vpop.f32.mrb[0].mxu0
        %v1217 = vadd.f32 %v953, %v1216
        %1218 = vmatprep.mubr.bf16.mxu0 0
        %1219 = vmatmul.mubr.bf16.gmra.mrb[0].mxu0 %v902
        %v1220 = vpop.f32.mrb[0].mxu0
        %v1221 = vadd.f32 %v949, %v1220
        %v1222 = vpop.f32.mrb[0].mxu0
        %v1223 = vadd.f32 %v953, %v1222
        %v1224 = vpop.f32.mrb[0].mxu0
        %v1225 = vadd.f32 %v949, %v1224
        %v1226 = vpop.f32.mrb[0].mxu0
        %v1227 = vadd.f32 %v953, %v1226
        %1228 = vmatprep.mubr.bf16.mxu0 0
        %1229 = vmatmul.mubr.bf16.gmra.mrb[0].mxu0 %v903
        %v1230 = vpop.f32.mrb[0].mxu0
        %v1231 = vadd.f32 %v949, %v1230
        %v1232 = vpop.f32.mrb[0].mxu0
        %v1233 = vadd.f32 %v953, %v1232
        %v1234 = vpop.f32.mrb[0].mxu0
        %v1235 = vadd.f32 %v949, %v1234
        %v1236 = vpop.f32.mrb[0].mxu0
        %v1237 = vadd.f32 %v953, %v1236
        %1238 = vmatprep.mubr.bf16.mxu0 0
        %1239 = vmatmul.mubr.bf16.gmra.mrb[0].mxu0 %v904
        %v1240 = vpop.f32.mrb[0].mxu0
        %v1241 = vadd.f32 %v949, %v1240
        %v1242 = vpop.f32.mrb[0].mxu0
        %v1243 = vadd.f32 %v953, %v1242
        %v1244 = vpop.f32.mrb[0].mxu0
        %v1245 = vadd.f32 %v949, %v1244
        %v1246 = vpop.f32.mrb[0].mxu0
        %v1247 = vadd.f32 %v953, %v1246
        %1248 = vmatprep.mubr.bf16.mxu0 0
        %1249 = vmatmul.mubr.bf16.gmra.mrb[0].mxu0 %v905
        %v1250 = vpop.f32.mrb[0].mxu0
        %v1251 = vadd.f32 %v949, %v1250
        %v1252 = vpop.f32.mrb[0].mxu0
        %v1253 = vadd.f32 %v953, %v1252
        %v1254 = vpop.f32.mrb[0].mxu0
        %v1255 = vadd.f32 %v949, %v1254
        %v1256 = vpop.f32.mrb[0].mxu0
        %v1257 = vadd.f32 %v953, %v1256
        %1258 = vmatprep.mubr.bf16.mxu0 0
        %1259 = vmatmul.mubr.bf16.gmra.mrb[0].mxu0 %v906
        %v1260 = vpop.f32.mrb[0].mxu0
        %v1261 = vadd.f32 %v949, %v1260
        %v1262 = vpop.f32.mrb[0].mxu0
        %v1263 = vadd.f32 %v953, %v1262
        %v1264 = vpop.f32.mrb[0].mxu0
        %v1265 = vadd.f32 %v949, %v1264
        %v1266 = vpop.f32.mrb[0].mxu0
        %v1267 = vadd.f32 %v953, %v1266
        %1268 = vmatprep.mubr.bf16.mxu0 0
        %1269 = vmatmul.mubr.bf16.gmra.mrb[0].mxu0 %v907
        %v1270 = vpop.f32.mrb[0].mxu0
        %v1271 = vadd.f32 %v949, %v1270
        %v1272 = vpop.f32.mrb[0].mxu0
        %v1273 = vadd.f32 %v953, %v1272
        %v1274 = vpop.f32.mrb[0].mxu0
        %v1275 = vadd.f32 %v949, %v1274
        %v1276 = vpop.f32.mrb[0].mxu0
        %v1277 = vadd.f32 %v953, %v1276
        %1278 = vmatprep.mubr.bf16.mxu0 0
        %1279 = vmatmul.mubr.bf16.gmra.mrb[0].mxu0 %v908
        %v1280 = vpop.f32.mrb[0].mxu0
        %v1281 = vadd.f32 %v949, %v1280
        %v1282 = vpop.f32.mrb[0].mxu0
        %v1283 = vadd.f32 %v953, %v1282
        %v1284 = vpop.f32.mrb[0].mxu0
        %v1285 = vadd.f32 %v949, %v1284
        %v1286 = vpop.f32.mrb[0].mxu0
        %v1287 = vadd.f32 %v953, %v1286
        %1288 = vmatprep.mubr.bf16.mxu0 0
        %1289 = vmatmul.mubr.bf16.gmra.mrb[0].mxu0 %v909
        %v1290 = vpop.f32.mrb[0].mxu0
        %v1291 = vadd.f32 %v949, %v1290
        %v1292 = vpop.f32.mrb[0].mxu0
        %v1293 = vadd.f32 %v953, %v1292
        %v1294 = vpop.f32.mrb[0].mxu0
        %v1295 = vadd.f32 %v949, %v1294
        %v1296 = vpop.f32.mrb[0].mxu0
        %v1297 = vadd.f32 %v953, %v1296
        %1298 = vmatprep.mubr.bf16.mxu0 0
        %1299 = vmatmul.mubr.bf16.gmra.mrb[0].mxu0 %v910
        %v1300 = vpop.f32.mrb[0].mxu0
        %v1301 = vadd.f32 %v949, %v1300
        %v1302 = vpop.f32.mrb[0].mxu0
        %v1303 = vadd.f32 %v953, %v1302
        %v1304 = vpop.f32.mrb[0].mxu0
        %v1305 = vadd.f32 %v949, %v1304
        %v1306 = vpop.f32.mrb[0].mxu0
        %v1307 = vadd.f32 %v953, %v1306
        %1308 = vmatprep.mubr.bf16.mxu0 0
        %1309 = vmatmul.mubr.bf16.gmra.mrb[0].mxu0 %v911
        %v1310 = vpop.f32.mrb[0].mxu0
        %v1311 = vadd.f32 %v949, %v1310
        %v1312 = vpop.f32.mrb[0].mxu0
        %v1313 = vadd.f32 %v953, %v1312
        %v1314 = vpop.f32.mrb[0].mxu0
        %v1315 = vadd.f32 %v949, %v1314
        %v1316 = vpop.f32.mrb[0].mxu0
        %v1317 = vadd.f32 %v953, %v1316
        %1318 = vdwg.mxu0
        %1319 = vmatprep.subr.bf16.mxu0 %v1065
        %1320 = vmatpush1.bf16.msra.mxu0 %v1064
        %1321 = vmatprep.subr.bf16.mxu0 %v1069
        %1322 = vmatpush1.bf16.msra.mxu0 %v1068
        %1323 = vmatprep.subr.bf16.mxu0 %v1073
        %1324 = vmatpush1.bf16.msra.mxu0 %v1072
        %1325 = vmatprep.subr.bf16.mxu0 %v1077
        %1326 = vmatpush1.bf16.msra.mxu0 %v1076
        %1327 = vmatprep.subr.bf16.mxu0 %v1081
        %1328 = vmatpush1.bf16.msra.mxu0 %v1080
        %1329 = vmatprep.subr.bf16.mxu0 %v1085
        %1330 = vmatpush1.bf16.msra.mxu0 %v1084
        %1331 = vmatprep.subr.bf16.mxu0 %v1089
        %1332 = vmatpush1.bf16.msra.mxu0 %v1088
        %1333 = vmatprep.subr.bf16.mxu0 %v1093
        %1334 = vmatpush1.bf16.msra.mxu0 %v1092
        %1335 = vmatprep.subr.bf16.mxu0 0
        %1336 = vmatpush1.bf16.msra.mxu0 0
        %1337 = vmatprep.subr.bf16.mxu0 0
        %1338 = vmatpush1.bf16.msra.mxu0 0
        %1339 = vmatprep.subr.bf16.mxu0 0
        %1340 = vmatpush1.bf16.msra.mxu0 0
        %1341 = vmatprep.subr.bf16.mxu0 0
        %1342 = vmatpush1.bf16.msra.mxu0 0
        %1343 = vmatprep.subr.bf16.mxu0 0
        %1344 = vmatpush1.bf16.msra.mxu0 0
        %1345 = vmatprep.subr.bf16.mxu0 0
        %1346 = vmatpush1.bf16.msra.mxu0 0
        %1347 = vmatprep.subr.bf16.mxu0 0
        %1348 = vmatpush1.bf16.msra.mxu0 0
        %1349 = vmatprep.subr.bf16.mxu0 0
        %1350 = vmatpush1.bf16.msra.mxu0 0
        %1351 = vmatprep.mubr.bf16.mxu0 0
        %1352 = vmatmul.mubr.bf16.gmra.mrb[0].mxu0 %v896
        %v1353 = vpop.f32.mrb[0].mxu0
        %v1354 = vadd.f32 %v957, %v1353
        %v1355 = vpop.f32.mrb[0].mxu0
        %v1356 = vadd.f32 %v961, %v1355
        %v1357 = vpop.f32.mrb[0].mxu0
        %v1358 = vadd.f32 %v957, %v1357
        %v1359 = vpop.f32.mrb[0].mxu0
        %v1360 = vadd.f32 %v961, %v1359
        %1361 = vmatprep.mubr.bf16.mxu0 0
        %1362 = vmatmul.mubr.bf16.gmra.mrb[0].mxu0 %v897
        %v1363 = vpop.f32.mrb[0].mxu0
        %v1364 = vadd.f32 %v957, %v1363
        %v1365 = vpop.f32.mrb[0].mxu0
        %v1366 = vadd.f32 %v961, %v1365
        %v1367 = vpop.f32.mrb[0].mxu0
        %v1368 = vadd.f32 %v957, %v1367
        %v1369 = vpop.f32.mrb[0].mxu0
        %v1370 = vadd.f32 %v961, %v1369
        %1371 = vmatprep.mubr.bf16.mxu0 0
        %1372 = vmatmul.mubr.bf16.gmra.mrb[0].mxu0 %v898
        %v1373 = vpop.f32.mrb[0].mxu0
        %v1374 = vadd.f32 %v957, %v1373
        %v1375 = vpop.f32.mrb[0].mxu0
        %v1376 = vadd.f32 %v961, %v1375
        %v1377 = vpop.f32.mrb[0].mxu0
        %v1378 = vadd.f32 %v957, %v1377
        %v1379 = vpop.f32.mrb[0].mxu0
        %v1380 = vadd.f32 %v961, %v1379
        %1381 = vmatprep.mubr.bf16.mxu0 0
        %1382 = vmatmul.mubr.bf16.gmra.mrb[0].mxu0 %v899
        %v1383 = vpop.f32.mrb[0].mxu0
        %v1384 = vadd.f32 %v957, %v1383
        %v1385 = vpop.f32.mrb[0].mxu0
        %v1386 = vadd.f32 %v961, %v1385
        %v1387 = vpop.f32.mrb[0].mxu0
        %v1388 = vadd.f32 %v957, %v1387
        %v1389 = vpop.f32.mrb[0].mxu0
        %v1390 = vadd.f32 %v961, %v1389
        %1391 = vmatprep.mubr.bf16.mxu0 0
        %1392 = vmatmul.mubr.bf16.gmra.mrb[0].mxu0 %v900
        %v1393 = vpop.f32.mrb[0].mxu0
        %v1394 = vadd.f32 %v957, %v1393
        %v1395 = vpop.f32.mrb[0].mxu0
        %v1396 = vadd.f32 %v961, %v1395
        %v1397 = vpop.f32.mrb[0].mxu0
        %v1398 = vadd.f32 %v957, %v1397
        %v1399 = vpop.f32.mrb[0].mxu0
        %v1400 = vadd.f32 %v961, %v1399
        %1401 = vmatprep.mubr.bf16.mxu0 0
        %1402 = vmatmul.mubr.bf16.gmra.mrb[0].mxu0 %v901
        %v1403 = vpop.f32.mrb[0].mxu0
        %v1404 = vadd.f32 %v957, %v1403
        %v1405 = vpop.f32.mrb[0].mxu0
        %v1406 = vadd.f32 %v961, %v1405
        %v1407 = vpop.f32.mrb[0].mxu0
        %v1408 = vadd.f32 %v957, %v1407
        %v1409 = vpop.f32.mrb[0].mxu0
        %v1410 = vadd.f32 %v961, %v1409
        %1411 = vmatprep.mubr.bf16.mxu0 0
        %1412 = vmatmul.mubr.bf16.gmra.mrb[0].mxu0 %v902
        %v1413 = vpop.f32.mrb[0].mxu0
        %v1414 = vadd.f32 %v957, %v1413
        %v1415 = vpop.f32.mrb[0].mxu0
        %v1416 = vadd.f32 %v961, %v1415
        %v1417 = vpop.f32.mrb[0].mxu0
        %v1418 = vadd.f32 %v957, %v1417
        %v1419 = vpop.f32.mrb[0].mxu0
        %v1420 = vadd.f32 %v961, %v1419
        %1421 = vmatprep.mubr.bf16.mxu0 0
        %1422 = vmatmul.mubr.bf16.gmra.mrb[0].mxu0 %v903
        %v1423 = vpop.f32.mrb[0].mxu0
        %v1424 = vadd.f32 %v957, %v1423
        %v1425 = vpop.f32.mrb[0].mxu0
        %v1426 = vadd.f32 %v961, %v1425
        %v1427 = vpop.f32.mrb[0].mxu0
        %v1428 = vadd.f32 %v957, %v1427
        %v1429 = vpop.f32.mrb[0].mxu0
        %v1430 = vadd.f32 %v961, %v1429
        %1431 = vmatprep.mubr.bf16.mxu0 0
        %1432 = vmatmul.mubr.bf16.gmra.mrb[0].mxu0 %v904
        %v1433 = vpop.f32.mrb[0].mxu0
        %v1434 = vadd.f32 %v957, %v1433
        %v1435 = vpop.f32.mrb[0].mxu0
        %v1436 = vadd.f32 %v961, %v1435
        %v1437 = vpop.f32.mrb[0].mxu0
        %v1438 = vadd.f32 %v957, %v1437
        %v1439 = vpop.f32.mrb[0].mxu0
        %v1440 = vadd.f32 %v961, %v1439
        %1441 = vmatprep.mubr.bf16.mxu0 0
        %1442 = vmatmul.mubr.bf16.gmra.mrb[0].mxu0 %v905
        %v1443 = vpop.f32.mrb[0].mxu0
        %v1444 = vadd.f32 %v957, %v1443
        %v1445 = vpop.f32.mrb[0].mxu0
        %v1446 = vadd.f32 %v961, %v1445
        %v1447 = vpop.f32.mrb[0].mxu0
        %v1448 = vadd.f32 %v957, %v1447
        %v1449 = vpop.f32.mrb[0].mxu0
        %v1450 = vadd.f32 %v961, %v1449
        %1451 = vmatprep.mubr.bf16.mxu0 0
        %1452 = vmatmul.mubr.bf16.gmra.mrb[0].mxu0 %v906
        %v1453 = vpop.f32.mrb[0].mxu0
        %v1454 = vadd.f32 %v957, %v1453
        %v1455 = vpop.f32.mrb[0].mxu0
        %v1456 = vadd.f32 %v961, %v1455
        %v1457 = vpop.f32.mrb[0].mxu0
        %v1458 = vadd.f32 %v957, %v1457
        %v1459 = vpop.f32.mrb[0].mxu0
        %v1460 = vadd.f32 %v961, %v1459
        %1461 = vmatprep.mubr.bf16.mxu0 0
        %1462 = vmatmul.mubr.bf16.gmra.mrb[0].mxu0 %v907
        %v1463 = vpop.f32.mrb[0].mxu0
        %v1464 = vadd.f32 %v957, %v1463
        %v1465 = vpop.f32.mrb[0].mxu0
        %v1466 = vadd.f32 %v961, %v1465
        %v1467 = vpop.f32.mrb[0].mxu0
        %v1468 = vadd.f32 %v957, %v1467
        %v1469 = vpop.f32.mrb[0].mxu0
        %v1470 = vadd.f32 %v961, %v1469
        %1471 = vmatprep.mubr.bf16.mxu0 0
        %1472 = vmatmul.mubr.bf16.gmra.mrb[0].mxu0 %v908
        %v1473 = vpop.f32.mrb[0].mxu0
        %v1474 = vadd.f32 %v957, %v1473
        %v1475 = vpop.f32.mrb[0].mxu0
        %v1476 = vadd.f32 %v961, %v1475
        %v1477 = vpop.f32.mrb[0].mxu0
        %v1478 = vadd.f32 %v957, %v1477
        %v1479 = vpop.f32.mrb[0].mxu0
        %v1480 = vadd.f32 %v961, %v1479
        %1481 = vmatprep.mubr.bf16.mxu0 0
        %1482 = vmatmul.mubr.bf16.gmra.mrb[0].mxu0 %v909
        %v1483 = vpop.f32.mrb[0].mxu0
        %v1484 = vadd.f32 %v957, %v1483
        %v1485 = vpop.f32.mrb[0].mxu0
        %v1486 = vadd.f32 %v961, %v1485
        %v1487 = vpop.f32.mrb[0].mxu0
        %v1488 = vadd.f32 %v957, %v1487
        %v1489 = vpop.f32.mrb[0].mxu0
        %v1490 = vadd.f32 %v961, %v1489
        %1491 = vmatprep.mubr.bf16.mxu0 0
        %1492 = vmatmul.mubr.bf16.gmra.mrb[0].mxu0 %v910
        %v1493 = vpop.f32.mrb[0].mxu0
        %v1494 = vadd.f32 %v957, %v1493
        %v1495 = vpop.f32.mrb[0].mxu0
        %v1496 = vadd.f32 %v961, %v1495
        %v1497 = vpop.f32.mrb[0].mxu0
        %v1498 = vadd.f32 %v957, %v1497
        %v1499 = vpop.f32.mrb[0].mxu0
        %v1500 = vadd.f32 %v961, %v1499
        %1501 = vmatprep.mubr.bf16.mxu0 0
        %1502 = vmatmul.mubr.bf16.gmra.mrb[0].mxu0 %v911
        %v1503 = vpop.f32.mrb[0].mxu0
        %v1504 = vadd.f32 %v957, %v1503
        %v1505 = vpop.f32.mrb[0].mxu0
        %v1506 = vadd.f32 %v961, %v1505
        %v1507 = vpop.f32.mrb[0].mxu0
        %v1508 = vadd.f32 %v957, %v1507
        %v1509 = vpop.f32.mrb[0].mxu0
        %v1510 = vadd.f32 %v961, %v1509
        %1511 = vdwg.mxu0
        %v1512 = vld [vmem:[%s368] sm:$0xff]
        %v1513 = vld [vmem:[%s368 + $0x8] sm:$0xff]
        %v1514 = vld [vmem:[%s368 + $0x10] sm:$0xff]
        %v1515 = vld [vmem:[%s368 + $0x18] sm:$0xff]
        %v1516 = vld [vmem:[%s368 + $0x20] sm:$0xff]
        %v1517 = vld [vmem:[%s368 + $0x28] sm:$0xff]
        %v1518 = vld [vmem:[%s368 + $0x30] sm:$0xff]
        %v1519 = vld [vmem:[%s368 + $0x38] sm:$0xff]
        %v1520 = vld [vmem:[%s368 + $0x40] sm:$0xff]
        %v1521 = vld [vmem:[%s368 + $0x48] sm:$0xff]
        %v1522 = vld [vmem:[%s368 + $0x50] sm:$0xff]
        %v1523 = vld [vmem:[%s368 + $0x58] sm:$0xff]
        %v1524 = vld [vmem:[%s368 + $0x60] sm:$0xff]
        %v1525 = vld [vmem:[%s368 + $0x68] sm:$0xff]
        %v1526 = vld [vmem:[%s368 + $0x70] sm:$0xff]
        %v1527 = vld [vmem:[%s368 + $0x78] sm:$0xff]
        %v1528 = vld [vmem:[%s368 + $0x80] sm:$0xff]
        %v1529 = vld [vmem:[%s368 + $0x88] sm:$0xff]
        %v1530 = vld [vmem:[%s368 + $0x90] sm:$0xff]
        %v1531 = vld [vmem:[%s368 + $0x98] sm:$0xff]
        %v1532 = vld [vmem:[%s368 + $0xa0] sm:$0xff]
        %v1533 = vld [vmem:[%s368 + $0xa8] sm:$0xff]
        %v1534 = vld [vmem:[%s368 + $0xb0] sm:$0xff]
        %v1535 = vld [vmem:[%s368 + $0xb8] sm:$0xff]
        %v1536 = vld [vmem:[%s368 + $0xc0] sm:$0xff]
        %v1537 = vld [vmem:[%s368 + $0xc8] sm:$0xff]
        %v1538 = vld [vmem:[%s368 + $0xd0] sm:$0xff]
        %v1539 = vld [vmem:[%s368 + $0xd8] sm:$0xff]
        %v1540 = vld [vmem:[%s368 + $0xe0] sm:$0xff]
        %v1541 = vld [vmem:[%s368 + $0xe8] sm:$0xff]
        %v1542 = vld [vmem:[%s368 + $0xf0] sm:$0xff]
        %v1543 = vld [vmem:[%s368 + $0xf8] sm:$0xff]
        %s1544 = smul.u32 %s29, 512
        %v1545 = vstv %s1544
        %v1546 = vsub.s32 %v1512, %v1545
        %v1547 = vsub.s32 %v1513, %v1545
        %v1548 = vsub.s32 %v1514, %v1545
        %v1549 = vsub.s32 %v1515, %v1545
        %v1550 = vsub.s32 %v1516, %v1545
        %v1551 = vsub.s32 %v1517, %v1545
        %v1552 = vsub.s32 %v1518, %v1545
        %v1553 = vsub.s32 %v1519, %v1545
        %v1554 = vsub.s32 %v1520, %v1545
        %v1555 = vsub.s32 %v1521, %v1545
        %v1556 = vsub.s32 %v1522, %v1545
        %v1557 = vsub.s32 %v1523, %v1545
        %v1558 = vsub.s32 %v1524, %v1545
        %v1559 = vsub.s32 %v1525, %v1545
        %v1560 = vsub.s32 %v1526, %v1545
        %v1561 = vsub.s32 %v1527, %v1545
        %v1562 = vsub.s32 %v1528, %v1545
        %v1563 = vsub.s32 %v1529, %v1545
        %v1564 = vsub.s32 %v1530, %v1545
        %v1565 = vsub.s32 %v1531, %v1545
        %v1566 = vsub.s32 %v1532, %v1545
        %v1567 = vsub.s32 %v1533, %v1545
        %v1568 = vsub.s32 %v1534, %v1545
        %v1569 = vsub.s32 %v1535, %v1545
        %v1570 = vsub.s32 %v1536, %v1545
        %v1571 = vsub.s32 %v1537, %v1545
        %v1572 = vsub.s32 %v1538, %v1545
        %v1573 = vsub.s32 %v1539, %v1545
        %v1574 = vsub.s32 %v1540, %v1545
        %v1575 = vsub.s32 %v1541, %v1545
        %v1576 = vsub.s32 %v1542, %v1545
        %v1577 = vsub.s32 %v1543, %v1545
        %v1578 = vlaneseq
        %v1579 = vand.u32 %v1578, 127
        %v1580 = vadd.s32 %v1579, 128
        %v1581 = vadd.s32 %v1579, 256
        %v1582 = vadd.s32 %v1579, 384
        %1583 = vset.pattern.permute.xlu0 0
        %1584 = vperm.xlu0 %1583, %v1546
        %v1585 = vpop.permute.xlu0 %1584
        %1586 = vset.pattern.permute.xlu0 0
        %1587 = vperm.xlu0 %1586, %v1547
        %v1588 = vpop.permute.xlu0 %1587
        %1589 = vset.pattern.permute.xlu0 0
        %1590 = vperm.xlu0 %1589, %v1548
        %v1591 = vpop.permute.xlu0 %1590
        %1592 = vset.pattern.permute.xlu0 0
        %1593 = vperm.xlu0 %1592, %v1549
        %v1594 = vpop.permute.xlu0 %1593
        %1595 = vset.pattern.permute.xlu0 0
        %1596 = vperm.xlu0 %1595, %v1550
        %v1597 = vpop.permute.xlu0 %1596
        %1598 = vset.pattern.permute.xlu0 0
        %1599 = vperm.xlu0 %1598, %v1551
        %v1600 = vpop.permute.xlu0 %1599
        %1601 = vset.pattern.permute.xlu0 0
        %1602 = vperm.xlu0 %1601, %v1552
        %v1603 = vpop.permute.xlu0 %1602
        %1604 = vset.pattern.permute.xlu0 0
        %1605 = vperm.xlu0 %1604, %v1553
        %v1606 = vpop.permute.xlu0 %1605
        %1607 = vset.pattern.permute.xlu0 0
        %1608 = vperm.xlu0 %1607, %v1554
        %v1609 = vpop.permute.xlu0 %1608
        %1610 = vset.pattern.permute.xlu0 0
        %1611 = vperm.xlu0 %1610, %v1555
        %v1612 = vpop.permute.xlu0 %1611
        %1613 = vset.pattern.permute.xlu0 0
        %1614 = vperm.xlu0 %1613, %v1556
        %v1615 = vpop.permute.xlu0 %1614
        %1616 = vset.pattern.permute.xlu0 0
        %1617 = vperm.xlu0 %1616, %v1557
        %v1618 = vpop.permute.xlu0 %1617
        %1619 = vset.pattern.permute.xlu0 0
        %1620 = vperm.xlu0 %1619, %v1558
        %v1621 = vpop.permute.xlu0 %1620
        %1622 = vset.pattern.permute.xlu0 0
        %1623 = vperm.xlu0 %1622, %v1559
        %v1624 = vpop.permute.xlu0 %1623
        %1625 = vset.pattern.permute.xlu0 0
        %1626 = vperm.xlu0 %1625, %v1560
        %v1627 = vpop.permute.xlu0 %1626
        %1628 = vset.pattern.permute.xlu0 0
        %1629 = vperm.xlu0 %1628, %v1561
        %v1630 = vpop.permute.xlu0 %1629
        %1631 = vset.pattern.permute.xlu0 0
        %1632 = vperm.xlu0 %1631, %v1562
        %v1633 = vpop.permute.xlu0 %1632
        %1634 = vset.pattern.permute.xlu0 0
        %1635 = vperm.xlu0 %1634, %v1563
        %v1636 = vpop.permute.xlu0 %1635
        %1637 = vset.pattern.permute.xlu0 0
        %1638 = vperm.xlu0 %1637, %v1564
        %v1639 = vpop.permute.xlu0 %1638
        %1640 = vset.pattern.permute.xlu0 0
        %1641 = vperm.xlu0 %1640, %v1565
        %v1642 = vpop.permute.xlu0 %1641
        %1643 = vset.pattern.permute.xlu0 0
        %1644 = vperm.xlu0 %1643, %v1566
        %v1645 = vpop.permute.xlu0 %1644
        %1646 = vset.pattern.permute.xlu0 0
        %1647 = vperm.xlu0 %1646, %v1567
        %v1648 = vpop.permute.xlu0 %1647
        %1649 = vset.pattern.permute.xlu0 0
        %1650 = vperm.xlu0 %1649, %v1568
        %v1651 = vpop.permute.xlu0 %1650
        %1652 = vset.pattern.permute.xlu0 0
        %1653 = vperm.xlu0 %1652, %v1569
        %v1654 = vpop.permute.xlu0 %1653
        %1655 = vset.pattern.permute.xlu0 0
        %1656 = vperm.xlu0 %1655, %v1570
        %v1657 = vpop.permute.xlu0 %1656
        %1658 = vset.pattern.permute.xlu0 0
        %1659 = vperm.xlu0 %1658, %v1571
        %v1660 = vpop.permute.xlu0 %1659
        %1661 = vset.pattern.permute.xlu0 0
        %1662 = vperm.xlu0 %1661, %v1572
        %v1663 = vpop.permute.xlu0 %1662
        %1664 = vset.pattern.permute.xlu0 0
        %1665 = vperm.xlu0 %1664, %v1573
        %v1666 = vpop.permute.xlu0 %1665
        %1667 = vset.pattern.permute.xlu0 0
        %1668 = vperm.xlu0 %1667, %v1574
        %v1669 = vpop.permute.xlu0 %1668
        %1670 = vset.pattern.permute.xlu0 0
        %1671 = vperm.xlu0 %1670, %v1575
        %v1672 = vpop.permute.xlu0 %1671
        %1673 = vset.pattern.permute.xlu0 0
        %1674 = vperm.xlu0 %1673, %v1576
        %v1675 = vpop.permute.xlu0 %1674
        %1676 = vset.pattern.permute.xlu0 0
        %1677 = vperm.xlu0 %1676, %v1577
        %v1678 = vpop.permute.xlu0 %1677
        %vm1679 = vcmp.eq.s32.totalorder %v1579, %v1585
        %vm1680 = vcmp.eq.s32.totalorder %v1580, %v1585
        %vm1681 = vcmp.eq.s32.totalorder %v1581, %v1585
        %vm1682 = vcmp.eq.s32.totalorder %v1582, %v1585
        %vm1683 = vcmp.eq.s32.totalorder %v1579, %v1588
        %vm1684 = vcmp.eq.s32.totalorder %v1580, %v1588
        %vm1685 = vcmp.eq.s32.totalorder %v1581, %v1588
        %vm1686 = vcmp.eq.s32.totalorder %v1582, %v1588
        %vm1687 = vcmp.eq.s32.totalorder %v1579, %v1591
        %vm1688 = vcmp.eq.s32.totalorder %v1580, %v1591
        %vm1689 = vcmp.eq.s32.totalorder %v1581, %v1591
        %vm1690 = vcmp.eq.s32.totalorder %v1582, %v1591
        %vm1691 = vcmp.eq.s32.totalorder %v1579, %v1594
        %vm1692 = vcmp.eq.s32.totalorder %v1580, %v1594
        %vm1693 = vcmp.eq.s32.totalorder %v1581, %v1594
        %vm1694 = vcmp.eq.s32.totalorder %v1582, %v1594
        %vm1695 = vcmp.eq.s32.totalorder %v1579, %v1597
        %vm1696 = vcmp.eq.s32.totalorder %v1580, %v1597
        %vm1697 = vcmp.eq.s32.totalorder %v1581, %v1597
        %vm1698 = vcmp.eq.s32.totalorder %v1582, %v1597
        %vm1699 = vcmp.eq.s32.totalorder %v1579, %v1600
        %vm1700 = vcmp.eq.s32.totalorder %v1580, %v1600
        %vm1701 = vcmp.eq.s32.totalorder %v1581, %v1600
        %vm1702 = vcmp.eq.s32.totalorder %v1582, %v1600
        %vm1703 = vcmp.eq.s32.totalorder %v1579, %v1603
        %vm1704 = vcmp.eq.s32.totalorder %v1580, %v1603
        %vm1705 = vcmp.eq.s32.totalorder %v1581, %v1603
        %vm1706 = vcmp.eq.s32.totalorder %v1582, %v1603
        %vm1707 = vcmp.eq.s32.totalorder %v1579, %v1606
        %vm1708 = vcmp.eq.s32.totalorder %v1580, %v1606
        %vm1709 = vcmp.eq.s32.totalorder %v1581, %v1606
        %vm1710 = vcmp.eq.s32.totalorder %v1582, %v1606
        %vm1711 = vcmp.eq.s32.totalorder %v1579, %v1609
        %vm1712 = vcmp.eq.s32.totalorder %v1580, %v1609
        %vm1713 = vcmp.eq.s32.totalorder %v1581, %v1609
        %vm1714 = vcmp.eq.s32.totalorder %v1582, %v1609
        %vm1715 = vcmp.eq.s32.totalorder %v1579, %v1612
        %vm1716 = vcmp.eq.s32.totalorder %v1580, %v1612
        %vm1717 = vcmp.eq.s32.totalorder %v1581, %v1612
        %vm1718 = vcmp.eq.s32.totalorder %v1582, %v1612
        %vm1719 = vcmp.eq.s32.totalorder %v1579, %v1615
        %vm1720 = vcmp.eq.s32.totalorder %v1580, %v1615
        %vm1721 = vcmp.eq.s32.totalorder %v1581, %v1615
        %vm1722 = vcmp.eq.s32.totalorder %v1582, %v1615
        %vm1723 = vcmp.eq.s32.totalorder %v1579, %v1618
        %vm1724 = vcmp.eq.s32.totalorder %v1580, %v1618
        %vm1725 = vcmp.eq.s32.totalorder %v1581, %v1618
        %vm1726 = vcmp.eq.s32.totalorder %v1582, %v1618
        %vm1727 = vcmp.eq.s32.totalorder %v1579, %v1621
        %vm1728 = vcmp.eq.s32.totalorder %v1580, %v1621
        %vm1729 = vcmp.eq.s32.totalorder %v1581, %v1621
        %vm1730 = vcmp.eq.s32.totalorder %v1582, %v1621
        %vm1731 = vcmp.eq.s32.totalorder %v1579, %v1624
        %vm1732 = vcmp.eq.s32.totalorder %v1580, %v1624
        %vm1733 = vcmp.eq.s32.totalorder %v1581, %v1624
        %vm1734 = vcmp.eq.s32.totalorder %v1582, %v1624
        %vm1735 = vcmp.eq.s32.totalorder %v1579, %v1627
        %vm1736 = vcmp.eq.s32.totalorder %v1580, %v1627
        %vm1737 = vcmp.eq.s32.totalorder %v1581, %v1627
        %vm1738 = vcmp.eq.s32.totalorder %v1582, %v1627
        %vm1739 = vcmp.eq.s32.totalorder %v1579, %v1630
        %vm1740 = vcmp.eq.s32.totalorder %v1580, %v1630
        %vm1741 = vcmp.eq.s32.totalorder %v1581, %v1630
        %vm1742 = vcmp.eq.s32.totalorder %v1582, %v1630
        %vm1743 = vcmp.eq.s32.totalorder %v1579, %v1633
        %vm1744 = vcmp.eq.s32.totalorder %v1580, %v1633
        %vm1745 = vcmp.eq.s32.totalorder %v1581, %v1633
        %vm1746 = vcmp.eq.s32.totalorder %v1582, %v1633
        %vm1747 = vcmp.eq.s32.totalorder %v1579, %v1636
        %vm1748 = vcmp.eq.s32.totalorder %v1580, %v1636
        %vm1749 = vcmp.eq.s32.totalorder %v1581, %v1636
        %vm1750 = vcmp.eq.s32.totalorder %v1582, %v1636
        %vm1751 = vcmp.eq.s32.totalorder %v1579, %v1639
        %vm1752 = vcmp.eq.s32.totalorder %v1580, %v1639
        %vm1753 = vcmp.eq.s32.totalorder %v1581, %v1639
        %vm1754 = vcmp.eq.s32.totalorder %v1582, %v1639
        %vm1755 = vcmp.eq.s32.totalorder %v1579, %v1642
        %vm1756 = vcmp.eq.s32.totalorder %v1580, %v1642
        %vm1757 = vcmp.eq.s32.totalorder %v1581, %v1642
        %vm1758 = vcmp.eq.s32.totalorder %v1582, %v1642
        %vm1759 = vcmp.eq.s32.totalorder %v1579, %v1645
        %vm1760 = vcmp.eq.s32.totalorder %v1580, %v1645
        %vm1761 = vcmp.eq.s32.totalorder %v1581, %v1645
        %vm1762 = vcmp.eq.s32.totalorder %v1582, %v1645
        %vm1763 = vcmp.eq.s32.totalorder %v1579, %v1648
        %vm1764 = vcmp.eq.s32.totalorder %v1580, %v1648
        %vm1765 = vcmp.eq.s32.totalorder %v1581, %v1648
        %vm1766 = vcmp.eq.s32.totalorder %v1582, %v1648
        %vm1767 = vcmp.eq.s32.totalorder %v1579, %v1651
        %vm1768 = vcmp.eq.s32.totalorder %v1580, %v1651
        %vm1769 = vcmp.eq.s32.totalorder %v1581, %v1651
        %vm1770 = vcmp.eq.s32.totalorder %v1582, %v1651
        %vm1771 = vcmp.eq.s32.totalorder %v1579, %v1654
        %vm1772 = vcmp.eq.s32.totalorder %v1580, %v1654
        %vm1773 = vcmp.eq.s32.totalorder %v1581, %v1654
        %vm1774 = vcmp.eq.s32.totalorder %v1582, %v1654
        %vm1775 = vcmp.eq.s32.totalorder %v1579, %v1657
        %vm1776 = vcmp.eq.s32.totalorder %v1580, %v1657
        %vm1777 = vcmp.eq.s32.totalorder %v1581, %v1657
        %vm1778 = vcmp.eq.s32.totalorder %v1582, %v1657
        %vm1779 = vcmp.eq.s32.totalorder %v1579, %v1660
        %vm1780 = vcmp.eq.s32.totalorder %v1580, %v1660
        %vm1781 = vcmp.eq.s32.totalorder %v1581, %v1660
        %vm1782 = vcmp.eq.s32.totalorder %v1582, %v1660
        %vm1783 = vcmp.eq.s32.totalorder %v1579, %v1663
        %vm1784 = vcmp.eq.s32.totalorder %v1580, %v1663
        %vm1785 = vcmp.eq.s32.totalorder %v1581, %v1663
        %vm1786 = vcmp.eq.s32.totalorder %v1582, %v1663
        %vm1787 = vcmp.eq.s32.totalorder %v1579, %v1666
        %vm1788 = vcmp.eq.s32.totalorder %v1580, %v1666
        %vm1789 = vcmp.eq.s32.totalorder %v1581, %v1666
        %vm1790 = vcmp.eq.s32.totalorder %v1582, %v1666
        %vm1791 = vcmp.eq.s32.totalorder %v1579, %v1669
        %vm1792 = vcmp.eq.s32.totalorder %v1580, %v1669
        %vm1793 = vcmp.eq.s32.totalorder %v1581, %v1669
        %vm1794 = vcmp.eq.s32.totalorder %v1582, %v1669
        %vm1795 = vcmp.eq.s32.totalorder %v1579, %v1672
        %vm1796 = vcmp.eq.s32.totalorder %v1580, %v1672
        %vm1797 = vcmp.eq.s32.totalorder %v1581, %v1672
        %vm1798 = vcmp.eq.s32.totalorder %v1582, %v1672
        %vm1799 = vcmp.eq.s32.totalorder %v1579, %v1675
        %vm1800 = vcmp.eq.s32.totalorder %v1580, %v1675
        %vm1801 = vcmp.eq.s32.totalorder %v1581, %v1675
        %vm1802 = vcmp.eq.s32.totalorder %v1582, %v1675
        %vm1803 = vcmp.eq.s32.totalorder %v1579, %v1678
        %vm1804 = vcmp.eq.s32.totalorder %v1580, %v1678
        %vm1805 = vcmp.eq.s32.totalorder %v1581, %v1678
        %vm1806 = vcmp.eq.s32.totalorder %v1582, %v1678
        %v1807 = vsel %vm1679, 1, 0
        %v1808 = vsel %vm1680, 1, 0
        %v1809 = vsel %vm1681, 1, 0
        %v1810 = vsel %vm1682, 1, 0
        %v1811 = vsel %vm1683, 1, 0
        %v1812 = vsel %vm1684, 1, 0
        %v1813 = vsel %vm1685, 1, 0
        %v1814 = vsel %vm1686, 1, 0
        %v1815 = vsel %vm1687, 1, 0
        %v1816 = vsel %vm1688, 1, 0
        %v1817 = vsel %vm1689, 1, 0
        %v1818 = vsel %vm1690, 1, 0
        %v1819 = vsel %vm1691, 1, 0
        %v1820 = vsel %vm1692, 1, 0
        %v1821 = vsel %vm1693, 1, 0
        %v1822 = vsel %vm1694, 1, 0
        %v1823 = vsel %vm1695, 1, 0
        %v1824 = vsel %vm1696, 1, 0
        %v1825 = vsel %vm1697, 1, 0
        %v1826 = vsel %vm1698, 1, 0
        %v1827 = vsel %vm1699, 1, 0
        %v1828 = vsel %vm1700, 1, 0
        %v1829 = vsel %vm1701, 1, 0
        %v1830 = vsel %vm1702, 1, 0
        %v1831 = vsel %vm1703, 1, 0
        %v1832 = vsel %vm1704, 1, 0
        %v1833 = vsel %vm1705, 1, 0
        %v1834 = vsel %vm1706, 1, 0
        %v1835 = vsel %vm1707, 1, 0
        %v1836 = vsel %vm1708, 1, 0
        %v1837 = vsel %vm1709, 1, 0
        %v1838 = vsel %vm1710, 1, 0
        %v1839 = vsel %vm1711, 1, 0
        %v1840 = vsel %vm1712, 1, 0
        %v1841 = vsel %vm1713, 1, 0
        %v1842 = vsel %vm1714, 1, 0
        %v1843 = vsel %vm1715, 1, 0
        %v1844 = vsel %vm1716, 1, 0
        %v1845 = vsel %vm1717, 1, 0
        %v1846 = vsel %vm1718, 1, 0
        %v1847 = vsel %vm1719, 1, 0
        %v1848 = vsel %vm1720, 1, 0
        %v1849 = vsel %vm1721, 1, 0
        %v1850 = vsel %vm1722, 1, 0
        %v1851 = vsel %vm1723, 1, 0
        %v1852 = vsel %vm1724, 1, 0
        %v1853 = vsel %vm1725, 1, 0
        %v1854 = vsel %vm1726, 1, 0
        %v1855 = vsel %vm1727, 1, 0
        %v1856 = vsel %vm1728, 1, 0
        %v1857 = vsel %vm1729, 1, 0
        %v1858 = vsel %vm1730, 1, 0
        %v1859 = vsel %vm1731, 1, 0
        %v1860 = vsel %vm1732, 1, 0
        %v1861 = vsel %vm1733, 1, 0
        %v1862 = vsel %vm1734, 1, 0
        %v1863 = vsel %vm1735, 1, 0
        %v1864 = vsel %vm1736, 1, 0
        %v1865 = vsel %vm1737, 1, 0
        %v1866 = vsel %vm1738, 1, 0
        %v1867 = vsel %vm1739, 1, 0
        %v1868 = vsel %vm1740, 1, 0
        %v1869 = vsel %vm1741, 1, 0
        %v1870 = vsel %vm1742, 1, 0
        %v1871 = vsel %vm1743, 1, 0
        %v1872 = vsel %vm1744, 1, 0
        %v1873 = vsel %vm1745, 1, 0
        %v1874 = vsel %vm1746, 1, 0
        %v1875 = vsel %vm1747, 1, 0
        %v1876 = vsel %vm1748, 1, 0
        %v1877 = vsel %vm1749, 1, 0
        %v1878 = vsel %vm1750, 1, 0
        %v1879 = vsel %vm1751, 1, 0
        %v1880 = vsel %vm1752, 1, 0
        %v1881 = vsel %vm1753, 1, 0
        %v1882 = vsel %vm1754, 1, 0
        %v1883 = vsel %vm1755, 1, 0
        %v1884 = vsel %vm1756, 1, 0
        %v1885 = vsel %vm1757, 1, 0
        %v1886 = vsel %vm1758, 1, 0
        %v1887 = vsel %vm1759, 1, 0
        %v1888 = vsel %vm1760, 1, 0
        %v1889 = vsel %vm1761, 1, 0
        %v1890 = vsel %vm1762, 1, 0
        %v1891 = vsel %vm1763, 1, 0
        %v1892 = vsel %vm1764, 1, 0
        %v1893 = vsel %vm1765, 1, 0
        %v1894 = vsel %vm1766, 1, 0
        %v1895 = vsel %vm1767, 1, 0
        %v1896 = vsel %vm1768, 1, 0
        %v1897 = vsel %vm1769, 1, 0
        %v1898 = vsel %vm1770, 1, 0
        %v1899 = vsel %vm1771, 1, 0
        %v1900 = vsel %vm1772, 1, 0
        %v1901 = vsel %vm1773, 1, 0
        %v1902 = vsel %vm1774, 1, 0
        %v1903 = vsel %vm1775, 1, 0
        %v1904 = vsel %vm1776, 1, 0
        %v1905 = vsel %vm1777, 1, 0
        %v1906 = vsel %vm1778, 1, 0
        %v1907 = vsel %vm1779, 1, 0
        %v1908 = vsel %vm1780, 1, 0
        %v1909 = vsel %vm1781, 1, 0
        %v1910 = vsel %vm1782, 1, 0
        %v1911 = vsel %vm1783, 1, 0
        %v1912 = vsel %vm1784, 1, 0
        %v1913 = vsel %vm1785, 1, 0
        %v1914 = vsel %vm1786, 1, 0
        %v1915 = vsel %vm1787, 1, 0
        %v1916 = vsel %vm1788, 1, 0
        %v1917 = vsel %vm1789, 1, 0
        %v1918 = vsel %vm1790, 1, 0
        %v1919 = vsel %vm1791, 1, 0
        %v1920 = vsel %vm1792, 1, 0
        %v1921 = vsel %vm1793, 1, 0
        %v1922 = vsel %vm1794, 1, 0
        %v1923 = vsel %vm1795, 1, 0
        %v1924 = vsel %vm1796, 1, 0
        %v1925 = vsel %vm1797, 1, 0
        %v1926 = vsel %vm1798, 1, 0
        %v1927 = vsel %vm1799, 1, 0
        %v1928 = vsel %vm1800, 1, 0
        %v1929 = vsel %vm1801, 1, 0
        %v1930 = vsel %vm1802, 1, 0
        %v1931 = vsel %vm1803, 1, 0
        %v1932 = vsel %vm1804, 1, 0
        %v1933 = vsel %vm1805, 1, 0
        %v1934 = vsel %vm1806, 1, 0
        %v1935 = vcvt.s32.f32 %v1807
        %v1936 = vcvt.s32.f32 %v1808
        %v1937 = vcvt.s32.f32 %v1809
        %v1938 = vcvt.s32.f32 %v1810
        %v1939 = vcvt.s32.f32 %v1811
        %v1940 = vcvt.s32.f32 %v1812
        %v1941 = vcvt.s32.f32 %v1813
        %v1942 = vcvt.s32.f32 %v1814
        %v1943 = vcvt.s32.f32 %v1815
        %v1944 = vcvt.s32.f32 %v1816
        %v1945 = vcvt.s32.f32 %v1817
        %v1946 = vcvt.s32.f32 %v1818
        %v1947 = vcvt.s32.f32 %v1819
        %v1948 = vcvt.s32.f32 %v1820
        %v1949 = vcvt.s32.f32 %v1821
        %v1950 = vcvt.s32.f32 %v1822
        %v1951 = vcvt.s32.f32 %v1823
        %v1952 = vcvt.s32.f32 %v1824
        %v1953 = vcvt.s32.f32 %v1825
        %v1954 = vcvt.s32.f32 %v1826
        %v1955 = vcvt.s32.f32 %v1827
        %v1956 = vcvt.s32.f32 %v1828
        %v1957 = vcvt.s32.f32 %v1829
        %v1958 = vcvt.s32.f32 %v1830
        %v1959 = vcvt.s32.f32 %v1831
        %v1960 = vcvt.s32.f32 %v1832
        %v1961 = vcvt.s32.f32 %v1833
        %v1962 = vcvt.s32.f32 %v1834
        %v1963 = vcvt.s32.f32 %v1835
        %v1964 = vcvt.s32.f32 %v1836
        %v1965 = vcvt.s32.f32 %v1837
        %v1966 = vcvt.s32.f32 %v1838
        %v1967 = vcvt.s32.f32 %v1839
        %v1968 = vcvt.s32.f32 %v1840
        %v1969 = vcvt.s32.f32 %v1841
        %v1970 = vcvt.s32.f32 %v1842
        %v1971 = vcvt.s32.f32 %v1843
        %v1972 = vcvt.s32.f32 %v1844
        %v1973 = vcvt.s32.f32 %v1845
        %v1974 = vcvt.s32.f32 %v1846
        %v1975 = vcvt.s32.f32 %v1847
        %v1976 = vcvt.s32.f32 %v1848
        %v1977 = vcvt.s32.f32 %v1849
        %v1978 = vcvt.s32.f32 %v1850
        %v1979 = vcvt.s32.f32 %v1851
        %v1980 = vcvt.s32.f32 %v1852
        %v1981 = vcvt.s32.f32 %v1853
        %v1982 = vcvt.s32.f32 %v1854
        %v1983 = vcvt.s32.f32 %v1855
        %v1984 = vcvt.s32.f32 %v1856
        %v1985 = vcvt.s32.f32 %v1857
        %v1986 = vcvt.s32.f32 %v1858
        %v1987 = vcvt.s32.f32 %v1859
        %v1988 = vcvt.s32.f32 %v1860
        %v1989 = vcvt.s32.f32 %v1861
        %v1990 = vcvt.s32.f32 %v1862
        %v1991 = vcvt.s32.f32 %v1863
        %v1992 = vcvt.s32.f32 %v1864
        %v1993 = vcvt.s32.f32 %v1865
        %v1994 = vcvt.s32.f32 %v1866
        %v1995 = vcvt.s32.f32 %v1867
        %v1996 = vcvt.s32.f32 %v1868
        %v1997 = vcvt.s32.f32 %v1869
        %v1998 = vcvt.s32.f32 %v1870
        %v1999 = vcvt.s32.f32 %v1871
        %v2000 = vcvt.s32.f32 %v1872
        %v2001 = vcvt.s32.f32 %v1873
        %v2002 = vcvt.s32.f32 %v1874
        %v2003 = vcvt.s32.f32 %v1875
        %v2004 = vcvt.s32.f32 %v1876
        %v2005 = vcvt.s32.f32 %v1877
        %v2006 = vcvt.s32.f32 %v1878
        %v2007 = vcvt.s32.f32 %v1879
        %v2008 = vcvt.s32.f32 %v1880
        %v2009 = vcvt.s32.f32 %v1881
        %v2010 = vcvt.s32.f32 %v1882
        %v2011 = vcvt.s32.f32 %v1883
        %v2012 = vcvt.s32.f32 %v1884
        %v2013 = vcvt.s32.f32 %v1885
        %v2014 = vcvt.s32.f32 %v1886
        %v2015 = vcvt.s32.f32 %v1887
        %v2016 = vcvt.s32.f32 %v1888
        %v2017 = vcvt.s32.f32 %v1889
        %v2018 = vcvt.s32.f32 %v1890
        %v2019 = vcvt.s32.f32 %v1891
        %v2020 = vcvt.s32.f32 %v1892
        %v2021 = vcvt.s32.f32 %v1893
        %v2022 = vcvt.s32.f32 %v1894
        %v2023 = vcvt.s32.f32 %v1895
        %v2024 = vcvt.s32.f32 %v1896
        %v2025 = vcvt.s32.f32 %v1897
        %v2026 = vcvt.s32.f32 %v1898
        %v2027 = vcvt.s32.f32 %v1899
        %v2028 = vcvt.s32.f32 %v1900
        %v2029 = vcvt.s32.f32 %v1901
        %v2030 = vcvt.s32.f32 %v1902
        %v2031 = vcvt.s32.f32 %v1903
        %v2032 = vcvt.s32.f32 %v1904
        %v2033 = vcvt.s32.f32 %v1905
        %v2034 = vcvt.s32.f32 %v1906
        %v2035 = vcvt.s32.f32 %v1907
        %v2036 = vcvt.s32.f32 %v1908
        %v2037 = vcvt.s32.f32 %v1909
        %v2038 = vcvt.s32.f32 %v1910
        %v2039 = vcvt.s32.f32 %v1911
        %v2040 = vcvt.s32.f32 %v1912
        %v2041 = vcvt.s32.f32 %v1913
        %v2042 = vcvt.s32.f32 %v1914
        %v2043 = vcvt.s32.f32 %v1915
        %v2044 = vcvt.s32.f32 %v1916
        %v2045 = vcvt.s32.f32 %v1917
        %v2046 = vcvt.s32.f32 %v1918
        %v2047 = vcvt.s32.f32 %v1919
        %v2048 = vcvt.s32.f32 %v1920
        %v2049 = vcvt.s32.f32 %v1921
        %v2050 = vcvt.s32.f32 %v1922
        %v2051 = vcvt.s32.f32 %v1923
        %v2052 = vcvt.s32.f32 %v1924
        %v2053 = vcvt.s32.f32 %v1925
        %v2054 = vcvt.s32.f32 %v1926
        %v2055 = vcvt.s32.f32 %v1927
        %v2056 = vcvt.s32.f32 %v1928
        %v2057 = vcvt.s32.f32 %v1929
        %v2058 = vcvt.s32.f32 %v1930
        %v2059 = vcvt.s32.f32 %v1931
        %v2060 = vcvt.s32.f32 %v1932
        %v2061 = vcvt.s32.f32 %v1933
        %v2062 = vcvt.s32.f32 %v1934
        %v2063 = vld [vmem:[#allocation5] sm:$0xff]
        %v2064 = vld [vmem:[#allocation5 + $0x8] sm:$0xff]
        %v2065 = vld [vmem:[#allocation5 + $0x10] sm:$0xff]
        %v2066 = vld [vmem:[#allocation5 + $0x18] sm:$0xff]
        %v2067 = vld [vmem:[#allocation5 + $0x20] sm:$0xff]
        %v2068 = vld [vmem:[#allocation5 + $0x28] sm:$0xff]
        %v2069 = vld [vmem:[#allocation5 + $0x30] sm:$0xff]
        %v2070 = vld [vmem:[#allocation5 + $0x38] sm:$0xff]
        %v2071 = vld [vmem:[#allocation5 + $0x40] sm:$0xff]
        %v2072 = vld [vmem:[#allocation5 + $0x48] sm:$0xff]
        %v2073 = vld [vmem:[#allocation5 + $0x50] sm:$0xff]
        %v2074 = vld [vmem:[#allocation5 + $0x58] sm:$0xff]
        %v2075 = vld [vmem:[#allocation5 + $0x60] sm:$0xff]
        %v2076 = vld [vmem:[#allocation5 + $0x68] sm:$0xff]
        %v2077 = vld [vmem:[#allocation5 + $0x70] sm:$0xff]
        %v2078 = vld [vmem:[#allocation5 + $0x78] sm:$0xff]
        %v2079 = vld [vmem:[#allocation5 + $0x80] sm:$0xff]
        %v2080 = vld [vmem:[#allocation5 + $0x88] sm:$0xff]
        %v2081 = vld [vmem:[#allocation5 + $0x90] sm:$0xff]
        %v2082 = vld [vmem:[#allocation5 + $0x98] sm:$0xff]
        %v2083 = vld [vmem:[#allocation5 + $0xa0] sm:$0xff]
        %v2084 = vld [vmem:[#allocation5 + $0xa8] sm:$0xff]
        %v2085 = vld [vmem:[#allocation5 + $0xb0] sm:$0xff]
        %v2086 = vld [vmem:[#allocation5 + $0xb8] sm:$0xff]
        %v2087 = vld [vmem:[#allocation5 + $0xc0] sm:$0xff]
        %v2088 = vld [vmem:[#allocation5 + $0xc8] sm:$0xff]
        %v2089 = vld [vmem:[#allocation5 + $0xd0] sm:$0xff]
        %v2090 = vld [vmem:[#allocation5 + $0xd8] sm:$0xff]
        %v2091 = vld [vmem:[#allocation5 + $0xe0] sm:$0xff]
        %v2092 = vld [vmem:[#allocation5 + $0xe8] sm:$0xff]
        %v2093 = vld [vmem:[#allocation5 + $0xf0] sm:$0xff]
        %v2094 = vld [vmem:[#allocation5 + $0xf8] sm:$0xff]
        %v2095 = vmul.f32 %v1161, %v1935
        %v2096 = vmul.f32 %v1163, %v1936
        %v2097 = vmul.f32 %v1354, %v1937
        %v2098 = vmul.f32 %v1356, %v1938
        %v2099 = vmul.f32 %v1165, %v1939
        %v2100 = vmul.f32 %v1167, %v1940
        %v2101 = vmul.f32 %v1358, %v1941
        %v2102 = vmul.f32 %v1360, %v1942
        %v2103 = vmul.f32 %v1171, %v1943
        %v2104 = vmul.f32 %v1173, %v1944
        %v2105 = vmul.f32 %v1364, %v1945
        %v2106 = vmul.f32 %v1366, %v1946
        %v2107 = vmul.f32 %v1175, %v1947
        %v2108 = vmul.f32 %v1177, %v1948
        %v2109 = vmul.f32 %v1368, %v1949
        %v2110 = vmul.f32 %v1370, %v1950
        %v2111 = vmul.f32 %v1181, %v1951
        %v2112 = vmul.f32 %v1183, %v1952
        %v2113 = vmul.f32 %v1374, %v1953
        %v2114 = vmul.f32 %v1376, %v1954
        %v2115 = vmul.f32 %v1185, %v1955
        %v2116 = vmul.f32 %v1187, %v1956
        %v2117 = vmul.f32 %v1378, %v1957
        %v2118 = vmul.f32 %v1380, %v1958
        %v2119 = vmul.f32 %v1191, %v1959
        %v2120 = vmul.f32 %v1193, %v1960
        %v2121 = vmul.f32 %v1384, %v1961
        %v2122 = vmul.f32 %v1386, %v1962
        %v2123 = vmul.f32 %v1195, %v1963
        %v2124 = vmul.f32 %v1197, %v1964
        %v2125 = vmul.f32 %v1388, %v1965
        %v2126 = vmul.f32 %v1390, %v1966
        %v2127 = vmul.f32 %v1201, %v1967
        %v2128 = vmul.f32 %v1203, %v1968
        %v2129 = vmul.f32 %v1394, %v1969
        %v2130 = vmul.f32 %v1396, %v1970
        %v2131 = vmul.f32 %v1205, %v1971
        %v2132 = vmul.f32 %v1207, %v1972
        %v2133 = vmul.f32 %v1398, %v1973
        %v2134 = vmul.f32 %v1400, %v1974
        %v2135 = vmul.f32 %v1211, %v1975
        %v2136 = vmul.f32 %v1213, %v1976
        %v2137 = vmul.f32 %v1404, %v1977
        %v2138 = vmul.f32 %v1406, %v1978
        %v2139 = vmul.f32 %v1215, %v1979
        %v2140 = vmul.f32 %v1217, %v1980
        %v2141 = vmul.f32 %v1408, %v1981
        %v2142 = vmul.f32 %v1410, %v1982
        %v2143 = vmul.f32 %v1221, %v1983
        %v2144 = vmul.f32 %v1223, %v1984
        %v2145 = vmul.f32 %v1414, %v1985
        %v2146 = vmul.f32 %v1416, %v1986
        %v2147 = vmul.f32 %v1225, %v1987
        %v2148 = vmul.f32 %v1227, %v1988
        %v2149 = vmul.f32 %v1418, %v1989
        %v2150 = vmul.f32 %v1420, %v1990
        %v2151 = vmul.f32 %v1231, %v1991
        %v2152 = vmul.f32 %v1233, %v1992
        %v2153 = vmul.f32 %v1424, %v1993
        %v2154 = vmul.f32 %v1426, %v1994
        %v2155 = vmul.f32 %v1235, %v1995
        %v2156 = vmul.f32 %v1237, %v1996
        %v2157 = vmul.f32 %v1428, %v1997
        %v2158 = vmul.f32 %v1430, %v1998
        %v2159 = vmul.f32 %v1241, %v1999
        %v2160 = vmul.f32 %v1243, %v2000
        %v2161 = vmul.f32 %v1434, %v2001
        %v2162 = vmul.f32 %v1436, %v2002
        %v2163 = vmul.f32 %v1245, %v2003
        %v2164 = vmul.f32 %v1247, %v2004
        %v2165 = vmul.f32 %v1438, %v2005
        %v2166 = vmul.f32 %v1440, %v2006
        %v2167 = vmul.f32 %v1251, %v2007
        %v2168 = vmul.f32 %v1253, %v2008
        %v2169 = vmul.f32 %v1444, %v2009
        %v2170 = vmul.f32 %v1446, %v2010
        %v2171 = vmul.f32 %v1255, %v2011
        %v2172 = vmul.f32 %v1257, %v2012
        %v2173 = vmul.f32 %v1448, %v2013
        %v2174 = vmul.f32 %v1450, %v2014
        %v2175 = vmul.f32 %v1261, %v2015
        %v2176 = vmul.f32 %v1263, %v2016
        %v2177 = vmul.f32 %v1454, %v2017
        %v2178 = vmul.f32 %v1456, %v2018
        %v2179 = vmul.f32 %v1265, %v2019
        %v2180 = vmul.f32 %v1267, %v2020
        %v2181 = vmul.f32 %v1458, %v2021
        %v2182 = vmul.f32 %v1460, %v2022
        %v2183 = vmul.f32 %v1271, %v2023
        %v2184 = vmul.f32 %v1273, %v2024
        %v2185 = vmul.f32 %v1464, %v2025
        %v2186 = vmul.f32 %v1466, %v2026
        %v2187 = vmul.f32 %v1275, %v2027
        %v2188 = vmul.f32 %v1277, %v2028
        %v2189 = vmul.f32 %v1468, %v2029
        %v2190 = vmul.f32 %v1470, %v2030
        %v2191 = vmul.f32 %v1281, %v2031
        %v2192 = vmul.f32 %v1283, %v2032
        %v2193 = vmul.f32 %v1474, %v2033
        %v2194 = vmul.f32 %v1476, %v2034
        %v2195 = vmul.f32 %v1285, %v2035
        %v2196 = vmul.f32 %v1287, %v2036
        %v2197 = vmul.f32 %v1478, %v2037
        %v2198 = vmul.f32 %v1480, %v2038
        %v2199 = vmul.f32 %v1291, %v2039
        %v2200 = vmul.f32 %v1293, %v2040
        %v2201 = vmul.f32 %v1484, %v2041
        %v2202 = vmul.f32 %v1486, %v2042
        %v2203 = vmul.f32 %v1295, %v2043
        %v2204 = vmul.f32 %v1297, %v2044
        %v2205 = vmul.f32 %v1488, %v2045
        %v2206 = vmul.f32 %v1490, %v2046
        %v2207 = vmul.f32 %v1301, %v2047
        %v2208 = vmul.f32 %v1303, %v2048
        %v2209 = vmul.f32 %v1494, %v2049
        %v2210 = vmul.f32 %v1496, %v2050
        %v2211 = vmul.f32 %v1305, %v2051
        %v2212 = vmul.f32 %v1307, %v2052
        %v2213 = vmul.f32 %v1498, %v2053
        %v2214 = vmul.f32 %v1500, %v2054
        %v2215 = vmul.f32 %v1311, %v2055
        %v2216 = vmul.f32 %v1313, %v2056
        %v2217 = vmul.f32 %v1504, %v2057
        %v2218 = vmul.f32 %v1506, %v2058
        %v2219 = vmul.f32 %v1315, %v2059
        %v2220 = vmul.f32 %v1317, %v2060
        %v2221 = vmul.f32 %v1508, %v2061
        %v2222 = vmul.f32 %v1510, %v2062
        %v2223 = vadd.f32 %v2095, %v2096
        %v2224 = vadd.f32 %v2223, %v2097
        %v2225 = vadd.f32 %v2224, %v2098
        %2226 = vadd.xlane.f32.xlu0 %v2225
        %v2227 = vpop.xlane.xlu0 %2226
        %v2228 = vadd.f32 %v2099, %v2100
        %v2229 = vadd.f32 %v2228, %v2101
        %v2230 = vadd.f32 %v2229, %v2102
        %2231 = vadd.xlane.f32.xlu0 %v2230
        %v2232 = vpop.xlane.xlu0 %2231
        %v2233 = vadd.f32 %v2103, %v2104
        %v2234 = vadd.f32 %v2233, %v2105
        %v2235 = vadd.f32 %v2234, %v2106
        %2236 = vadd.xlane.f32.xlu0 %v2235
        %v2237 = vpop.xlane.xlu0 %2236
        %v2238 = vadd.f32 %v2107, %v2108
        %v2239 = vadd.f32 %v2238, %v2109
        %v2240 = vadd.f32 %v2239, %v2110
        %2241 = vadd.xlane.f32.xlu0 %v2240
        %v2242 = vpop.xlane.xlu0 %2241
        %v2243 = vadd.f32 %v2111, %v2112
        %v2244 = vadd.f32 %v2243, %v2113
        %v2245 = vadd.f32 %v2244, %v2114
        %2246 = vadd.xlane.f32.xlu0 %v2245
        %v2247 = vpop.xlane.xlu0 %2246
        %v2248 = vadd.f32 %v2115, %v2116
        %v2249 = vadd.f32 %v2248, %v2117
        %v2250 = vadd.f32 %v2249, %v2118
        %2251 = vadd.xlane.f32.xlu0 %v2250
        %v2252 = vpop.xlane.xlu0 %2251
        %v2253 = vadd.f32 %v2119, %v2120
        %v2254 = vadd.f32 %v2253, %v2121
        %v2255 = vadd.f32 %v2254, %v2122
        %2256 = vadd.xlane.f32.xlu0 %v2255
        %v2257 = vpop.xlane.xlu0 %2256
        %v2258 = vadd.f32 %v2123, %v2124
        %v2259 = vadd.f32 %v2258, %v2125
        %v2260 = vadd.f32 %v2259, %v2126
        %2261 = vadd.xlane.f32.xlu0 %v2260
        %v2262 = vpop.xlane.xlu0 %2261
        %v2263 = vadd.f32 %v2127, %v2128
        %v2264 = vadd.f32 %v2263, %v2129
        %v2265 = vadd.f32 %v2264, %v2130
        %2266 = vadd.xlane.f32.xlu0 %v2265
        %v2267 = vpop.xlane.xlu0 %2266
        %v2268 = vadd.f32 %v2131, %v2132
        %v2269 = vadd.f32 %v2268, %v2133
        %v2270 = vadd.f32 %v2269, %v2134
        %2271 = vadd.xlane.f32.xlu0 %v2270
        %v2272 = vpop.xlane.xlu0 %2271
        %v2273 = vadd.f32 %v2135, %v2136
        %v2274 = vadd.f32 %v2273, %v2137
        %v2275 = vadd.f32 %v2274, %v2138
        %2276 = vadd.xlane.f32.xlu0 %v2275
        %v2277 = vpop.xlane.xlu0 %2276
        %v2278 = vadd.f32 %v2139, %v2140
        %v2279 = vadd.f32 %v2278, %v2141
        %v2280 = vadd.f32 %v2279, %v2142
        %2281 = vadd.xlane.f32.xlu0 %v2280
        %v2282 = vpop.xlane.xlu0 %2281
        %v2283 = vadd.f32 %v2143, %v2144
        %v2284 = vadd.f32 %v2283, %v2145
        %v2285 = vadd.f32 %v2284, %v2146
        %2286 = vadd.xlane.f32.xlu0 %v2285
        %v2287 = vpop.xlane.xlu0 %2286
        %v2288 = vadd.f32 %v2147, %v2148
        %v2289 = vadd.f32 %v2288, %v2149
        %v2290 = vadd.f32 %v2289, %v2150
        %2291 = vadd.xlane.f32.xlu0 %v2290
        %v2292 = vpop.xlane.xlu0 %2291
        %v2293 = vadd.f32 %v2151, %v2152
        %v2294 = vadd.f32 %v2293, %v2153
        %v2295 = vadd.f32 %v2294, %v2154
        %2296 = vadd.xlane.f32.xlu0 %v2295
        %v2297 = vpop.xlane.xlu0 %2296
        %v2298 = vadd.f32 %v2155, %v2156
        %v2299 = vadd.f32 %v2298, %v2157
        %v2300 = vadd.f32 %v2299, %v2158
        %2301 = vadd.xlane.f32.xlu0 %v2300
        %v2302 = vpop.xlane.xlu0 %2301
        %v2303 = vadd.f32 %v2159, %v2160
        %v2304 = vadd.f32 %v2303, %v2161
        %v2305 = vadd.f32 %v2304, %v2162
        %2306 = vadd.xlane.f32.xlu0 %v2305
        %v2307 = vpop.xlane.xlu0 %2306
        %v2308 = vadd.f32 %v2163, %v2164
        %v2309 = vadd.f32 %v2308, %v2165
        %v2310 = vadd.f32 %v2309, %v2166
        %2311 = vadd.xlane.f32.xlu0 %v2310
        %v2312 = vpop.xlane.xlu0 %2311
        %v2313 = vadd.f32 %v2167, %v2168
        %v2314 = vadd.f32 %v2313, %v2169
        %v2315 = vadd.f32 %v2314, %v2170
        %2316 = vadd.xlane.f32.xlu0 %v2315
        %v2317 = vpop.xlane.xlu0 %2316
        %v2318 = vadd.f32 %v2171, %v2172
        %v2319 = vadd.f32 %v2318, %v2173
        %v2320 = vadd.f32 %v2319, %v2174
        %2321 = vadd.xlane.f32.xlu0 %v2320
        %v2322 = vpop.xlane.xlu0 %2321
        %v2323 = vadd.f32 %v2175, %v2176
        %v2324 = vadd.f32 %v2323, %v2177
        %v2325 = vadd.f32 %v2324, %v2178
        %2326 = vadd.xlane.f32.xlu0 %v2325
        %v2327 = vpop.xlane.xlu0 %2326
        %v2328 = vadd.f32 %v2179, %v2180
        %v2329 = vadd.f32 %v2328, %v2181
        %v2330 = vadd.f32 %v2329, %v2182
        %2331 = vadd.xlane.f32.xlu0 %v2330
        %v2332 = vpop.xlane.xlu0 %2331
        %v2333 = vadd.f32 %v2183, %v2184
        %v2334 = vadd.f32 %v2333, %v2185
        %v2335 = vadd.f32 %v2334, %v2186
        %2336 = vadd.xlane.f32.xlu0 %v2335
        %v2337 = vpop.xlane.xlu0 %2336
        %v2338 = vadd.f32 %v2187, %v2188
        %v2339 = vadd.f32 %v2338, %v2189
        %v2340 = vadd.f32 %v2339, %v2190
        %2341 = vadd.xlane.f32.xlu0 %v2340
        %v2342 = vpop.xlane.xlu0 %2341
        %v2343 = vadd.f32 %v2191, %v2192
        %v2344 = vadd.f32 %v2343, %v2193
        %v2345 = vadd.f32 %v2344, %v2194
        %2346 = vadd.xlane.f32.xlu0 %v2345
        %v2347 = vpop.xlane.xlu0 %2346
        %v2348 = vadd.f32 %v2195, %v2196
        %v2349 = vadd.f32 %v2348, %v2197
        %v2350 = vadd.f32 %v2349, %v2198
        %2351 = vadd.xlane.f32.xlu0 %v2350
        %v2352 = vpop.xlane.xlu0 %2351
        %v2353 = vadd.f32 %v2199, %v2200
        %v2354 = vadd.f32 %v2353, %v2201
        %v2355 = vadd.f32 %v2354, %v2202
        %2356 = vadd.xlane.f32.xlu0 %v2355
        %v2357 = vpop.xlane.xlu0 %2356
        %v2358 = vadd.f32 %v2203, %v2204
        %v2359 = vadd.f32 %v2358, %v2205
        %v2360 = vadd.f32 %v2359, %v2206
        %2361 = vadd.xlane.f32.xlu0 %v2360
        %v2362 = vpop.xlane.xlu0 %2361
        %v2363 = vadd.f32 %v2207, %v2208
        %v2364 = vadd.f32 %v2363, %v2209
        %v2365 = vadd.f32 %v2364, %v2210
        %2366 = vadd.xlane.f32.xlu0 %v2365
        %v2367 = vpop.xlane.xlu0 %2366
        %v2368 = vadd.f32 %v2211, %v2212
        %v2369 = vadd.f32 %v2368, %v2213
        %v2370 = vadd.f32 %v2369, %v2214
        %2371 = vadd.xlane.f32.xlu0 %v2370
        %v2372 = vpop.xlane.xlu0 %2371
        %v2373 = vadd.f32 %v2215, %v2216
        %v2374 = vadd.f32 %v2373, %v2217
        %v2375 = vadd.f32 %v2374, %v2218
        %2376 = vadd.xlane.f32.xlu0 %v2375
        %v2377 = vpop.xlane.xlu0 %2376
        %v2378 = vadd.f32 %v2219, %v2220
        %v2379 = vadd.f32 %v2378, %v2221
        %v2380 = vadd.f32 %v2379, %v2222
        %2381 = vadd.xlane.f32.xlu0 %v2380
        %v2382 = vpop.xlane.xlu0 %2381
        %v2383 = vadd.f32 %v2063, %v2227
        %v2384 = vadd.f32 %v2064, %v2232
        %v2385 = vadd.f32 %v2065, %v2237
        %v2386 = vadd.f32 %v2066, %v2242
        %v2387 = vadd.f32 %v2067, %v2247
        %v2388 = vadd.f32 %v2068, %v2252
        %v2389 = vadd.f32 %v2069, %v2257
        %v2390 = vadd.f32 %v2070, %v2262
        %v2391 = vadd.f32 %v2071, %v2267
        %v2392 = vadd.f32 %v2072, %v2272
        %v2393 = vadd.f32 %v2073, %v2277
        %v2394 = vadd.f32 %v2074, %v2282
        %v2395 = vadd.f32 %v2075, %v2287
        %v2396 = vadd.f32 %v2076, %v2292
        %v2397 = vadd.f32 %v2077, %v2297
        %v2398 = vadd.f32 %v2078, %v2302
        %v2399 = vadd.f32 %v2079, %v2307
        %v2400 = vadd.f32 %v2080, %v2312
        %v2401 = vadd.f32 %v2081, %v2317
        %v2402 = vadd.f32 %v2082, %v2322
        %v2403 = vadd.f32 %v2083, %v2327
        %v2404 = vadd.f32 %v2084, %v2332
        %v2405 = vadd.f32 %v2085, %v2337
        %v2406 = vadd.f32 %v2086, %v2342
        %v2407 = vadd.f32 %v2087, %v2347
        %v2408 = vadd.f32 %v2088, %v2352
        %v2409 = vadd.f32 %v2089, %v2357
        %v2410 = vadd.f32 %v2090, %v2362
        %v2411 = vadd.f32 %v2091, %v2367
        %v2412 = vadd.f32 %v2092, %v2372
        %v2413 = vadd.f32 %v2093, %v2377
        %v2414 = vadd.f32 %v2094, %v2382
        %vm2415 = vcmask 7168
        %2416 = vst.msk [vmem:[#allocation5] sm:$0xff] %vm2415, %v2383
        %2417 = vst.msk [vmem:[#allocation5 + $0x8] sm:$0xff] %vm2415, %v2384
        %2418 = vst.msk [vmem:[#allocation5 + $0x10] sm:$0xff] %vm2415, %v2385
        %2419 = vst.msk [vmem:[#allocation5 + $0x18] sm:$0xff] %vm2415, %v2386
        %2420 = vst.msk [vmem:[#allocation5 + $0x20] sm:$0xff] %vm2415, %v2387
        %2421 = vst.msk [vmem:[#allocation5 + $0x28] sm:$0xff] %vm2415, %v2388
        %2422 = vst.msk [vmem:[#allocation5 + $0x30] sm:$0xff] %vm2415, %v2389
        %2423 = vst.msk [vmem:[#allocation5 + $0x38] sm:$0xff] %vm2415, %v2390
        %2424 = vst.msk [vmem:[#allocation5 + $0x40] sm:$0xff] %vm2415, %v2391
        %2425 = vst.msk [vmem:[#allocation5 + $0x48] sm:$0xff] %vm2415, %v2392
        %2426 = vst.msk [vmem:[#allocation5 + $0x50] sm:$0xff] %vm2415, %v2393
        %2427 = vst.msk [vmem:[#allocation5 + $0x58] sm:$0xff] %vm2415, %v2394
        %2428 = vst.msk [vmem:[#allocation5 + $0x60] sm:$0xff] %vm2415, %v2395
        %2429 = vst.msk [vmem:[#allocation5 + $0x68] sm:$0xff] %vm2415, %v2396
        %2430 = vst.msk [vmem:[#allocation5 + $0x70] sm:$0xff] %vm2415, %v2397
        %2431 = vst.msk [vmem:[#allocation5 + $0x78] sm:$0xff] %vm2415, %v2398
        %2432 = vst.msk [vmem:[#allocation5 + $0x80] sm:$0xff] %vm2415, %v2399
        %2433 = vst.msk [vmem:[#allocation5 + $0x88] sm:$0xff] %vm2415, %v2400
        %2434 = vst.msk [vmem:[#allocation5 + $0x90] sm:$0xff] %vm2415, %v2401
        %2435 = vst.msk [vmem:[#allocation5 + $0x98] sm:$0xff] %vm2415, %v2402
        %2436 = vst.msk [vmem:[#allocation5 + $0xa0] sm:$0xff] %vm2415, %v2403
        %2437 = vst.msk [vmem:[#allocation5 + $0xa8] sm:$0xff] %vm2415, %v2404
        %2438 = vst.msk [vmem:[#allocation5 + $0xb0] sm:$0xff] %vm2415, %v2405
        %2439 = vst.msk [vmem:[#allocation5 + $0xb8] sm:$0xff] %vm2415, %v2406
        %2440 = vst.msk [vmem:[#allocation5 + $0xc0] sm:$0xff] %vm2415, %v2407
        %2441 = vst.msk [vmem:[#allocation5 + $0xc8] sm:$0xff] %vm2415, %v2408
        %2442 = vst.msk [vmem:[#allocation5 + $0xd0] sm:$0xff] %vm2415, %v2409
        %2443 = vst.msk [vmem:[#allocation5 + $0xd8] sm:$0xff] %vm2415, %v2410
        %2444 = vst.msk [vmem:[#allocation5 + $0xe0] sm:$0xff] %vm2415, %v2411
        %2445 = vst.msk [vmem:[#allocation5 + $0xe8] sm:$0xff] %vm2415, %v2412
        %2446 = vst.msk [vmem:[#allocation5 + $0xf0] sm:$0xff] %vm2415, %v2413
        %2447 = vst.msk [vmem:[#allocation5 + $0xf8] sm:$0xff] %vm2415, %v2414
        %v2448 = vld [vmem:[#allocation3] sm:$0xff]
        %v2449 = vld [vmem:[#allocation3 + $0x8] sm:$0xff]
        %v2450 = vld [vmem:[#allocation3 + $0x10] sm:$0xff]
        %v2451 = vld [vmem:[#allocation3 + $0x18] sm:$0xff]
        %v2452 = vld [vmem:[#allocation3 + $0x20] sm:$0xff]
        %v2453 = vld [vmem:[#allocation3 + $0x28] sm:$0xff]
        %v2454 = vld [vmem:[#allocation3 + $0x30] sm:$0xff]
        %v2455 = vld [vmem:[#allocation3 + $0x38] sm:$0xff]
        %v2456 = vld [vmem:[#allocation3 + $0x40] sm:$0xff]
        %v2457 = vld [vmem:[#allocation3 + $0x48] sm:$0xff]
        %v2458 = vld [vmem:[#allocation3 + $0x50] sm:$0xff]
        %v2459 = vld [vmem:[#allocation3 + $0x58] sm:$0xff]
        %v2460 = vld [vmem:[#allocation3 + $0x60] sm:$0xff]
        %v2461 = vld [vmem:[#allocation3 + $0x68] sm:$0xff]
        %v2462 = vld [vmem:[#allocation3 + $0x70] sm:$0xff]
        %v2463 = vld [vmem:[#allocation3 + $0x78] sm:$0xff]
        %v2464 = vld [vmem:[#allocation3 + $0x80] sm:$0xff]
        %v2465 = vld [vmem:[#allocation3 + $0x88] sm:$0xff]
        %v2466 = vld [vmem:[#allocation3 + $0x90] sm:$0xff]
        %v2467 = vld [vmem:[#allocation3 + $0x98] sm:$0xff]
        %v2468 = vld [vmem:[#allocation3 + $0xa0] sm:$0xff]
        %v2469 = vld [vmem:[#allocation3 + $0xa8] sm:$0xff]
        %v2470 = vld [vmem:[#allocation3 + $0xb0] sm:$0xff]
        %v2471 = vld [vmem:[#allocation3 + $0xb8] sm:$0xff]
        %v2472 = vld [vmem:[#allocation3 + $0xc0] sm:$0xff]
        %v2473 = vld [vmem:[#allocation3 + $0xc8] sm:$0xff]
        %v2474 = vld [vmem:[#allocation3 + $0xd0] sm:$0xff]
        %v2475 = vld [vmem:[#allocation3 + $0xd8] sm:$0xff]
        %v2476 = vld [vmem:[#allocation3 + $0xe0] sm:$0xff]
        %v2477 = vld [vmem:[#allocation3 + $0xe8] sm:$0xff]
        %v2478 = vld [vmem:[#allocation3 + $0xf0] sm:$0xff]
        %v2479 = vld [vmem:[#allocation3 + $0xf8] sm:$0xff]
        %v2480 = vmax.f32 %v1161, %v1163
        %v2481 = vmax.f32 %v2480, %v1354
        %v2482 = vmax.f32 %v2481, %v1356
        %2483 = vmax.xlane.f32.xlu0 %v2482
        %v2484 = vpop.xlane.xlu0 %2483
        %v2485 = vmax.f32 %v1165, %v1167
        %v2486 = vmax.f32 %v2485, %v1358
        %v2487 = vmax.f32 %v2486, %v1360
        %2488 = vmax.xlane.f32.xlu0 %v2487
        %v2489 = vpop.xlane.xlu0 %2488
        %v2490 = vmax.f32 %v1171, %v1173
        %v2491 = vmax.f32 %v2490, %v1364
        %v2492 = vmax.f32 %v2491, %v1366
        %2493 = vmax.xlane.f32.xlu0 %v2492
        %v2494 = vpop.xlane.xlu0 %2493
        %v2495 = vmax.f32 %v1175, %v1177
        %v2496 = vmax.f32 %v2495, %v1368
        %v2497 = vmax.f32 %v2496, %v1370
        %2498 = vmax.xlane.f32.xlu0 %v2497
        %v2499 = vpop.xlane.xlu0 %2498
        %v2500 = vmax.f32 %v1181, %v1183
        %v2501 = vmax.f32 %v2500, %v1374
        %v2502 = vmax.f32 %v2501, %v1376
        %2503 = vmax.xlane.f32.xlu0 %v2502
        %v2504 = vpop.xlane.xlu0 %2503
        %v2505 = vmax.f32 %v1185, %v1187
        %v2506 = vmax.f32 %v2505, %v1378
        %v2507 = vmax.f32 %v2506, %v1380
        %2508 = vmax.xlane.f32.xlu0 %v2507
        %v2509 = vpop.xlane.xlu0 %2508
        %v2510 = vmax.f32 %v1191, %v1193
        %v2511 = vmax.f32 %v2510, %v1384
        %v2512 = vmax.f32 %v2511, %v1386
        %2513 = vmax.xlane.f32.xlu0 %v2512
        %v2514 = vpop.xlane.xlu0 %2513
        %v2515 = vmax.f32 %v1195, %v1197
        %v2516 = vmax.f32 %v2515, %v1388
        %v2517 = vmax.f32 %v2516, %v1390
        %2518 = vmax.xlane.f32.xlu0 %v2517
        %v2519 = vpop.xlane.xlu0 %2518
        %v2520 = vmax.f32 %v1201, %v1203
        %v2521 = vmax.f32 %v2520, %v1394
        %v2522 = vmax.f32 %v2521, %v1396
        %2523 = vmax.xlane.f32.xlu0 %v2522
        %v2524 = vpop.xlane.xlu0 %2523
        %v2525 = vmax.f32 %v1205, %v1207
        %v2526 = vmax.f32 %v2525, %v1398
        %v2527 = vmax.f32 %v2526, %v1400
        %2528 = vmax.xlane.f32.xlu0 %v2527
        %v2529 = vpop.xlane.xlu0 %2528
        %v2530 = vmax.f32 %v1211, %v1213
        %v2531 = vmax.f32 %v2530, %v1404
        %v2532 = vmax.f32 %v2531, %v1406
        %2533 = vmax.xlane.f32.xlu0 %v2532
        %v2534 = vpop.xlane.xlu0 %2533
        %v2535 = vmax.f32 %v1215, %v1217
        %v2536 = vmax.f32 %v2535, %v1408
        %v2537 = vmax.f32 %v2536, %v1410
        %2538 = vmax.xlane.f32.xlu0 %v2537
        %v2539 = vpop.xlane.xlu0 %2538
        %v2540 = vmax.f32 %v1221, %v1223
        %v2541 = vmax.f32 %v2540, %v1414
        %v2542 = vmax.f32 %v2541, %v1416
        %2543 = vmax.xlane.f32.xlu0 %v2542
        %v2544 = vpop.xlane.xlu0 %2543
        %v2545 = vmax.f32 %v1225, %v1227
        %v2546 = vmax.f32 %v2545, %v1418
        %v2547 = vmax.f32 %v2546, %v1420
        %2548 = vmax.xlane.f32.xlu0 %v2547
        %v2549 = vpop.xlane.xlu0 %2548
        %v2550 = vmax.f32 %v1231, %v1233
        %v2551 = vmax.f32 %v2550, %v1424
        %v2552 = vmax.f32 %v2551, %v1426
        %2553 = vmax.xlane.f32.xlu0 %v2552
        %v2554 = vpop.xlane.xlu0 %2553
        %v2555 = vmax.f32 %v1235, %v1237
        %v2556 = vmax.f32 %v2555, %v1428
        %v2557 = vmax.f32 %v2556, %v1430
        %2558 = vmax.xlane.f32.xlu0 %v2557
        %v2559 = vpop.xlane.xlu0 %2558
        %v2560 = vmax.f32 %v1241, %v1243
        %v2561 = vmax.f32 %v2560, %v1434
        %v2562 = vmax.f32 %v2561, %v1436
        %2563 = vmax.xlane.f32.xlu0 %v2562
        %v2564 = vpop.xlane.xlu0 %2563
        %v2565 = vmax.f32 %v1245, %v1247
        %v2566 = vmax.f32 %v2565, %v1438
        %v2567 = vmax.f32 %v2566, %v1440
        %2568 = vmax.xlane.f32.xlu0 %v2567
        %v2569 = vpop.xlane.xlu0 %2568
        %v2570 = vmax.f32 %v1251, %v1253
        %v2571 = vmax.f32 %v2570, %v1444
        %v2572 = vmax.f32 %v2571, %v1446
        %2573 = vmax.xlane.f32.xlu0 %v2572
        %v2574 = vpop.xlane.xlu0 %2573
        %v2575 = vmax.f32 %v1255, %v1257
        %v2576 = vmax.f32 %v2575, %v1448
        %v2577 = vmax.f32 %v2576, %v1450
        %2578 = vmax.xlane.f32.xlu0 %v2577
        %v2579 = vpop.xlane.xlu0 %2578
        %v2580 = vmax.f32 %v1261, %v1263
        %v2581 = vmax.f32 %v2580, %v1454
        %v2582 = vmax.f32 %v2581, %v1456
        %2583 = vmax.xlane.f32.xlu0 %v2582
        %v2584 = vpop.xlane.xlu0 %2583
        %v2585 = vmax.f32 %v1265, %v1267
        %v2586 = vmax.f32 %v2585, %v1458
        %v2587 = vmax.f32 %v2586, %v1460
        %2588 = vmax.xlane.f32.xlu0 %v2587
        %v2589 = vpop.xlane.xlu0 %2588
        %v2590 = vmax.f32 %v1271, %v1273
        %v2591 = vmax.f32 %v2590, %v1464
        %v2592 = vmax.f32 %v2591, %v1466
        %2593 = vmax.xlane.f32.xlu0 %v2592
        %v2594 = vpop.xlane.xlu0 %2593
        %v2595 = vmax.f32 %v1275, %v1277
        %v2596 = vmax.f32 %v2595, %v1468
        %v2597 = vmax.f32 %v2596, %v1470
        %2598 = vmax.xlane.f32.xlu0 %v2597
        %v2599 = vpop.xlane.xlu0 %2598
        %v2600 = vmax.f32 %v1281, %v1283
        %v2601 = vmax.f32 %v2600, %v1474
        %v2602 = vmax.f32 %v2601, %v1476
        %2603 = vmax.xlane.f32.xlu0 %v2602
        %v2604 = vpop.xlane.xlu0 %2603
        %v2605 = vmax.f32 %v1285, %v1287
        %v2606 = vmax.f32 %v2605, %v1478
        %v2607 = vmax.f32 %v2606, %v1480
        %2608 = vmax.xlane.f32.xlu0 %v2607
        %v2609 = vpop.xlane.xlu0 %2608
        %v2610 = vmax.f32 %v1291, %v1293
        %v2611 = vmax.f32 %v2610, %v1484
        %v2612 = vmax.f32 %v2611, %v1486
        %2613 = vmax.xlane.f32.xlu0 %v2612
        %v2614 = vpop.xlane.xlu0 %2613
        %v2615 = vmax.f32 %v1295, %v1297
        %v2616 = vmax.f32 %v2615, %v1488
        %v2617 = vmax.f32 %v2616, %v1490
        %2618 = vmax.xlane.f32.xlu0 %v2617
        %v2619 = vpop.xlane.xlu0 %2618
        %v2620 = vmax.f32 %v1301, %v1303
        %v2621 = vmax.f32 %v2620, %v1494
        %v2622 = vmax.f32 %v2621, %v1496
        %2623 = vmax.xlane.f32.xlu0 %v2622
        %v2624 = vpop.xlane.xlu0 %2623
        %v2625 = vmax.f32 %v1305, %v1307
        %v2626 = vmax.f32 %v2625, %v1498
        %v2627 = vmax.f32 %v2626, %v1500
        %2628 = vmax.xlane.f32.xlu0 %v2627
        %v2629 = vpop.xlane.xlu0 %2628
        %v2630 = vmax.f32 %v1311, %v1313
        %v2631 = vmax.f32 %v2630, %v1504
        %v2632 = vmax.f32 %v2631, %v1506
        %2633 = vmax.xlane.f32.xlu0 %v2632
        %v2634 = vpop.xlane.xlu0 %2633
        %v2635 = vmax.f32 %v1315, %v1317
        %v2636 = vmax.f32 %v2635, %v1508
        %v2637 = vmax.f32 %v2636, %v1510
        %2638 = vmax.xlane.f32.xlu0 %v2637
        %v2639 = vpop.xlane.xlu0 %2638
        %v2640 = vmax.f32 %v2448, %v2484
        %v2641 = vmax.f32 %v2449, %v2489
        %v2642 = vmax.f32 %v2450, %v2494
        %v2643 = vmax.f32 %v2451, %v2499
        %v2644 = vmax.f32 %v2452, %v2504
        %v2645 = vmax.f32 %v2453, %v2509
        %v2646 = vmax.f32 %v2454, %v2514
        %v2647 = vmax.f32 %v2455, %v2519
        %v2648 = vmax.f32 %v2456, %v2524
        %v2649 = vmax.f32 %v2457, %v2529
        %v2650 = vmax.f32 %v2458, %v2534
        %v2651 = vmax.f32 %v2459, %v2539
        %v2652 = vmax.f32 %v2460, %v2544
        %v2653 = vmax.f32 %v2461, %v2549
        %v2654 = vmax.f32 %v2462, %v2554
        %v2655 = vmax.f32 %v2463, %v2559
        %v2656 = vmax.f32 %v2464, %v2564
        %v2657 = vmax.f32 %v2465, %v2569
        %v2658 = vmax.f32 %v2466, %v2574
        %v2659 = vmax.f32 %v2467, %v2579
        %v2660 = vmax.f32 %v2468, %v2584
        %v2661 = vmax.f32 %v2469, %v2589
        %v2662 = vmax.f32 %v2470, %v2594
        %v2663 = vmax.f32 %v2471, %v2599
        %v2664 = vmax.f32 %v2472, %v2604
        %v2665 = vmax.f32 %v2473, %v2609
        %v2666 = vmax.f32 %v2474, %v2614
        %v2667 = vmax.f32 %v2475, %v2619
        %v2668 = vmax.f32 %v2476, %v2624
        %v2669 = vmax.f32 %v2477, %v2629
        %v2670 = vmax.f32 %v2478, %v2634
        %v2671 = vmax.f32 %v2479, %v2639
        %v2672 = vsub.f32 %v2448, %v2640
        %v2673 = vsub.f32 %v2449, %v2641
        %v2674 = vsub.f32 %v2450, %v2642
        %v2675 = vsub.f32 %v2451, %v2643
        %v2676 = vsub.f32 %v2452, %v2644
        %v2677 = vsub.f32 %v2453, %v2645
        %v2678 = vsub.f32 %v2454, %v2646
        %v2679 = vsub.f32 %v2455, %v2647
        %v2680 = vsub.f32 %v2456, %v2648
        %v2681 = vsub.f32 %v2457, %v2649
        %v2682 = vsub.f32 %v2458, %v2650
        %v2683 = vsub.f32 %v2459, %v2651
        %v2684 = vsub.f32 %v2460, %v2652
        %v2685 = vsub.f32 %v2461, %v2653
        %v2686 = vsub.f32 %v2462, %v2654
        %v2687 = vsub.f32 %v2463, %v2655
        %v2688 = vsub.f32 %v2464, %v2656
        %v2689 = vsub.f32 %v2465, %v2657
        %v2690 = vsub.f32 %v2466, %v2658
        %v2691 = vsub.f32 %v2467, %v2659
        %v2692 = vsub.f32 %v2468, %v2660
        %v2693 = vsub.f32 %v2469, %v2661
        %v2694 = vsub.f32 %v2470, %v2662
        %v2695 = vsub.f32 %v2471, %v2663
        %v2696 = vsub.f32 %v2472, %v2664
        %v2697 = vsub.f32 %v2473, %v2665
        %v2698 = vsub.f32 %v2474, %v2666
        %v2699 = vsub.f32 %v2475, %v2667
        %v2700 = vsub.f32 %v2476, %v2668
        %v2701 = vsub.f32 %v2477, %v2669
        %v2702 = vsub.f32 %v2478, %v2670
        %v2703 = vsub.f32 %v2479, %v2671
        %v2704 = vmul.f32 %v2672, 1.442695
        %v2705 = vpow.pop %v2704
        %v2706 = vmul.f32 %v2673, 1.442695
        %v2707 = vpow.pop %v2706
        %v2708 = vmul.f32 %v2674, 1.442695
        %v2709 = vpow.pop %v2708
        %v2710 = vmul.f32 %v2675, 1.442695
        %v2711 = vpow.pop %v2710
        %v2712 = vmul.f32 %v2676, 1.442695
        %v2713 = vpow.pop %v2712
        %v2714 = vmul.f32 %v2677, 1.442695
        %v2715 = vpow.pop %v2714
        %v2716 = vmul.f32 %v2678, 1.442695
        %v2717 = vpow.pop %v2716
        %v2718 = vmul.f32 %v2679, 1.442695
        %v2719 = vpow.pop %v2718
        %v2720 = vmul.f32 %v2680, 1.442695
        %v2721 = vpow.pop %v2720
        %v2722 = vmul.f32 %v2681, 1.442695
        %v2723 = vpow.pop %v2722
        %v2724 = vmul.f32 %v2682, 1.442695
        %v2725 = vpow.pop %v2724
        %v2726 = vmul.f32 %v2683, 1.442695
        %v2727 = vpow.pop %v2726
        %v2728 = vmul.f32 %v2684, 1.442695
        %v2729 = vpow.pop %v2728
        %v2730 = vmul.f32 %v2685, 1.442695
        %v2731 = vpow.pop %v2730
        %v2732 = vmul.f32 %v2686, 1.442695
        %v2733 = vpow.pop %v2732
        %v2734 = vmul.f32 %v2687, 1.442695
        %v2735 = vpow.pop %v2734
        %v2736 = vmul.f32 %v2688, 1.442695
        %v2737 = vpow.pop %v2736
        %v2738 = vmul.f32 %v2689, 1.442695
        %v2739 = vpow.pop %v2738
        %v2740 = vmul.f32 %v2690, 1.442695
        %v2741 = vpow.pop %v2740
        %v2742 = vmul.f32 %v2691, 1.442695
        %v2743 = vpow.pop %v2742
        %v2744 = vmul.f32 %v2692, 1.442695
        %v2745 = vpow.pop %v2744
        %v2746 = vmul.f32 %v2693, 1.442695
        %v2747 = vpow.pop %v2746
        %v2748 = vmul.f32 %v2694, 1.442695
        %v2749 = vpow.pop %v2748
        %v2750 = vmul.f32 %v2695, 1.442695
        %v2751 = vpow.pop %v2750
        %v2752 = vmul.f32 %v2696, 1.442695
        %v2753 = vpow.pop %v2752
        %v2754 = vmul.f32 %v2697, 1.442695
        %v2755 = vpow.pop %v2754
        %v2756 = vmul.f32 %v2698, 1.442695
        %v2757 = vpow.pop %v2756
        %v2758 = vmul.f32 %v2699, 1.442695
        %v2759 = vpow.pop %v2758
        %v2760 = vmul.f32 %v2700, 1.442695
        %v2761 = vpow.pop %v2760
        %v2762 = vmul.f32 %v2701, 1.442695
        %v2763 = vpow.pop %v2762
        %v2764 = vmul.f32 %v2702, 1.442695
        %v2765 = vpow.pop %v2764
        %v2766 = vmul.f32 %v2703, 1.442695
        %v2767 = vpow.pop %v2766
        %2769 = vset.pattern.permute.xlu0 0
        %2770 = vperm.xlu0 %2769, %v2640
        %v2771 = vpop.permute.xlu0 %2770
        %2774 = vset.pattern.permute.xlu0 0
        %2775 = vperm.xlu0 %2774, %v2641
        %v2776 = vpop.permute.xlu0 %2775
        %2779 = vset.pattern.permute.xlu0 0
        %2780 = vperm.xlu0 %2779, %v2642
        %v2781 = vpop.permute.xlu0 %2780
        %2784 = vset.pattern.permute.xlu0 0
        %2785 = vperm.xlu0 %2784, %v2643
        %v2786 = vpop.permute.xlu0 %2785
        %2789 = vset.pattern.permute.xlu0 0
        %2790 = vperm.xlu0 %2789, %v2644
        %v2791 = vpop.permute.xlu0 %2790
        %2794 = vset.pattern.permute.xlu0 0
        %2795 = vperm.xlu0 %2794, %v2645
        %v2796 = vpop.permute.xlu0 %2795
        %2799 = vset.pattern.permute.xlu0 0
        %2800 = vperm.xlu0 %2799, %v2646
        %v2801 = vpop.permute.xlu0 %2800
        %2804 = vset.pattern.permute.xlu0 0
        %2805 = vperm.xlu0 %2804, %v2647
        %v2806 = vpop.permute.xlu0 %2805
        %2809 = vset.pattern.permute.xlu0 0
        %2810 = vperm.xlu0 %2809, %v2648
        %v2811 = vpop.permute.xlu0 %2810
        %2814 = vset.pattern.permute.xlu0 0
        %2815 = vperm.xlu0 %2814, %v2649
        %v2816 = vpop.permute.xlu0 %2815
        %2819 = vset.pattern.permute.xlu0 0
        %2820 = vperm.xlu0 %2819, %v2650
        %v2821 = vpop.permute.xlu0 %2820
        %2824 = vset.pattern.permute.xlu0 0
        %2825 = vperm.xlu0 %2824, %v2651
        %v2826 = vpop.permute.xlu0 %2825
        %2829 = vset.pattern.permute.xlu0 0
        %2830 = vperm.xlu0 %2829, %v2652
        %v2831 = vpop.permute.xlu0 %2830
        %2834 = vset.pattern.permute.xlu0 0
        %2835 = vperm.xlu0 %2834, %v2653
        %v2836 = vpop.permute.xlu0 %2835
        %2839 = vset.pattern.permute.xlu0 0
        %2840 = vperm.xlu0 %2839, %v2654
        %v2841 = vpop.permute.xlu0 %2840
        %2844 = vset.pattern.permute.xlu0 0
        %2845 = vperm.xlu0 %2844, %v2655
        %v2846 = vpop.permute.xlu0 %2845
        %2849 = vset.pattern.permute.xlu0 0
        %2850 = vperm.xlu0 %2849, %v2656
        %v2851 = vpop.permute.xlu0 %2850
        %2854 = vset.pattern.permute.xlu0 0
        %2855 = vperm.xlu0 %2854, %v2657
        %v2856 = vpop.permute.xlu0 %2855
        %2859 = vset.pattern.permute.xlu0 0
        %2860 = vperm.xlu0 %2859, %v2658
        %v2861 = vpop.permute.xlu0 %2860
        %2864 = vset.pattern.permute.xlu0 0
        %2865 = vperm.xlu0 %2864, %v2659
        %v2866 = vpop.permute.xlu0 %2865
        %2869 = vset.pattern.permute.xlu0 0
        %2870 = vperm.xlu0 %2869, %v2660
        %v2871 = vpop.permute.xlu0 %2870
        %2874 = vset.pattern.permute.xlu0 0
        %2875 = vperm.xlu0 %2874, %v2661
        %v2876 = vpop.permute.xlu0 %2875
        %2879 = vset.pattern.permute.xlu0 0
        %2880 = vperm.xlu0 %2879, %v2662
        %v2881 = vpop.permute.xlu0 %2880
        %2884 = vset.pattern.permute.xlu0 0
        %2885 = vperm.xlu0 %2884, %v2663
        %v2886 = vpop.permute.xlu0 %2885
        %2889 = vset.pattern.permute.xlu0 0
        %2890 = vperm.xlu0 %2889, %v2664
        %v2891 = vpop.permute.xlu0 %2890
        %2894 = vset.pattern.permute.xlu0 0
        %2895 = vperm.xlu0 %2894, %v2665
        %v2896 = vpop.permute.xlu0 %2895
        %2899 = vset.pattern.permute.xlu0 0
        %2900 = vperm.xlu0 %2899, %v2666
        %v2901 = vpop.permute.xlu0 %2900
        %2904 = vset.pattern.permute.xlu0 0
        %2905 = vperm.xlu0 %2904, %v2667
        %v2906 = vpop.permute.xlu0 %2905
        %2909 = vset.pattern.permute.xlu0 0
        %2910 = vperm.xlu0 %2909, %v2668
        %v2911 = vpop.permute.xlu0 %2910
        %2914 = vset.pattern.permute.xlu0 0
        %2915 = vperm.xlu0 %2914, %v2669
        %v2916 = vpop.permute.xlu0 %2915
        %2919 = vset.pattern.permute.xlu0 0
        %2920 = vperm.xlu0 %2919, %v2670
        %v2921 = vpop.permute.xlu0 %2920
        %2924 = vset.pattern.permute.xlu0 0
        %2925 = vperm.xlu0 %2924, %v2671
        %v2926 = vpop.permute.xlu0 %2925
        %v2928 = vsub.f32 %v1161, %v2771
        %v2929 = vsub.f32 %v1163, %v2771
        %v2930 = vsub.f32 %v1354, %v2771
        %v2931 = vsub.f32 %v1356, %v2771
        %v2932 = vsub.f32 %v1165, %v2776
        %v2933 = vsub.f32 %v1167, %v2776
        %v2934 = vsub.f32 %v1358, %v2776
        %v2935 = vsub.f32 %v1360, %v2776
        %v2936 = vsub.f32 %v1171, %v2781
        %v2937 = vsub.f32 %v1173, %v2781
        %v2938 = vsub.f32 %v1364, %v2781
        %v2939 = vsub.f32 %v1366, %v2781
        %v2940 = vsub.f32 %v1175, %v2786
        %v2941 = vsub.f32 %v1177, %v2786
        %v2942 = vsub.f32 %v1368, %v2786
        %v2943 = vsub.f32 %v1370, %v2786
        %v2944 = vsub.f32 %v1181, %v2791
        %v2945 = vsub.f32 %v1183, %v2791
        %v2946 = vsub.f32 %v1374, %v2791
        %v2947 = vsub.f32 %v1376, %v2791
        %v2948 = vsub.f32 %v1185, %v2796
        %v2949 = vsub.f32 %v1187, %v2796
        %v2950 = vsub.f32 %v1378, %v2796
        %v2951 = vsub.f32 %v1380, %v2796
        %v2952 = vsub.f32 %v1191, %v2801
        %v2953 = vsub.f32 %v1193, %v2801
        %v2954 = vsub.f32 %v1384, %v2801
        %v2955 = vsub.f32 %v1386, %v2801
        %v2956 = vsub.f32 %v1195, %v2806
        %v2957 = vsub.f32 %v1197, %v2806
        %v2958 = vsub.f32 %v1388, %v2806
        %v2959 = vsub.f32 %v1390, %v2806
        %v2960 = vsub.f32 %v1201, %v2811
        %v2961 = vsub.f32 %v1203, %v2811
        %v2962 = vsub.f32 %v1394, %v2811
        %v2963 = vsub.f32 %v1396, %v2811
        %v2964 = vsub.f32 %v1205, %v2816
        %v2965 = vsub.f32 %v1207, %v2816
        %v2966 = vsub.f32 %v1398, %v2816
        %v2967 = vsub.f32 %v1400, %v2816
        %v2968 = vsub.f32 %v1211, %v2821
        %v2969 = vsub.f32 %v1213, %v2821
        %v2970 = vsub.f32 %v1404, %v2821
        %v2971 = vsub.f32 %v1406, %v2821
        %v2972 = vsub.f32 %v1215, %v2826
        %v2973 = vsub.f32 %v1217, %v2826
        %v2974 = vsub.f32 %v1408, %v2826
        %v2975 = vsub.f32 %v1410, %v2826
        %v2976 = vsub.f32 %v1221, %v2831
        %v2977 = vsub.f32 %v1223, %v2831
        %v2978 = vsub.f32 %v1414, %v2831
        %v2979 = vsub.f32 %v1416, %v2831
        %v2980 = vsub.f32 %v1225, %v2836
        %v2981 = vsub.f32 %v1227, %v2836
        %v2982 = vsub.f32 %v1418, %v2836
        %v2983 = vsub.f32 %v1420, %v2836
        %v2984 = vsub.f32 %v1231, %v2841
        %v2985 = vsub.f32 %v1233, %v2841
        %v2986 = vsub.f32 %v1424, %v2841
        %v2987 = vsub.f32 %v1426, %v2841
        %v2988 = vsub.f32 %v1235, %v2846
        %v2989 = vsub.f32 %v1237, %v2846
        %v2990 = vsub.f32 %v1428, %v2846
        %v2991 = vsub.f32 %v1430, %v2846
        %v2992 = vsub.f32 %v1241, %v2851
        %v2993 = vsub.f32 %v1243, %v2851
        %v2994 = vsub.f32 %v1434, %v2851
        %v2995 = vsub.f32 %v1436, %v2851
        %v2996 = vsub.f32 %v1245, %v2856
        %v2997 = vsub.f32 %v1247, %v2856
        %v2998 = vsub.f32 %v1438, %v2856
        %v2999 = vsub.f32 %v1440, %v2856
        %v3000 = vsub.f32 %v1251, %v2861
        %v3001 = vsub.f32 %v1253, %v2861
        %v3002 = vsub.f32 %v1444, %v2861
        %v3003 = vsub.f32 %v1446, %v2861
        %v3004 = vsub.f32 %v1255, %v2866
        %v3005 = vsub.f32 %v1257, %v2866
        %v3006 = vsub.f32 %v1448, %v2866
        %v3007 = vsub.f32 %v1450, %v2866
        %v3008 = vsub.f32 %v1261, %v2871
        %v3009 = vsub.f32 %v1263, %v2871
        %v3010 = vsub.f32 %v1454, %v2871
        %v3011 = vsub.f32 %v1456, %v2871
        %v3012 = vsub.f32 %v1265, %v2876
        %v3013 = vsub.f32 %v1267, %v2876
        %v3014 = vsub.f32 %v1458, %v2876
        %v3015 = vsub.f32 %v1460, %v2876
        %v3016 = vsub.f32 %v1271, %v2881
        %v3017 = vsub.f32 %v1273, %v2881
        %v3018 = vsub.f32 %v1464, %v2881
        %v3019 = vsub.f32 %v1466, %v2881
        %v3020 = vsub.f32 %v1275, %v2886
        %v3021 = vsub.f32 %v1277, %v2886
        %v3022 = vsub.f32 %v1468, %v2886
        %v3023 = vsub.f32 %v1470, %v2886
        %v3024 = vsub.f32 %v1281, %v2891
        %v3025 = vsub.f32 %v1283, %v2891
        %v3026 = vsub.f32 %v1474, %v2891
        %v3027 = vsub.f32 %v1476, %v2891
        %v3028 = vsub.f32 %v1285, %v2896
        %v3029 = vsub.f32 %v1287, %v2896
        %v3030 = vsub.f32 %v1478, %v2896
        %v3031 = vsub.f32 %v1480, %v2896
        %v3032 = vsub.f32 %v1291, %v2901
        %v3033 = vsub.f32 %v1293, %v2901
        %v3034 = vsub.f32 %v1484, %v2901
        %v3035 = vsub.f32 %v1486, %v2901
        %v3036 = vsub.f32 %v1295, %v2906
        %v3037 = vsub.f32 %v1297, %v2906
        %v3038 = vsub.f32 %v1488, %v2906
        %v3039 = vsub.f32 %v1490, %v2906
        %v3040 = vsub.f32 %v1301, %v2911
        %v3041 = vsub.f32 %v1303, %v2911
        %v3042 = vsub.f32 %v1494, %v2911
        %v3043 = vsub.f32 %v1496, %v2911
        %v3044 = vsub.f32 %v1305, %v2916
        %v3045 = vsub.f32 %v1307, %v2916
        %v3046 = vsub.f32 %v1498, %v2916
        %v3047 = vsub.f32 %v1500, %v2916
        %v3048 = vsub.f32 %v1311, %v2921
        %v3049 = vsub.f32 %v1313, %v2921
        %v3050 = vsub.f32 %v1504, %v2921
        %v3051 = vsub.f32 %v1506, %v2921
        %v3052 = vsub.f32 %v1315, %v2926
        %v3053 = vsub.f32 %v1317, %v2926
        %v3054 = vsub.f32 %v1508, %v2926
        %v3055 = vsub.f32 %v1510, %v2926
        %v3056 = vmul.f32 %v2928, 1.442695
        %v3057 = vpow.pop %v3056
        %v3058 = vmul.f32 %v2929, 1.442695
        %v3059 = vpow.pop %v3058
        %v3060 = vmul.f32 %v2930, 1.442695
        %v3061 = vpow.pop %v3060
        %v3062 = vmul.f32 %v2931, 1.442695
        %v3063 = vpow.pop %v3062
        %v3064 = vmul.f32 %v2932, 1.442695
        %v3065 = vpow.pop %v3064
        %v3066 = vmul.f32 %v2933, 1.442695
        %v3067 = vpow.pop %v3066
        %v3068 = vmul.f32 %v2934, 1.442695
        %v3069 = vpow.pop %v3068
        %v3070 = vmul.f32 %v2935, 1.442695
        %v3071 = vpow.pop %v3070
        %v3072 = vmul.f32 %v2936, 1.442695
        %v3073 = vpow.pop %v3072
        %v3074 = vmul.f32 %v2937, 1.442695
        %v3075 = vpow.pop %v3074
        %v3076 = vmul.f32 %v2938, 1.442695
        %v3077 = vpow.pop %v3076
        %v3078 = vmul.f32 %v2939, 1.442695
        %v3079 = vpow.pop %v3078
        %v3080 = vmul.f32 %v2940, 1.442695
        %v3081 = vpow.pop %v3080
        %v3082 = vmul.f32 %v2941, 1.442695
        %v3083 = vpow.pop %v3082
        %v3084 = vmul.f32 %v2942, 1.442695
        %v3085 = vpow.pop %v3084
        %v3086 = vmul.f32 %v2943, 1.442695
        %v3087 = vpow.pop %v3086
        %v3088 = vmul.f32 %v2944, 1.442695
        %v3089 = vpow.pop %v3088
        %v3090 = vmul.f32 %v2945, 1.442695
        %v3091 = vpow.pop %v3090
        %v3092 = vmul.f32 %v2946, 1.442695
        %v3093 = vpow.pop %v3092
        %v3094 = vmul.f32 %v2947, 1.442695
        %v3095 = vpow.pop %v3094
        %v3096 = vmul.f32 %v2948, 1.442695
        %v3097 = vpow.pop %v3096
        %v3098 = vmul.f32 %v2949, 1.442695
        %v3099 = vpow.pop %v3098
        %v3100 = vmul.f32 %v2950, 1.442695
        %v3101 = vpow.pop %v3100
        %v3102 = vmul.f32 %v2951, 1.442695
        %v3103 = vpow.pop %v3102
        %v3104 = vmul.f32 %v2952, 1.442695
        %v3105 = vpow.pop %v3104
        %v3106 = vmul.f32 %v2953, 1.442695
        %v3107 = vpow.pop %v3106
        %v3108 = vmul.f32 %v2954, 1.442695
        %v3109 = vpow.pop %v3108
        %v3110 = vmul.f32 %v2955, 1.442695
        %v3111 = vpow.pop %v3110
        %v3112 = vmul.f32 %v2956, 1.442695
        %v3113 = vpow.pop %v3112
        %v3114 = vmul.f32 %v2957, 1.442695
        %v3115 = vpow.pop %v3114
        %v3116 = vmul.f32 %v2958, 1.442695
        %v3117 = vpow.pop %v3116
        %v3118 = vmul.f32 %v2959, 1.442695
        %v3119 = vpow.pop %v3118
        %v3120 = vmul.f32 %v2960, 1.442695
        %v3121 = vpow.pop %v3120
        %v3122 = vmul.f32 %v2961, 1.442695
        %v3123 = vpow.pop %v3122
        %v3124 = vmul.f32 %v2962, 1.442695
        %v3125 = vpow.pop %v3124
        %v3126 = vmul.f32 %v2963, 1.442695
        %v3127 = vpow.pop %v3126
        %v3128 = vmul.f32 %v2964, 1.442695
        %v3129 = vpow.pop %v3128
        %v3130 = vmul.f32 %v2965, 1.442695
        %v3131 = vpow.pop %v3130
        %v3132 = vmul.f32 %v2966, 1.442695
        %v3133 = vpow.pop %v3132
        %v3134 = vmul.f32 %v2967, 1.442695
        %v3135 = vpow.pop %v3134
        %v3136 = vmul.f32 %v2968, 1.442695
        %v3137 = vpow.pop %v3136
        %v3138 = vmul.f32 %v2969, 1.442695
        %v3139 = vpow.pop %v3138
        %v3140 = vmul.f32 %v2970, 1.442695
        %v3141 = vpow.pop %v3140
        %v3142 = vmul.f32 %v2971, 1.442695
        %v3143 = vpow.pop %v3142
        %v3144 = vmul.f32 %v2972, 1.442695
        %v3145 = vpow.pop %v3144
        %v3146 = vmul.f32 %v2973, 1.442695
        %v3147 = vpow.pop %v3146
        %v3148 = vmul.f32 %v2974, 1.442695
        %v3149 = vpow.pop %v3148
        %v3150 = vmul.f32 %v2975, 1.442695
        %v3151 = vpow.pop %v3150
        %v3152 = vmul.f32 %v2976, 1.442695
        %v3153 = vpow.pop %v3152
        %v3154 = vmul.f32 %v2977, 1.442695
        %v3155 = vpow.pop %v3154
        %v3156 = vmul.f32 %v2978, 1.442695
        %v3157 = vpow.pop %v3156
        %v3158 = vmul.f32 %v2979, 1.442695
        %v3159 = vpow.pop %v3158
        %v3160 = vmul.f32 %v2980, 1.442695
        %v3161 = vpow.pop %v3160
        %v3162 = vmul.f32 %v2981, 1.442695
        %v3163 = vpow.pop %v3162
        %v3164 = vmul.f32 %v2982, 1.442695
        %v3165 = vpow.pop %v3164
        %v3166 = vmul.f32 %v2983, 1.442695
        %v3167 = vpow.pop %v3166
        %v3168 = vmul.f32 %v2984, 1.442695
        %v3169 = vpow.pop %v3168
        %v3170 = vmul.f32 %v2985, 1.442695
        %v3171 = vpow.pop %v3170
        %v3172 = vmul.f32 %v2986, 1.442695
        %v3173 = vpow.pop %v3172
        %v3174 = vmul.f32 %v2987, 1.442695
        %v3175 = vpow.pop %v3174
        %v3176 = vmul.f32 %v2988, 1.442695
        %v3177 = vpow.pop %v3176
        %v3178 = vmul.f32 %v2989, 1.442695
        %v3179 = vpow.pop %v3178
        %v3180 = vmul.f32 %v2990, 1.442695
        %v3181 = vpow.pop %v3180
        %v3182 = vmul.f32 %v2991, 1.442695
        %v3183 = vpow.pop %v3182
        %v3184 = vmul.f32 %v2992, 1.442695
        %v3185 = vpow.pop %v3184
        %v3186 = vmul.f32 %v2993, 1.442695
        %v3187 = vpow.pop %v3186
        %v3188 = vmul.f32 %v2994, 1.442695
        %v3189 = vpow.pop %v3188
        %v3190 = vmul.f32 %v2995, 1.442695
        %v3191 = vpow.pop %v3190
        %v3192 = vmul.f32 %v2996, 1.442695
        %v3193 = vpow.pop %v3192
        %v3194 = vmul.f32 %v2997, 1.442695
        %v3195 = vpow.pop %v3194
        %v3196 = vmul.f32 %v2998, 1.442695
        %v3197 = vpow.pop %v3196
        %v3198 = vmul.f32 %v2999, 1.442695
        %v3199 = vpow.pop %v3198
        %v3200 = vmul.f32 %v3000, 1.442695
        %v3201 = vpow.pop %v3200
        %v3202 = vmul.f32 %v3001, 1.442695
        %v3203 = vpow.pop %v3202
        %v3204 = vmul.f32 %v3002, 1.442695
        %v3205 = vpow.pop %v3204
        %v3206 = vmul.f32 %v3003, 1.442695
        %v3207 = vpow.pop %v3206
        %v3208 = vmul.f32 %v3004, 1.442695
        %v3209 = vpow.pop %v3208
        %v3210 = vmul.f32 %v3005, 1.442695
        %v3211 = vpow.pop %v3210
        %v3212 = vmul.f32 %v3006, 1.442695
        %v3213 = vpow.pop %v3212
        %v3214 = vmul.f32 %v3007, 1.442695
        %v3215 = vpow.pop %v3214
        %v3216 = vmul.f32 %v3008, 1.442695
        %v3217 = vpow.pop %v3216
        %v3218 = vmul.f32 %v3009, 1.442695
        %v3219 = vpow.pop %v3218
        %v3220 = vmul.f32 %v3010, 1.442695
        %v3221 = vpow.pop %v3220
        %v3222 = vmul.f32 %v3011, 1.442695
        %v3223 = vpow.pop %v3222
        %v3224 = vmul.f32 %v3012, 1.442695
        %v3225 = vpow.pop %v3224
        %v3226 = vmul.f32 %v3013, 1.442695
        %v3227 = vpow.pop %v3226
        %v3228 = vmul.f32 %v3014, 1.442695
        %v3229 = vpow.pop %v3228
        %v3230 = vmul.f32 %v3015, 1.442695
        %v3231 = vpow.pop %v3230
        %v3232 = vmul.f32 %v3016, 1.442695
        %v3233 = vpow.pop %v3232
        %v3234 = vmul.f32 %v3017, 1.442695
        %v3235 = vpow.pop %v3234
        %v3236 = vmul.f32 %v3018, 1.442695
        %v3237 = vpow.pop %v3236
        %v3238 = vmul.f32 %v3019, 1.442695
        %v3239 = vpow.pop %v3238
        %v3240 = vmul.f32 %v3020, 1.442695
        %v3241 = vpow.pop %v3240
        %v3242 = vmul.f32 %v3021, 1.442695
        %v3243 = vpow.pop %v3242
        %v3244 = vmul.f32 %v3022, 1.442695
        %v3245 = vpow.pop %v3244
        %v3246 = vmul.f32 %v3023, 1.442695
        %v3247 = vpow.pop %v3246
        %v3248 = vmul.f32 %v3024, 1.442695
        %v3249 = vpow.pop %v3248
        %v3250 = vmul.f32 %v3025, 1.442695
        %v3251 = vpow.pop %v3250
        %v3252 = vmul.f32 %v3026, 1.442695
        %v3253 = vpow.pop %v3252
        %v3254 = vmul.f32 %v3027, 1.442695
        %v3255 = vpow.pop %v3254
        %v3256 = vmul.f32 %v3028, 1.442695
        %v3257 = vpow.pop %v3256
        %v3258 = vmul.f32 %v3029, 1.442695
        %v3259 = vpow.pop %v3258
        %v3260 = vmul.f32 %v3030, 1.442695
        %v3261 = vpow.pop %v3260
        %v3262 = vmul.f32 %v3031, 1.442695
        %v3263 = vpow.pop %v3262
        %v3264 = vmul.f32 %v3032, 1.442695
        %v3265 = vpow.pop %v3264
        %v3266 = vmul.f32 %v3033, 1.442695
        %v3267 = vpow.pop %v3266
        %v3268 = vmul.f32 %v3034, 1.442695
        %v3269 = vpow.pop %v3268
        %v3270 = vmul.f32 %v3035, 1.442695
        %v3271 = vpow.pop %v3270
        %v3272 = vmul.f32 %v3036, 1.442695
        %v3273 = vpow.pop %v3272
        %v3274 = vmul.f32 %v3037, 1.442695
        %v3275 = vpow.pop %v3274
        %v3276 = vmul.f32 %v3038, 1.442695
        %v3277 = vpow.pop %v3276
        %v3278 = vmul.f32 %v3039, 1.442695
        %v3279 = vpow.pop %v3278
        %v3280 = vmul.f32 %v3040, 1.442695
        %v3281 = vpow.pop %v3280
        %v3282 = vmul.f32 %v3041, 1.442695
        %v3283 = vpow.pop %v3282
        %v3284 = vmul.f32 %v3042, 1.442695
        %v3285 = vpow.pop %v3284
        %v3286 = vmul.f32 %v3043, 1.442695
        %v3287 = vpow.pop %v3286
        %v3288 = vmul.f32 %v3044, 1.442695
        %v3289 = vpow.pop %v3288
        %v3290 = vmul.f32 %v3045, 1.442695
        %v3291 = vpow.pop %v3290
        %v3292 = vmul.f32 %v3046, 1.442695
        %v3293 = vpow.pop %v3292
        %v3294 = vmul.f32 %v3047, 1.442695
        %v3295 = vpow.pop %v3294
        %v3296 = vmul.f32 %v3048, 1.442695
        %v3297 = vpow.pop %v3296
        %v3298 = vmul.f32 %v3049, 1.442695
        %v3299 = vpow.pop %v3298
        %v3300 = vmul.f32 %v3050, 1.442695
        %v3301 = vpow.pop %v3300
        %v3302 = vmul.f32 %v3051, 1.442695
        %v3303 = vpow.pop %v3302
        %v3304 = vmul.f32 %v3052, 1.442695
        %v3305 = vpow.pop %v3304
        %v3306 = vmul.f32 %v3053, 1.442695
        %v3307 = vpow.pop %v3306
        %v3308 = vmul.f32 %v3054, 1.442695
        %v3309 = vpow.pop %v3308
        %v3310 = vmul.f32 %v3055, 1.442695
        %v3311 = vpow.pop %v3310
        %v3312 = vadd.f32 %v3057, %v3059
        %v3313 = vadd.f32 %v3312, %v3061
        %v3314 = vadd.f32 %v3313, %v3063
        %3315 = vadd.xlane.f32.xlu0 %v3314
        %v3316 = vpop.xlane.xlu0 %3315
        %v3317 = vadd.f32 %v3065, %v3067
        %v3318 = vadd.f32 %v3317, %v3069
        %v3319 = vadd.f32 %v3318, %v3071
        %3320 = vadd.xlane.f32.xlu0 %v3319
        %v3321 = vpop.xlane.xlu0 %3320
        %v3322 = vadd.f32 %v3073, %v3075
        %v3323 = vadd.f32 %v3322, %v3077
        %v3324 = vadd.f32 %v3323, %v3079
        %3325 = vadd.xlane.f32.xlu0 %v3324
        %v3326 = vpop.xlane.xlu0 %3325
        %v3327 = vadd.f32 %v3081, %v3083
        %v3328 = vadd.f32 %v3327, %v3085
        %v3329 = vadd.f32 %v3328, %v3087
        %3330 = vadd.xlane.f32.xlu0 %v3329
        %v3331 = vpop.xlane.xlu0 %3330
        %v3332 = vadd.f32 %v3089, %v3091
        %v3333 = vadd.f32 %v3332, %v3093
        %v3334 = vadd.f32 %v3333, %v3095
        %3335 = vadd.xlane.f32.xlu0 %v3334
        %v3336 = vpop.xlane.xlu0 %3335
        %v3337 = vadd.f32 %v3097, %v3099
        %v3338 = vadd.f32 %v3337, %v3101
        %v3339 = vadd.f32 %v3338, %v3103
        %3340 = vadd.xlane.f32.xlu0 %v3339
        %v3341 = vpop.xlane.xlu0 %3340
        %v3342 = vadd.f32 %v3105, %v3107
        %v3343 = vadd.f32 %v3342, %v3109
        %v3344 = vadd.f32 %v3343, %v3111
        %3345 = vadd.xlane.f32.xlu0 %v3344
        %v3346 = vpop.xlane.xlu0 %3345
        %v3347 = vadd.f32 %v3113, %v3115
        %v3348 = vadd.f32 %v3347, %v3117
        %v3349 = vadd.f32 %v3348, %v3119
        %3350 = vadd.xlane.f32.xlu0 %v3349
        %v3351 = vpop.xlane.xlu0 %3350
        %v3352 = vadd.f32 %v3121, %v3123
        %v3353 = vadd.f32 %v3352, %v3125
        %v3354 = vadd.f32 %v3353, %v3127
        %3355 = vadd.xlane.f32.xlu0 %v3354
        %v3356 = vpop.xlane.xlu0 %3355
        %v3357 = vadd.f32 %v3129, %v3131
        %v3358 = vadd.f32 %v3357, %v3133
        %v3359 = vadd.f32 %v3358, %v3135
        %3360 = vadd.xlane.f32.xlu0 %v3359
        %v3361 = vpop.xlane.xlu0 %3360
        %v3362 = vadd.f32 %v3137, %v3139
        %v3363 = vadd.f32 %v3362, %v3141
        %v3364 = vadd.f32 %v3363, %v3143
        %3365 = vadd.xlane.f32.xlu0 %v3364
        %v3366 = vpop.xlane.xlu0 %3365
        %v3367 = vadd.f32 %v3145, %v3147
        %v3368 = vadd.f32 %v3367, %v3149
        %v3369 = vadd.f32 %v3368, %v3151
        %3370 = vadd.xlane.f32.xlu0 %v3369
        %v3371 = vpop.xlane.xlu0 %3370
        %v3372 = vadd.f32 %v3153, %v3155
        %v3373 = vadd.f32 %v3372, %v3157
        %v3374 = vadd.f32 %v3373, %v3159
        %3375 = vadd.xlane.f32.xlu0 %v3374
        %v3376 = vpop.xlane.xlu0 %3375
        %v3377 = vadd.f32 %v3161, %v3163
        %v3378 = vadd.f32 %v3377, %v3165
        %v3379 = vadd.f32 %v3378, %v3167
        %3380 = vadd.xlane.f32.xlu0 %v3379
        %v3381 = vpop.xlane.xlu0 %3380
        %v3382 = vadd.f32 %v3169, %v3171
        %v3383 = vadd.f32 %v3382, %v3173
        %v3384 = vadd.f32 %v3383, %v3175
        %3385 = vadd.xlane.f32.xlu0 %v3384
        %v3386 = vpop.xlane.xlu0 %3385
        %v3387 = vadd.f32 %v3177, %v3179
        %v3388 = vadd.f32 %v3387, %v3181
        %v3389 = vadd.f32 %v3388, %v3183
        %3390 = vadd.xlane.f32.xlu0 %v3389
        %v3391 = vpop.xlane.xlu0 %3390
        %v3392 = vadd.f32 %v3185, %v3187
        %v3393 = vadd.f32 %v3392, %v3189
        %v3394 = vadd.f32 %v3393, %v3191
        %3395 = vadd.xlane.f32.xlu0 %v3394
        %v3396 = vpop.xlane.xlu0 %3395
        %v3397 = vadd.f32 %v3193, %v3195
        %v3398 = vadd.f32 %v3397, %v3197
        %v3399 = vadd.f32 %v3398, %v3199
        %3400 = vadd.xlane.f32.xlu0 %v3399
        %v3401 = vpop.xlane.xlu0 %3400
        %v3402 = vadd.f32 %v3201, %v3203
        %v3403 = vadd.f32 %v3402, %v3205
        %v3404 = vadd.f32 %v3403, %v3207
        %3405 = vadd.xlane.f32.xlu0 %v3404
        %v3406 = vpop.xlane.xlu0 %3405
        %v3407 = vadd.f32 %v3209, %v3211
        %v3408 = vadd.f32 %v3407, %v3213
        %v3409 = vadd.f32 %v3408, %v3215
        %3410 = vadd.xlane.f32.xlu0 %v3409
        %v3411 = vpop.xlane.xlu0 %3410
        %v3412 = vadd.f32 %v3217, %v3219
        %v3413 = vadd.f32 %v3412, %v3221
        %v3414 = vadd.f32 %v3413, %v3223
        %3415 = vadd.xlane.f32.xlu0 %v3414
        %v3416 = vpop.xlane.xlu0 %3415
        %v3417 = vadd.f32 %v3225, %v3227
        %v3418 = vadd.f32 %v3417, %v3229
        %v3419 = vadd.f32 %v3418, %v3231
        %3420 = vadd.xlane.f32.xlu0 %v3419
        %v3421 = vpop.xlane.xlu0 %3420
        %v3422 = vadd.f32 %v3233, %v3235
        %v3423 = vadd.f32 %v3422, %v3237
        %v3424 = vadd.f32 %v3423, %v3239
        %3425 = vadd.xlane.f32.xlu0 %v3424
        %v3426 = vpop.xlane.xlu0 %3425
        %v3427 = vadd.f32 %v3241, %v3243
        %v3428 = vadd.f32 %v3427, %v3245
        %v3429 = vadd.f32 %v3428, %v3247
        %3430 = vadd.xlane.f32.xlu0 %v3429
        %v3431 = vpop.xlane.xlu0 %3430
        %v3432 = vadd.f32 %v3249, %v3251
        %v3433 = vadd.f32 %v3432, %v3253
        %v3434 = vadd.f32 %v3433, %v3255
        %3435 = vadd.xlane.f32.xlu0 %v3434
        %v3436 = vpop.xlane.xlu0 %3435
        %v3437 = vadd.f32 %v3257, %v3259
        %v3438 = vadd.f32 %v3437, %v3261
        %v3439 = vadd.f32 %v3438, %v3263
        %3440 = vadd.xlane.f32.xlu0 %v3439
        %v3441 = vpop.xlane.xlu0 %3440
        %v3442 = vadd.f32 %v3265, %v3267
        %v3443 = vadd.f32 %v3442, %v3269
        %v3444 = vadd.f32 %v3443, %v3271
        %3445 = vadd.xlane.f32.xlu0 %v3444
        %v3446 = vpop.xlane.xlu0 %3445
        %v3447 = vadd.f32 %v3273, %v3275
        %v3448 = vadd.f32 %v3447, %v3277
        %v3449 = vadd.f32 %v3448, %v3279
        %3450 = vadd.xlane.f32.xlu0 %v3449
        %v3451 = vpop.xlane.xlu0 %3450
        %v3452 = vadd.f32 %v3281, %v3283
        %v3453 = vadd.f32 %v3452, %v3285
        %v3454 = vadd.f32 %v3453, %v3287
        %3455 = vadd.xlane.f32.xlu0 %v3454
        %v3456 = vpop.xlane.xlu0 %3455
        %v3457 = vadd.f32 %v3289, %v3291
        %v3458 = vadd.f32 %v3457, %v3293
        %v3459 = vadd.f32 %v3458, %v3295
        %3460 = vadd.xlane.f32.xlu0 %v3459
        %v3461 = vpop.xlane.xlu0 %3460
        %v3462 = vadd.f32 %v3297, %v3299
        %v3463 = vadd.f32 %v3462, %v3301
        %v3464 = vadd.f32 %v3463, %v3303
        %3465 = vadd.xlane.f32.xlu0 %v3464
        %v3466 = vpop.xlane.xlu0 %3465
        %v3467 = vadd.f32 %v3305, %v3307
        %v3468 = vadd.f32 %v3467, %v3309
        %v3469 = vadd.f32 %v3468, %v3311
        %3470 = vadd.xlane.f32.xlu0 %v3469
        %v3471 = vpop.xlane.xlu0 %3470
        %v3472 = vld [vmem:[#allocation4] sm:$0xff]
        %v3473 = vld [vmem:[#allocation4 + $0x8] sm:$0xff]
        %v3474 = vld [vmem:[#allocation4 + $0x10] sm:$0xff]
        %v3475 = vld [vmem:[#allocation4 + $0x18] sm:$0xff]
        %v3476 = vld [vmem:[#allocation4 + $0x20] sm:$0xff]
        %v3477 = vld [vmem:[#allocation4 + $0x28] sm:$0xff]
        %v3478 = vld [vmem:[#allocation4 + $0x30] sm:$0xff]
        %v3479 = vld [vmem:[#allocation4 + $0x38] sm:$0xff]
        %v3480 = vld [vmem:[#allocation4 + $0x40] sm:$0xff]
        %v3481 = vld [vmem:[#allocation4 + $0x48] sm:$0xff]
        %v3482 = vld [vmem:[#allocation4 + $0x50] sm:$0xff]
        %v3483 = vld [vmem:[#allocation4 + $0x58] sm:$0xff]
        %v3484 = vld [vmem:[#allocation4 + $0x60] sm:$0xff]
        %v3485 = vld [vmem:[#allocation4 + $0x68] sm:$0xff]
        %v3486 = vld [vmem:[#allocation4 + $0x70] sm:$0xff]
        %v3487 = vld [vmem:[#allocation4 + $0x78] sm:$0xff]
        %v3488 = vld [vmem:[#allocation4 + $0x80] sm:$0xff]
        %v3489 = vld [vmem:[#allocation4 + $0x88] sm:$0xff]
        %v3490 = vld [vmem:[#allocation4 + $0x90] sm:$0xff]
        %v3491 = vld [vmem:[#allocation4 + $0x98] sm:$0xff]
        %v3492 = vld [vmem:[#allocation4 + $0xa0] sm:$0xff]
        %v3493 = vld [vmem:[#allocation4 + $0xa8] sm:$0xff]
        %v3494 = vld [vmem:[#allocation4 + $0xb0] sm:$0xff]
        %v3495 = vld [vmem:[#allocation4 + $0xb8] sm:$0xff]
        %v3496 = vld [vmem:[#allocation4 + $0xc0] sm:$0xff]
        %v3497 = vld [vmem:[#allocation4 + $0xc8] sm:$0xff]
        %v3498 = vld [vmem:[#allocation4 + $0xd0] sm:$0xff]
        %v3499 = vld [vmem:[#allocation4 + $0xd8] sm:$0xff]
        %v3500 = vld [vmem:[#allocation4 + $0xe0] sm:$0xff]
        %v3501 = vld [vmem:[#allocation4 + $0xe8] sm:$0xff]
        %v3502 = vld [vmem:[#allocation4 + $0xf0] sm:$0xff]
        %v3503 = vld [vmem:[#allocation4 + $0xf8] sm:$0xff]
        %v3504 = vmul.f32 %v2705, %v3472
        %v3505 = vmul.f32 %v2707, %v3473
        %v3506 = vmul.f32 %v2709, %v3474
        %v3507 = vmul.f32 %v2711, %v3475
        %v3508 = vmul.f32 %v2713, %v3476
        %v3509 = vmul.f32 %v2715, %v3477
        %v3510 = vmul.f32 %v2717, %v3478
        %v3511 = vmul.f32 %v2719, %v3479
        %v3512 = vmul.f32 %v2721, %v3480
        %v3513 = vmul.f32 %v2723, %v3481
        %v3514 = vmul.f32 %v2725, %v3482
        %v3515 = vmul.f32 %v2727, %v3483
        %v3516 = vmul.f32 %v2729, %v3484
        %v3517 = vmul.f32 %v2731, %v3485
        %v3518 = vmul.f32 %v2733, %v3486
        %v3519 = vmul.f32 %v2735, %v3487
        %v3520 = vmul.f32 %v2737, %v3488
        %v3521 = vmul.f32 %v2739, %v3489
        %v3522 = vmul.f32 %v2741, %v3490
        %v3523 = vmul.f32 %v2743, %v3491
        %v3524 = vmul.f32 %v2745, %v3492
        %v3525 = vmul.f32 %v2747, %v3493
        %v3526 = vmul.f32 %v2749, %v3494
        %v3527 = vmul.f32 %v2751, %v3495
        %v3528 = vmul.f32 %v2753, %v3496
        %v3529 = vmul.f32 %v2755, %v3497
        %v3530 = vmul.f32 %v2757, %v3498
        %v3531 = vmul.f32 %v2759, %v3499
        %v3532 = vmul.f32 %v2761, %v3500
        %v3533 = vmul.f32 %v2763, %v3501
        %v3534 = vmul.f32 %v2765, %v3502
        %v3535 = vmul.f32 %v2767, %v3503
        %v3536 = vadd.f32 %v3504, %v3316
        %v3537 = vadd.f32 %v3505, %v3321
        %v3538 = vadd.f32 %v3506, %v3326
        %v3539 = vadd.f32 %v3507, %v3331
        %v3540 = vadd.f32 %v3508, %v3336
        %v3541 = vadd.f32 %v3509, %v3341
        %v3542 = vadd.f32 %v3510, %v3346
        %v3543 = vadd.f32 %v3511, %v3351
        %v3544 = vadd.f32 %v3512, %v3356
        %v3545 = vadd.f32 %v3513, %v3361
        %v3546 = vadd.f32 %v3514, %v3366
        %v3547 = vadd.f32 %v3515, %v3371
        %v3548 = vadd.f32 %v3516, %v3376
        %v3549 = vadd.f32 %v3517, %v3381
        %v3550 = vadd.f32 %v3518, %v3386
        %v3551 = vadd.f32 %v3519, %v3391
        %v3552 = vadd.f32 %v3520, %v3396
        %v3553 = vadd.f32 %v3521, %v3401
        %v3554 = vadd.f32 %v3522, %v3406
        %v3555 = vadd.f32 %v3523, %v3411
        %v3556 = vadd.f32 %v3524, %v3416
        %v3557 = vadd.f32 %v3525, %v3421
        %v3558 = vadd.f32 %v3526, %v3426
        %v3559 = vadd.f32 %v3527, %v3431
        %v3560 = vadd.f32 %v3528, %v3436
        %v3561 = vadd.f32 %v3529, %v3441
        %v3562 = vadd.f32 %v3530, %v3446
        %v3563 = vadd.f32 %v3531, %v3451
        %v3564 = vadd.f32 %v3532, %v3456
        %v3565 = vadd.f32 %v3533, %v3461
        %v3566 = vadd.f32 %v3534, %v3466
        %v3567 = vadd.f32 %v3535, %v3471
        %3568 = vst.msk [vmem:[#allocation4] sm:$0xff] %vm2415, %v3536
        %3569 = vst.msk [vmem:[#allocation4 + $0x8] sm:$0xff] %vm2415, %v3537
        %3570 = vst.msk [vmem:[#allocation4 + $0x10] sm:$0xff] %vm2415, %v3538
        %3571 = vst.msk [vmem:[#allocation4 + $0x18] sm:$0xff] %vm2415, %v3539
        %3572 = vst.msk [vmem:[#allocation4 + $0x20] sm:$0xff] %vm2415, %v3540
        %3573 = vst.msk [vmem:[#allocation4 + $0x28] sm:$0xff] %vm2415, %v3541
        %3574 = vst.msk [vmem:[#allocation4 + $0x30] sm:$0xff] %vm2415, %v3542
        %3575 = vst.msk [vmem:[#allocation4 + $0x38] sm:$0xff] %vm2415, %v3543
        %3576 = vst.msk [vmem:[#allocation4 + $0x40] sm:$0xff] %vm2415, %v3544
        %3577 = vst.msk [vmem:[#allocation4 + $0x48] sm:$0xff] %vm2415, %v3545
        %3578 = vst.msk [vmem:[#allocation4 + $0x50] sm:$0xff] %vm2415, %v3546
        %3579 = vst.msk [vmem:[#allocation4 + $0x58] sm:$0xff] %vm2415, %v3547
        %3580 = vst.msk [vmem:[#allocation4 + $0x60] sm:$0xff] %vm2415, %v3548
        %3581 = vst.msk [vmem:[#allocation4 + $0x68] sm:$0xff] %vm2415, %v3549
        %3582 = vst.msk [vmem:[#allocation4 + $0x70] sm:$0xff] %vm2415, %v3550
        %3583 = vst.msk [vmem:[#allocation4 + $0x78] sm:$0xff] %vm2415, %v3551
        %3584 = vst.msk [vmem:[#allocation4 + $0x80] sm:$0xff] %vm2415, %v3552
        %3585 = vst.msk [vmem:[#allocation4 + $0x88] sm:$0xff] %vm2415, %v3553
        %3586 = vst.msk [vmem:[#allocation4 + $0x90] sm:$0xff] %vm2415, %v3554
        %3587 = vst.msk [vmem:[#allocation4 + $0x98] sm:$0xff] %vm2415, %v3555
        %3588 = vst.msk [vmem:[#allocation4 + $0xa0] sm:$0xff] %vm2415, %v3556
        %3589 = vst.msk [vmem:[#allocation4 + $0xa8] sm:$0xff] %vm2415, %v3557
        %3590 = vst.msk [vmem:[#allocation4 + $0xb0] sm:$0xff] %vm2415, %v3558
        %3591 = vst.msk [vmem:[#allocation4 + $0xb8] sm:$0xff] %vm2415, %v3559
        %3592 = vst.msk [vmem:[#allocation4 + $0xc0] sm:$0xff] %vm2415, %v3560
        %3593 = vst.msk [vmem:[#allocation4 + $0xc8] sm:$0xff] %vm2415, %v3561
        %3594 = vst.msk [vmem:[#allocation4 + $0xd0] sm:$0xff] %vm2415, %v3562
        %3595 = vst.msk [vmem:[#allocation4 + $0xd8] sm:$0xff] %vm2415, %v3563
        %3596 = vst.msk [vmem:[#allocation4 + $0xe0] sm:$0xff] %vm2415, %v3564
        %3597 = vst.msk [vmem:[#allocation4 + $0xe8] sm:$0xff] %vm2415, %v3565
        %3598 = vst.msk [vmem:[#allocation4 + $0xf0] sm:$0xff] %vm2415, %v3566
        %3599 = vst.msk [vmem:[#allocation4 + $0xf8] sm:$0xff] %vm2415, %v3567
        %3600 = vst.msk [vmem:[#allocation3] sm:$0xff] %vm2415, %v2640
        %3601 = vst.msk [vmem:[#allocation3 + $0x8] sm:$0xff] %vm2415, %v2641
        %3602 = vst.msk [vmem:[#allocation3 + $0x10] sm:$0xff] %vm2415, %v2642
        %3603 = vst.msk [vmem:[#allocation3 + $0x18] sm:$0xff] %vm2415, %v2643
        %3604 = vst.msk [vmem:[#allocation3 + $0x20] sm:$0xff] %vm2415, %v2644
        %3605 = vst.msk [vmem:[#allocation3 + $0x28] sm:$0xff] %vm2415, %v2645
        %3606 = vst.msk [vmem:[#allocation3 + $0x30] sm:$0xff] %vm2415, %v2646
        %3607 = vst.msk [vmem:[#allocation3 + $0x38] sm:$0xff] %vm2415, %v2647
        %3608 = vst.msk [vmem:[#allocation3 + $0x40] sm:$0xff] %vm2415, %v2648
        %3609 = vst.msk [vmem:[#allocation3 + $0x48] sm:$0xff] %vm2415, %v2649
        %3610 = vst.msk [vmem:[#allocation3 + $0x50] sm:$0xff] %vm2415, %v2650
        %3611 = vst.msk [vmem:[#allocation3 + $0x58] sm:$0xff] %vm2415, %v2651
        %3612 = vst.msk [vmem:[#allocation3 + $0x60] sm:$0xff] %vm2415, %v2652
        %3613 = vst.msk [vmem:[#allocation3 + $0x68] sm:$0xff] %vm2415, %v2653
        %3614 = vst.msk [vmem:[#allocation3 + $0x70] sm:$0xff] %vm2415, %v2654
        %3615 = vst.msk [vmem:[#allocation3 + $0x78] sm:$0xff] %vm2415, %v2655
        %3616 = vst.msk [vmem:[#allocation3 + $0x80] sm:$0xff] %vm2415, %v2656
        %3617 = vst.msk [vmem:[#allocation3 + $0x88] sm:$0xff] %vm2415, %v2657
        %3618 = vst.msk [vmem:[#allocation3 + $0x90] sm:$0xff] %vm2415, %v2658
        %3619 = vst.msk [vmem:[#allocation3 + $0x98] sm:$0xff] %vm2415, %v2659
        %3620 = vst.msk [vmem:[#allocation3 + $0xa0] sm:$0xff] %vm2415, %v2660
        %3621 = vst.msk [vmem:[#allocation3 + $0xa8] sm:$0xff] %vm2415, %v2661
        %3622 = vst.msk [vmem:[#allocation3 + $0xb0] sm:$0xff] %vm2415, %v2662
        %3623 = vst.msk [vmem:[#allocation3 + $0xb8] sm:$0xff] %vm2415, %v2663
        %3624 = vst.msk [vmem:[#allocation3 + $0xc0] sm:$0xff] %vm2415, %v2664
        %3625 = vst.msk [vmem:[#allocation3 + $0xc8] sm:$0xff] %vm2415, %v2665
        %3626 = vst.msk [vmem:[#allocation3 + $0xd0] sm:$0xff] %vm2415, %v2666
        %3627 = vst.msk [vmem:[#allocation3 + $0xd8] sm:$0xff] %vm2415, %v2667
        %3628 = vst.msk [vmem:[#allocation3 + $0xe0] sm:$0xff] %vm2415, %v2668
        %3629 = vst.msk [vmem:[#allocation3 + $0xe8] sm:$0xff] %vm2415, %v2669
        %3630 = vst.msk [vmem:[#allocation3 + $0xf0] sm:$0xff] %vm2415, %v2670
        %3631 = vst.msk [vmem:[#allocation3 + $0xf8] sm:$0xff] %vm2415, %v2671
        %p3632 = scmp.eq.s32.totalorder %s29, 1
        // Predicated region
        $region53: #{tpu_custom_call.1} parent=43 // pred_check
          %p3633 = pneg %p3632
        $region54: #{tpu_custom_call.1} parent=43 // pred_check_branch
          %3635 = sbr.rel (%p3633) target = $region56
        $region55: #{tpu_custom_call.1} parent=43 // pred_region
          %vm3636 = vcmp.ne.s32.totalorder %v1512, 0
          %vm3637 = vcmp.ne.s32.totalorder %v1513, 0
          %vm3638 = vcmp.ne.s32.totalorder %v1514, 0
          %vm3639 = vcmp.ne.s32.totalorder %v1515, 0
          %vm3640 = vcmp.ne.s32.totalorder %v1516, 0
          %vm3641 = vcmp.ne.s32.totalorder %v1517, 0
          %vm3642 = vcmp.ne.s32.totalorder %v1518, 0
          %vm3643 = vcmp.ne.s32.totalorder %v1519, 0
          %vm3644 = vcmp.ne.s32.totalorder %v1520, 0
          %vm3645 = vcmp.ne.s32.totalorder %v1521, 0
          %vm3646 = vcmp.ne.s32.totalorder %v1522, 0
          %vm3647 = vcmp.ne.s32.totalorder %v1523, 0
          %vm3648 = vcmp.ne.s32.totalorder %v1524, 0
          %vm3649 = vcmp.ne.s32.totalorder %v1525, 0
          %vm3650 = vcmp.ne.s32.totalorder %v1526, 0
          %vm3651 = vcmp.ne.s32.totalorder %v1527, 0
          %vm3652 = vcmp.ne.s32.totalorder %v1528, 0
          %vm3653 = vcmp.ne.s32.totalorder %v1529, 0
          %vm3654 = vcmp.ne.s32.totalorder %v1530, 0
          %vm3655 = vcmp.ne.s32.totalorder %v1531, 0
          %vm3656 = vcmp.ne.s32.totalorder %v1532, 0
          %vm3657 = vcmp.ne.s32.totalorder %v1533, 0
          %vm3658 = vcmp.ne.s32.totalorder %v1534, 0
          %vm3659 = vcmp.ne.s32.totalorder %v1535, 0
          %vm3660 = vcmp.ne.s32.totalorder %v1536, 0
          %vm3661 = vcmp.ne.s32.totalorder %v1537, 0
          %vm3662 = vcmp.ne.s32.totalorder %v1538, 0
          %vm3663 = vcmp.ne.s32.totalorder %v1539, 0
          %vm3664 = vcmp.ne.s32.totalorder %v1540, 0
          %vm3665 = vcmp.ne.s32.totalorder %v1541, 0
          %vm3666 = vcmp.ne.s32.totalorder %v1542, 0
          %vm3667 = vcmp.ne.s32.totalorder %v1543, 0
          %v3668 = vsel %vm3636, 1, 0
          %v3669 = vsel %vm3637, 1, 0
          %v3670 = vsel %vm3638, 1, 0
          %v3671 = vsel %vm3639, 1, 0
          %v3672 = vsel %vm3640, 1, 0
          %v3673 = vsel %vm3641, 1, 0
          %v3674 = vsel %vm3642, 1, 0
          %v3675 = vsel %vm3643, 1, 0
          %v3676 = vsel %vm3644, 1, 0
          %v3677 = vsel %vm3645, 1, 0
          %v3678 = vsel %vm3646, 1, 0
          %v3679 = vsel %vm3647, 1, 0
          %v3680 = vsel %vm3648, 1, 0
          %v3681 = vsel %vm3649, 1, 0
          %v3682 = vsel %vm3650, 1, 0
          %v3683 = vsel %vm3651, 1, 0
          %v3684 = vsel %vm3652, 1, 0
          %v3685 = vsel %vm3653, 1, 0
          %v3686 = vsel %vm3654, 1, 0
          %v3687 = vsel %vm3655, 1, 0
          %v3688 = vsel %vm3656, 1, 0
          %v3689 = vsel %vm3657, 1, 0
          %v3690 = vsel %vm3658, 1, 0
          %v3691 = vsel %vm3659, 1, 0
          %v3692 = vsel %vm3660, 1, 0
          %v3693 = vsel %vm3661, 1, 0
          %v3694 = vsel %vm3662, 1, 0
          %v3695 = vsel %vm3663, 1, 0
          %v3696 = vsel %vm3664, 1, 0
          %v3697 = vsel %vm3665, 1, 0
          %v3698 = vsel %vm3666, 1, 0
          %v3699 = vsel %vm3667, 1, 0
          %v3700 = vcvt.s32.f32 %v3668
          %v3701 = vcvt.s32.f32 %v3669
          %v3702 = vcvt.s32.f32 %v3670
          %v3703 = vcvt.s32.f32 %v3671
          %v3704 = vcvt.s32.f32 %v3672
          %v3705 = vcvt.s32.f32 %v3673
          %v3706 = vcvt.s32.f32 %v3674
          %v3707 = vcvt.s32.f32 %v3675
          %v3708 = vcvt.s32.f32 %v3676
          %v3709 = vcvt.s32.f32 %v3677
          %v3710 = vcvt.s32.f32 %v3678
          %v3711 = vcvt.s32.f32 %v3679
          %v3712 = vcvt.s32.f32 %v3680
          %v3713 = vcvt.s32.f32 %v3681
          %v3714 = vcvt.s32.f32 %v3682
          %v3715 = vcvt.s32.f32 %v3683
          %v3716 = vcvt.s32.f32 %v3684
          %v3717 = vcvt.s32.f32 %v3685
          %v3718 = vcvt.s32.f32 %v3686
          %v3719 = vcvt.s32.f32 %v3687
          %v3720 = vcvt.s32.f32 %v3688
          %v3721 = vcvt.s32.f32 %v3689
          %v3722 = vcvt.s32.f32 %v3690
          %v3723 = vcvt.s32.f32 %v3691
          %v3724 = vcvt.s32.f32 %v3692
          %v3725 = vcvt.s32.f32 %v3693
          %v3726 = vcvt.s32.f32 %v3694
          %v3727 = vcvt.s32.f32 %v3695
          %v3728 = vcvt.s32.f32 %v3696
          %v3729 = vcvt.s32.f32 %v3697
          %v3730 = vcvt.s32.f32 %v3698
          %v3731 = vcvt.s32.f32 %v3699
          %v3732 = vld [vmem:[#allocation3] sm:$0xff]
          %v3733 = vld [vmem:[#allocation3 + $0x8] sm:$0xff]
          %v3734 = vld [vmem:[#allocation3 + $0x10] sm:$0xff]
          %v3735 = vld [vmem:[#allocation3 + $0x18] sm:$0xff]
          %v3736 = vld [vmem:[#allocation3 + $0x20] sm:$0xff]
          %v3737 = vld [vmem:[#allocation3 + $0x28] sm:$0xff]
          %v3738 = vld [vmem:[#allocation3 + $0x30] sm:$0xff]
          %v3739 = vld [vmem:[#allocation3 + $0x38] sm:$0xff]
          %v3740 = vld [vmem:[#allocation3 + $0x40] sm:$0xff]
          %v3741 = vld [vmem:[#allocation3 + $0x48] sm:$0xff]
          %v3742 = vld [vmem:[#allocation3 + $0x50] sm:$0xff]
          %v3743 = vld [vmem:[#allocation3 + $0x58] sm:$0xff]
          %v3744 = vld [vmem:[#allocation3 + $0x60] sm:$0xff]
          %v3745 = vld [vmem:[#allocation3 + $0x68] sm:$0xff]
          %v3746 = vld [vmem:[#allocation3 + $0x70] sm:$0xff]
          %v3747 = vld [vmem:[#allocation3 + $0x78] sm:$0xff]
          %v3748 = vld [vmem:[#allocation3 + $0x80] sm:$0xff]
          %v3749 = vld [vmem:[#allocation3 + $0x88] sm:$0xff]
          %v3750 = vld [vmem:[#allocation3 + $0x90] sm:$0xff]
          %v3751 = vld [vmem:[#allocation3 + $0x98] sm:$0xff]
          %v3752 = vld [vmem:[#allocation3 + $0xa0] sm:$0xff]
          %v3753 = vld [vmem:[#allocation3 + $0xa8] sm:$0xff]
          %v3754 = vld [vmem:[#allocation3 + $0xb0] sm:$0xff]
          %v3755 = vld [vmem:[#allocation3 + $0xb8] sm:$0xff]
          %v3756 = vld [vmem:[#allocation3 + $0xc0] sm:$0xff]
          %v3757 = vld [vmem:[#allocation3 + $0xc8] sm:$0xff]
          %v3758 = vld [vmem:[#allocation3 + $0xd0] sm:$0xff]
          %v3759 = vld [vmem:[#allocation3 + $0xd8] sm:$0xff]
          %v3760 = vld [vmem:[#allocation3 + $0xe0] sm:$0xff]
          %v3761 = vld [vmem:[#allocation3 + $0xe8] sm:$0xff]
          %v3762 = vld [vmem:[#allocation3 + $0xf0] sm:$0xff]
          %v3763 = vld [vmem:[#allocation3 + $0xf8] sm:$0xff]
          %v3764 = vld [vmem:[#allocation4] sm:$0xff]
          %v3765 = vld [vmem:[#allocation4 + $0x8] sm:$0xff]
          %v3766 = vld [vmem:[#allocation4 + $0x10] sm:$0xff]
          %v3767 = vld [vmem:[#allocation4 + $0x18] sm:$0xff]
          %v3768 = vld [vmem:[#allocation4 + $0x20] sm:$0xff]
          %v3769 = vld [vmem:[#allocation4 + $0x28] sm:$0xff]
          %v3770 = vld [vmem:[#allocation4 + $0x30] sm:$0xff]
          %v3771 = vld [vmem:[#allocation4 + $0x38] sm:$0xff]
          %v3772 = vld [vmem:[#allocation4 + $0x40] sm:$0xff]
          %v3773 = vld [vmem:[#allocation4 + $0x48] sm:$0xff]
          %v3774 = vld [vmem:[#allocation4 + $0x50] sm:$0xff]
          %v3775 = vld [vmem:[#allocation4 + $0x58] sm:$0xff]
          %v3776 = vld [vmem:[#allocation4 + $0x60] sm:$0xff]
          %v3777 = vld [vmem:[#allocation4 + $0x68] sm:$0xff]
          %v3778 = vld [vmem:[#allocation4 + $0x70] sm:$0xff]
          %v3779 = vld [vmem:[#allocation4 + $0x78] sm:$0xff]
          %v3780 = vld [vmem:[#allocation4 + $0x80] sm:$0xff]
          %v3781 = vld [vmem:[#allocation4 + $0x88] sm:$0xff]
          %v3782 = vld [vmem:[#allocation4 + $0x90] sm:$0xff]
          %v3783 = vld [vmem:[#allocation4 + $0x98] sm:$0xff]
          %v3784 = vld [vmem:[#allocation4 + $0xa0] sm:$0xff]
          %v3785 = vld [vmem:[#allocation4 + $0xa8] sm:$0xff]
          %v3786 = vld [vmem:[#allocation4 + $0xb0] sm:$0xff]
          %v3787 = vld [vmem:[#allocation4 + $0xb8] sm:$0xff]
          %v3788 = vld [vmem:[#allocation4 + $0xc0] sm:$0xff]
          %v3789 = vld [vmem:[#allocation4 + $0xc8] sm:$0xff]
          %v3790 = vld [vmem:[#allocation4 + $0xd0] sm:$0xff]
          %v3791 = vld [vmem:[#allocation4 + $0xd8] sm:$0xff]
          %v3792 = vld [vmem:[#allocation4 + $0xe0] sm:$0xff]
          %v3793 = vld [vmem:[#allocation4 + $0xe8] sm:$0xff]
          %v3794 = vld [vmem:[#allocation4 + $0xf0] sm:$0xff]
          %v3795 = vld [vmem:[#allocation4 + $0xf8] sm:$0xff]
          %v3796 = vlog2.pop %v3764
          %v3797 = vmul.f32 %v3796, 0.6931472
          %v3798 = vlog2.pop %v3765
          %v3799 = vmul.f32 %v3798, 0.6931472
          %v3800 = vlog2.pop %v3766
          %v3801 = vmul.f32 %v3800, 0.6931472
          %v3802 = vlog2.pop %v3767
          %v3803 = vmul.f32 %v3802, 0.6931472
          %v3804 = vlog2.pop %v3768
          %v3805 = vmul.f32 %v3804, 0.6931472
          %v3806 = vlog2.pop %v3769
          %v3807 = vmul.f32 %v3806, 0.6931472
          %v3808 = vlog2.pop %v3770
          %v3809 = vmul.f32 %v3808, 0.6931472
          %v3810 = vlog2.pop %v3771
          %v3811 = vmul.f32 %v3810, 0.6931472
          %v3812 = vlog2.pop %v3772
          %v3813 = vmul.f32 %v3812, 0.6931472
          %v3814 = vlog2.pop %v3773
          %v3815 = vmul.f32 %v3814, 0.6931472
          %v3816 = vlog2.pop %v3774
          %v3817 = vmul.f32 %v3816, 0.6931472
          %v3818 = vlog2.pop %v3775
          %v3819 = vmul.f32 %v3818, 0.6931472
          %v3820 = vlog2.pop %v3776
          %v3821 = vmul.f32 %v3820, 0.6931472
          %v3822 = vlog2.pop %v3777
          %v3823 = vmul.f32 %v3822, 0.6931472
          %v3824 = vlog2.pop %v3778
          %v3825 = vmul.f32 %v3824, 0.6931472
          %v3826 = vlog2.pop %v3779
          %v3827 = vmul.f32 %v3826, 0.6931472
          %v3828 = vlog2.pop %v3780
          %v3829 = vmul.f32 %v3828, 0.6931472
          %v3830 = vlog2.pop %v3781
          %v3831 = vmul.f32 %v3830, 0.6931472
          %v3832 = vlog2.pop %v3782
          %v3833 = vmul.f32 %v3832, 0.6931472
          %v3834 = vlog2.pop %v3783
          %v3835 = vmul.f32 %v3834, 0.6931472
          %v3836 = vlog2.pop %v3784
          %v3837 = vmul.f32 %v3836, 0.6931472
          %v3838 = vlog2.pop %v3785
          %v3839 = vmul.f32 %v3838, 0.6931472
          %v3840 = vlog2.pop %v3786
          %v3841 = vmul.f32 %v3840, 0.6931472
          %v3842 = vlog2.pop %v3787
          %v3843 = vmul.f32 %v3842, 0.6931472
          %v3844 = vlog2.pop %v3788
          %v3845 = vmul.f32 %v3844, 0.6931472
          %v3846 = vlog2.pop %v3789
          %v3847 = vmul.f32 %v3846, 0.6931472
          %v3848 = vlog2.pop %v3790
          %v3849 = vmul.f32 %v3848, 0.6931472
          %v3850 = vlog2.pop %v3791
          %v3851 = vmul.f32 %v3850, 0.6931472
          %v3852 = vlog2.pop %v3792
          %v3853 = vmul.f32 %v3852, 0.6931472
          %v3854 = vlog2.pop %v3793
          %v3855 = vmul.f32 %v3854, 0.6931472
          %v3856 = vlog2.pop %v3794
          %v3857 = vmul.f32 %v3856, 0.6931472
          %v3858 = vlog2.pop %v3795
          %v3859 = vmul.f32 %v3858, 0.6931472
          %v3860 = vadd.f32 %v3732, %v3797
          %v3861 = vadd.f32 %v3733, %v3799
          %v3862 = vadd.f32 %v3734, %v3801
          %v3863 = vadd.f32 %v3735, %v3803
          %v3864 = vadd.f32 %v3736, %v3805
          %v3865 = vadd.f32 %v3737, %v3807
          %v3866 = vadd.f32 %v3738, %v3809
          %v3867 = vadd.f32 %v3739, %v3811
          %v3868 = vadd.f32 %v3740, %v3813
          %v3869 = vadd.f32 %v3741, %v3815
          %v3870 = vadd.f32 %v3742, %v3817
          %v3871 = vadd.f32 %v3743, %v3819
          %v3872 = vadd.f32 %v3744, %v3821
          %v3873 = vadd.f32 %v3745, %v3823
          %v3874 = vadd.f32 %v3746, %v3825
          %v3875 = vadd.f32 %v3747, %v3827
          %v3876 = vadd.f32 %v3748, %v3829
          %v3877 = vadd.f32 %v3749, %v3831
          %v3878 = vadd.f32 %v3750, %v3833
          %v3879 = vadd.f32 %v3751, %v3835
          %v3880 = vadd.f32 %v3752, %v3837
          %v3881 = vadd.f32 %v3753, %v3839
          %v3882 = vadd.f32 %v3754, %v3841
          %v3883 = vadd.f32 %v3755, %v3843
          %v3884 = vadd.f32 %v3756, %v3845
          %v3885 = vadd.f32 %v3757, %v3847
          %v3886 = vadd.f32 %v3758, %v3849
          %v3887 = vadd.f32 %v3759, %v3851
          %v3888 = vadd.f32 %v3760, %v3853
          %v3889 = vadd.f32 %v3761, %v3855
          %v3890 = vadd.f32 %v3762, %v3857
          %v3891 = vadd.f32 %v3763, %v3859
          %v3892 = vld [vmem:[#allocation5] sm:$0xff]
          %v3893 = vld [vmem:[#allocation5 + $0x8] sm:$0xff]
          %v3894 = vld [vmem:[#allocation5 + $0x10] sm:$0xff]
          %v3895 = vld [vmem:[#allocation5 + $0x18] sm:$0xff]
          %v3896 = vld [vmem:[#allocation5 + $0x20] sm:$0xff]
          %v3897 = vld [vmem:[#allocation5 + $0x28] sm:$0xff]
          %v3898 = vld [vmem:[#allocation5 + $0x30] sm:$0xff]
          %v3899 = vld [vmem:[#allocation5 + $0x38] sm:$0xff]
          %v3900 = vld [vmem:[#allocation5 + $0x40] sm:$0xff]
          %v3901 = vld [vmem:[#allocation5 + $0x48] sm:$0xff]
          %v3902 = vld [vmem:[#allocation5 + $0x50] sm:$0xff]
          %v3903 = vld [vmem:[#allocation5 + $0x58] sm:$0xff]
          %v3904 = vld [vmem:[#allocation5 + $0x60] sm:$0xff]
          %v3905 = vld [vmem:[#allocation5 + $0x68] sm:$0xff]
          %v3906 = vld [vmem:[#allocation5 + $0x70] sm:$0xff]
          %v3907 = vld [vmem:[#allocation5 + $0x78] sm:$0xff]
          %v3908 = vld [vmem:[#allocation5 + $0x80] sm:$0xff]
          %v3909 = vld [vmem:[#allocation5 + $0x88] sm:$0xff]
          %v3910 = vld [vmem:[#allocation5 + $0x90] sm:$0xff]
          %v3911 = vld [vmem:[#allocation5 + $0x98] sm:$0xff]
          %v3912 = vld [vmem:[#allocation5 + $0xa0] sm:$0xff]
          %v3913 = vld [vmem:[#allocation5 + $0xa8] sm:$0xff]
          %v3914 = vld [vmem:[#allocation5 + $0xb0] sm:$0xff]
          %v3915 = vld [vmem:[#allocation5 + $0xb8] sm:$0xff]
          %v3916 = vld [vmem:[#allocation5 + $0xc0] sm:$0xff]
          %v3917 = vld [vmem:[#allocation5 + $0xc8] sm:$0xff]
          %v3918 = vld [vmem:[#allocation5 + $0xd0] sm:$0xff]
          %v3919 = vld [vmem:[#allocation5 + $0xd8] sm:$0xff]
          %v3920 = vld [vmem:[#allocation5 + $0xe0] sm:$0xff]
          %v3921 = vld [vmem:[#allocation5 + $0xe8] sm:$0xff]
          %v3922 = vld [vmem:[#allocation5 + $0xf0] sm:$0xff]
          %v3923 = vld [vmem:[#allocation5 + $0xf8] sm:$0xff]
          %v3924 = vsub.f32 %v3860, %v3892
          %v3925 = vsub.f32 %v3861, %v3893
          %v3926 = vsub.f32 %v3862, %v3894
          %v3927 = vsub.f32 %v3863, %v3895
          %v3928 = vsub.f32 %v3864, %v3896
          %v3929 = vsub.f32 %v3865, %v3897
          %v3930 = vsub.f32 %v3866, %v3898
          %v3931 = vsub.f32 %v3867, %v3899
          %v3932 = vsub.f32 %v3868, %v3900
          %v3933 = vsub.f32 %v3869, %v3901
          %v3934 = vsub.f32 %v3870, %v3902
          %v3935 = vsub.f32 %v3871, %v3903
          %v3936 = vsub.f32 %v3872, %v3904
          %v3937 = vsub.f32 %v3873, %v3905
          %v3938 = vsub.f32 %v3874, %v3906
          %v3939 = vsub.f32 %v3875, %v3907
          %v3940 = vsub.f32 %v3876, %v3908
          %v3941 = vsub.f32 %v3877, %v3909
          %v3942 = vsub.f32 %v3878, %v3910
          %v3943 = vsub.f32 %v3879, %v3911
          %v3944 = vsub.f32 %v3880, %v3912
          %v3945 = vsub.f32 %v3881, %v3913
          %v3946 = vsub.f32 %v3882, %v3914
          %v3947 = vsub.f32 %v3883, %v3915
          %v3948 = vsub.f32 %v3884, %v3916
          %v3949 = vsub.f32 %v3885, %v3917
          %v3950 = vsub.f32 %v3886, %v3918
          %v3951 = vsub.f32 %v3887, %v3919
          %v3952 = vsub.f32 %v3888, %v3920
          %v3953 = vsub.f32 %v3889, %v3921
          %v3954 = vsub.f32 %v3890, %v3922
          %v3955 = vsub.f32 %v3891, %v3923
          %v3956 = vmul.f32 %v3924, %v3700
          %v3957 = vmul.f32 %v3925, %v3701
          %v3958 = vmul.f32 %v3926, %v3702
          %v3959 = vmul.f32 %v3927, %v3703
          %v3960 = vmul.f32 %v3928, %v3704
          %v3961 = vmul.f32 %v3929, %v3705
          %v3962 = vmul.f32 %v3930, %v3706
          %v3963 = vmul.f32 %v3931, %v3707
          %v3964 = vmul.f32 %v3932, %v3708
          %v3965 = vmul.f32 %v3933, %v3709
          %v3966 = vmul.f32 %v3934, %v3710
          %v3967 = vmul.f32 %v3935, %v3711
          %v3968 = vmul.f32 %v3936, %v3712
          %v3969 = vmul.f32 %v3937, %v3713
          %v3970 = vmul.f32 %v3938, %v3714
          %v3971 = vmul.f32 %v3939, %v3715
          %v3972 = vmul.f32 %v3940, %v3716
          %v3973 = vmul.f32 %v3941, %v3717
          %v3974 = vmul.f32 %v3942, %v3718
          %v3975 = vmul.f32 %v3943, %v3719
          %v3976 = vmul.f32 %v3944, %v3720
          %v3977 = vmul.f32 %v3945, %v3721
          %v3978 = vmul.f32 %v3946, %v3722
          %v3979 = vmul.f32 %v3947, %v3723
          %v3980 = vmul.f32 %v3948, %v3724
          %v3981 = vmul.f32 %v3949, %v3725
          %v3982 = vmul.f32 %v3950, %v3726
          %v3983 = vmul.f32 %v3951, %v3727
          %v3984 = vmul.f32 %v3952, %v3728
          %v3985 = vmul.f32 %v3953, %v3729
          %v3986 = vmul.f32 %v3954, %v3730
          %v3987 = vmul.f32 %v3955, %v3731
          %v3988 = vsel %vm2415, %v3956, 0.0
          %v3989 = vsel %vm2415, %v3957, 0.0
          %v3990 = vadd.f32 %v3988, %v3989
          %v3991 = vsel %vm2415, %v3958, 0.0
          %v3992 = vadd.f32 %v3990, %v3991
          %v3993 = vsel %vm2415, %v3959, 0.0
          %v3994 = vadd.f32 %v3992, %v3993
          %v3995 = vsel %vm2415, %v3960, 0.0
          %v3996 = vadd.f32 %v3994, %v3995
          %v3997 = vsel %vm2415, %v3961, 0.0
          %v3998 = vadd.f32 %v3996, %v3997
          %v3999 = vsel %vm2415, %v3962, 0.0
          %v4000 = vadd.f32 %v3998, %v3999
          %v4001 = vsel %vm2415, %v3963, 0.0
          %v4002 = vadd.f32 %v4000, %v4001
          %v4003 = vsel %vm2415, %v3964, 0.0
          %v4004 = vadd.f32 %v4002, %v4003
          %v4005 = vsel %vm2415, %v3965, 0.0
          %v4006 = vadd.f32 %v4004, %v4005
          %v4007 = vsel %vm2415, %v3966, 0.0
          %v4008 = vadd.f32 %v4006, %v4007
          %v4009 = vsel %vm2415, %v3967, 0.0
          %v4010 = vadd.f32 %v4008, %v4009
          %v4011 = vsel %vm2415, %v3968, 0.0
          %v4012 = vadd.f32 %v4010, %v4011
          %v4013 = vsel %vm2415, %v3969, 0.0
          %v4014 = vadd.f32 %v4012, %v4013
          %v4015 = vsel %vm2415, %v3970, 0.0
          %v4016 = vadd.f32 %v4014, %v4015
          %v4017 = vsel %vm2415, %v3971, 0.0
          %v4018 = vadd.f32 %v4016, %v4017
          %v4019 = vsel %vm2415, %v3972, 0.0
          %v4020 = vadd.f32 %v4018, %v4019
          %v4021 = vsel %vm2415, %v3973, 0.0
          %v4022 = vadd.f32 %v4020, %v4021
          %v4023 = vsel %vm2415, %v3974, 0.0
          %v4024 = vadd.f32 %v4022, %v4023
          %v4025 = vsel %vm2415, %v3975, 0.0
          %v4026 = vadd.f32 %v4024, %v4025
          %v4027 = vsel %vm2415, %v3976, 0.0
          %v4028 = vadd.f32 %v4026, %v4027
          %v4029 = vsel %vm2415, %v3977, 0.0
          %v4030 = vadd.f32 %v4028, %v4029
          %v4031 = vsel %vm2415, %v3978, 0.0
          %v4032 = vadd.f32 %v4030, %v4031
          %v4033 = vsel %vm2415, %v3979, 0.0
          %v4034 = vadd.f32 %v4032, %v4033
          %v4035 = vsel %vm2415, %v3980, 0.0
          %v4036 = vadd.f32 %v4034, %v4035
          %v4037 = vsel %vm2415, %v3981, 0.0
          %v4038 = vadd.f32 %v4036, %v4037
          %v4039 = vsel %vm2415, %v3982, 0.0
          %v4040 = vadd.f32 %v4038, %v4039
          %v4041 = vsel %vm2415, %v3983, 0.0
          %v4042 = vadd.f32 %v4040, %v4041
          %v4043 = vsel %vm2415, %v3984, 0.0
          %v4044 = vadd.f32 %v4042, %v4043
          %v4045 = vsel %vm2415, %v3985, 0.0
          %v4046 = vadd.f32 %v4044, %v4045
          %v4047 = vsel %vm2415, %v3986, 0.0
          %v4048 = vadd.f32 %v4046, %v4047
          %v4049 = vsel %vm2415, %v3987, 0.0
          %v4050 = vadd.f32 %v4048, %v4049
          %4051 = vadd.xlane.f32.xlu0 %v4050
          %v4052 = vpop.xlane.xlu0 %4051
          %v4053 = vrot.slane %v4052, 4
          %v4054 = vadd.f32 %v4052, %v4053
          %v4055 = vrot.slane %v4054, 2
          %v4056 = vadd.f32 %v4054, %v4055
          %v4057 = vrot.slane %v4056, 1
          %v4058 = vadd.f32 %v4056, %v4057
          %s4059 = vtos %v4058
          %v4060 = vstv %s4059
          %vm4061 = vcmask 0
          %4062 = vst.msk [vmem:[#allocation9] sm:$0x1] %vm4061, %v4060
          %v4063 = vsel %vm2415, %v3700, 0.0
          %v4064 = vsel %vm2415, %v3701, 0.0
          %v4065 = vadd.f32 %v4063, %v4064
          %v4066 = vsel %vm2415, %v3702, 0.0
          %v4067 = vadd.f32 %v4065, %v4066
          %v4068 = vsel %vm2415, %v3703, 0.0
          %v4069 = vadd.f32 %v4067, %v4068
          %v4070 = vsel %vm2415, %v3704, 0.0
          %v4071 = vadd.f32 %v4069, %v4070
          %v4072 = vsel %vm2415, %v3705, 0.0
          %v4073 = vadd.f32 %v4071, %v4072
          %v4074 = vsel %vm2415, %v3706, 0.0
          %v4075 = vadd.f32 %v4073, %v4074
          %v4076 = vsel %vm2415, %v3707, 0.0
          %v4077 = vadd.f32 %v4075, %v4076
          %v4078 = vsel %vm2415, %v3708, 0.0
          %v4079 = vadd.f32 %v4077, %v4078
          %v4080 = vsel %vm2415, %v3709, 0.0
          %v4081 = vadd.f32 %v4079, %v4080
          %v4082 = vsel %vm2415, %v3710, 0.0
          %v4083 = vadd.f32 %v4081, %v4082
          %v4084 = vsel %vm2415, %v3711, 0.0
          %v4085 = vadd.f32 %v4083, %v4084
          %v4086 = vsel %vm2415, %v3712, 0.0
          %v4087 = vadd.f32 %v4085, %v4086
          %v4088 = vsel %vm2415, %v3713, 0.0
          %v4089 = vadd.f32 %v4087, %v4088
          %v4090 = vsel %vm2415, %v3714, 0.0
          %v4091 = vadd.f32 %v4089, %v4090
          %v4092 = vsel %vm2415, %v3715, 0.0
          %v4093 = vadd.f32 %v4091, %v4092
          %v4094 = vsel %vm2415, %v3716, 0.0
          %v4095 = vadd.f32 %v4093, %v4094
          %v4096 = vsel %vm2415, %v3717, 0.0
          %v4097 = vadd.f32 %v4095, %v4096
          %v4098 = vsel %vm2415, %v3718, 0.0
          %v4099 = vadd.f32 %v4097, %v4098
          %v4100 = vsel %vm2415, %v3719, 0.0
          %v4101 = vadd.f32 %v4099, %v4100
          %v4102 = vsel %vm2415, %v3720, 0.0
          %v4103 = vadd.f32 %v4101, %v4102
          %v4104 = vsel %vm2415, %v3721, 0.0
          %v4105 = vadd.f32 %v4103, %v4104
          %v4106 = vsel %vm2415, %v3722, 0.0
          %v4107 = vadd.f32 %v4105, %v4106
          %v4108 = vsel %vm2415, %v3723, 0.0
          %v4109 = vadd.f32 %v4107, %v4108
          %v4110 = vsel %vm2415, %v3724, 0.0
          %v4111 = vadd.f32 %v4109, %v4110
          %v4112 = vsel %vm2415, %v3725, 0.0
          %v4113 = vadd.f32 %v4111, %v4112
          %v4114 = vsel %vm2415, %v3726, 0.0
          %v4115 = vadd.f32 %v4113, %v4114
          %v4116 = vsel %vm2415, %v3727, 0.0
          %v4117 = vadd.f32 %v4115, %v4116
          %v4118 = vsel %vm2415, %v3728, 0.0
          %v4119 = vadd.f32 %v4117, %v4118
          %v4120 = vsel %vm2415, %v3729, 0.0
          %v4121 = vadd.f32 %v4119, %v4120
          %v4122 = vsel %vm2415, %v3730, 0.0
          %v4123 = vadd.f32 %v4121, %v4122
          %v4124 = vsel %vm2415, %v3731, 0.0
          %v4125 = vadd.f32 %v4123, %v4124
          %4126 = vadd.xlane.f32.xlu0 %v4125
          %v4127 = vpop.xlane.xlu0 %4126
          %v4128 = vrot.slane %v4127, 4
          %v4129 = vadd.f32 %v4127, %v4128
          %v4130 = vrot.slane %v4129, 2
          %v4131 = vadd.f32 %v4129, %v4130
          %v4132 = vrot.slane %v4131, 1
          %v4133 = vadd.f32 %v4131, %v4132
          %s4134 = vtos %v4133
          %v4135 = vstv %s4134
          %4136 = vst.msk [vmem:[#allocation10] sm:$0x1] %vm4061, %v4135
        $region56: #{tpu_custom_call.1} parent=43 // pred_fallthru
          _
        // Predicated region
        $region57: #{tpu_custom_call.1} parent=43 // pred_check
          %p4137 = pneg %p200
        $region58: #{tpu_custom_call.1} parent=43 // pred_check_branch
          %4139 = sbr.rel (%p4137) target = $region60
        $region59: #{tpu_custom_call.1} parent=43 // pred_region
          %s4141 = ssub.s32 16, 16
          %4142 = vsyncadd [#allocation8], %s4141
          %s4143 = smul.addr %s28, 16
          %s4144 = scalar_lea.hbm %s6, %s4143
          %s4146 = sshll.u32 [#allocation9], 4
          %s4147 = int_to_ptr.vmem [resolvable:$true] %s4146
          %4149 = dma.vmem_to_hbm [thread:$0]  %s4147, 16, %s4144, [#allocation8]
        $region60: #{tpu_custom_call.1} parent=43 // pred_fallthru
          _
        // Predicated region
        $region61: #{tpu_custom_call.1} parent=43 // pred_check
          %p4150 = pneg %p226
        $region62: #{tpu_custom_call.1} parent=43 // pred_check_branch
          %4152 = sbr.rel (%p4150) target = $region64
        $region63: #{tpu_custom_call.1} parent=43 // pred_region
          %s4154 = ssub.s32 16, 16
          %4155 = vsyncadd [#allocation11], %s4154
          %s4156 = smul.addr %s28, 16
          %s4157 = scalar_lea.hbm %s7, %s4156
          %s4159 = sshll.u32 [#allocation10], 4
          %s4160 = int_to_ptr.vmem [resolvable:$true] %s4159
          %4162 = dma.vmem_to_hbm [thread:$0]  %s4160, 16, %s4157, [#allocation11]
        $region64: #{tpu_custom_call.1} parent=43 // pred_fallthru
          _
        // Predicated region
        $region65: #{tpu_custom_call.1} parent=43 // pred_check
          %p4163 = pneg %p200
        $region66: #{tpu_custom_call.1} parent=43 // pred_check_branch
          %4165 = sbr.rel (%p4163) target = $region68
        $region67: #{tpu_custom_call.1} parent=43 // pred_region
          %4166 = dma.done [#allocation8], 16
        $region68: #{tpu_custom_call.1} parent=43 // pred_fallthru
          _
        // Predicated region
        $region69: #{tpu_custom_call.1} parent=43 // pred_check
          %p4167 = pneg %p226
        $region70: #{tpu_custom_call.1} parent=43 // pred_check_branch
          %4169 = sbr.rel (%p4167) target = $region72
        $region71: #{tpu_custom_call.1} parent=43 // pred_region
          %4170 = dma.done [#allocation11], 16
        $region72: #{tpu_custom_call.1} parent=43 // pred_fallthru
          _
      $region44: #{tpu_custom_call.1} parent=5 // pred_fallthru
        _
      %p4171 = scmp.le.s32.totalorder 2, %s19
      // Predicated region
      $region73: #{tpu_custom_call.1} parent=5 // pred_check
        %p4172 = pneg %p4171
      $region74: #{tpu_custom_call.1} parent=5 // pred_check_branch
        %4174 = sbr.rel (%p4172) target = $region76
      $region75: #{tpu_custom_call.1} parent=5 // pred_region
        %s4175 = ssub.s32 %s19, 2
      $region76: #{tpu_custom_call.1} parent=5 // pred_fallthru
        _
    $region6: #{tpu_custom_call.1} parent=1 // loop_footer
      %s23 = sadd.s32 1, %s19
    $region7: #{tpu_custom_call.1} parent=1 // loop_footer_branch
      %18 = sbr.rel target = $region3
    $region8: #{tpu_custom_call.1} parent=1 // loop_exit
      _
    %4176 = vsyncpa [#allocation7], 1
    %s4177 = scalar_lea.sflag [#allocation7], 1
    %4178 = vsyncpa %s4177, 1
    %4179 = vsyncpa [#allocation8], 1
    %s4180 = scalar_lea.sflag [#allocation8], 1
    %4181 = vsyncpa %s4180, 1
    %4182 = vsyncpa [#allocation11], 1

</llo_original>
